<compile_context>
chip_gen: v7x
topology: tpu7x:2x2x1
jax: 0.10.0
libtpu: 0.0.40
codegen_flags: <defaults>
</compile_context>

<pallas_src>
import functools

import jax
import jax.numpy as jnp
import numpy as np
from jax import lax
from jax.experimental import pallas as pl
from jax.experimental.pallas import tpu as pltpu


# ----------------------------------------------------------------------------
# helpers
# ----------------------------------------------------------------------------
def _full_spec(shape):
    """BlockSpec covering the whole array as a single block (grid=(1,))."""
    zeros = (0,) * len(shape)
    return pl.BlockSpec(shape, lambda i, _z=zeros: _z)


_COMPILER_PARAMS = pltpu.CompilerParams(
    dimension_semantics=("arbitrary",),
    vmem_limit_bytes=32 * 1024 * 1024,
)

_NEG_INF = -1e30

# (branches, heads_per_branch, out_ch, apply_relu) for the three GAT layers:
#   conv1 = fused convA..convD, conv2, conv3
_LAYER_CFG = ((4, 2, 128, True), (1, 2, 256, False), (1, 2, 128, False))


def _sigmoid(z):
    return 1.0 / (1.0 + jnp.exp(-z))


# ----------------------------------------------------------------------------
# one fused kernel: conv1(fused A..D) -> conv2 -> conv3 -> pool+mlp, seq mlp,
# sigmoid combine
# ----------------------------------------------------------------------------
def _fused_gat_kernel(
        x_ref, adj_ref,
        w1_ref, asrc1_ref, adst1_ref, b1_ref,
        w2_ref, asrc2_ref, adst2_ref, b2_ref,
        w3_ref, asrc3_ref, adst3_ref, b3_ref,
        assign_ref, counts_ref,
        mw1_ref, mb1_ref, mw2_ref, mb2_ref,
        cls_ref, sw1_ref, sb1_ref, sw2_ref, sb2_ref,
        comb_ref, gprob_ref, sprob_ref,
        *, layer_cfg):
    adj_ok = adj_ref[...] > 0.0                                   # [N, N] edge mask

    def gat_layer(x_f32, w_ref, asrc_ref, adst_ref, bias_ref,
                  branches, heads, out_ch, apply_relu):
        n = x_f32.shape[0]
        # linear transform: bf16 operands, f32 accumulation
        xw = jnp.dot(x_f32.astype(jnp.bfloat16), w_ref[...],
                     preferred_element_type=jnp.float32)          # [N, Ht*C] f32
        xw_bf = xw.astype(jnp.bfloat16)
        # all-head attention terms via two MXU calls against block-diag att mats
        src_rows = lax.dot_general(asrc_ref[...], xw_bf, (((1,), (1,)), ((), ())),
                                   preferred_element_type=jnp.float32)  # [Ht, N]
        dst_cols = jnp.dot(xw_bf, adst_ref[...],
                           preferred_element_type=jnp.float32)          # [N, Ht]
        outs = []
        for b in range(branches):                                 # static unroll
            acc = jnp.zeros((n, out_ch), jnp.float32)
            for k in range(heads):                                # static unroll
                h = b * heads + k
                # e[dst, src] = a_dst . xh[dst] + a_src . xh[src]
                e = dst_cols[:, h:h + 1] + src_rows[h:h + 1, :]   # [N, N] f32
                e = jnp.where(e > 0, e, 0.2 * e)                  # LeakyReLU(0.2)
                e = jnp.where(adj_ok, e, _NEG_INF)                # mask non-edges
                e = e - jnp.max(e, axis=-1, keepdims=True)        # softmax over src
                p = jnp.exp(e)                                    # non-edges -> 0
                denom = jnp.sum(p, axis=-1, keepdims=True)        # >= 1 (self loop)
                xh = xw_bf[:, h * out_ch:(h + 1) * out_ch]        # [N, C] bf16
                agg = jnp.dot(p.astype(jnp.bfloat16), xh,
                              preferred_element_type=jnp.float32)  # [N, C] f32
                acc = acc + agg * pl.reciprocal(denom, approx=True)
            # concat=False -> mean over heads + bias (per branch)
            out_b = acc * (1.0 / heads) + bias_ref[:, b * out_ch:(b + 1) * out_ch]
            if apply_relu:
                out_b = jnp.maximum(out_b, 0.0)
            outs.append(out_b)
        return outs[0] if branches == 1 else jnp.concatenate(outs, axis=1)

    cfg1, cfg2, cfg3 = layer_cfg
    x0 = x_ref[...]                                               # [N, Fin] f32
    x1 = gat_layer(x0, w1_ref, asrc1_ref, adst1_ref, b1_ref, *cfg1)   # [N, 512]
    x2 = gat_layer(x1, w2_ref, asrc2_ref, adst2_ref, b2_ref, *cfg2)   # [N, 256]
    x3 = gat_layer(x2, w3_ref, asrc3_ref, adst3_ref, b3_ref, *cfg3)   # [N, 128]

    # ---- global mean/max pool over `batch` + mlp head (dropout: eval no-op) ----
    assign = assign_ref[...]                                      # [G, N] one-hot
    counts = counts_ref[...]                                      # [G, 1]
    x3_bf = x3.astype(jnp.bfloat16)
    mean_p = jnp.dot(assign.astype(jnp.bfloat16), x3_bf,
                     preferred_element_type=jnp.float32) / counts  # [G, F]
    masked = jnp.where(assign[:, :, None] > 0, x3[None, :, :], _NEG_INF)
    max_p = jnp.max(masked, axis=1)                                # [G, F]

    feat = x3.shape[1]
    w1m = mw1_ref[...]                                             # [2F, 8] bf16
    h1 = (jnp.dot(mean_p.astype(jnp.bfloat16), w1m[:feat, :],
                  preferred_element_type=jnp.float32)
          + jnp.dot(max_p.astype(jnp.bfloat16), w1m[feat:, :],
                    preferred_element_type=jnp.float32)
          + mb1_ref[...])
    h1 = jnp.maximum(h1, 0.0)
    graph_logit = (jnp.dot(h1.astype(jnp.bfloat16), mw2_ref[...],
                           preferred_element_type=jnp.float32)
                   + mb2_ref[...])                                 # [G, 1]

    # ---- sequence mean-pool over seq dim + mlp2 head ----
    pooled = jnp.mean(cls_ref[...], axis=1)                        # [B, D] f32
    h1s = jnp.maximum(
        jnp.dot(pooled.astype(jnp.bfloat16), sw1_ref[...],
                preferred_element_type=jnp.float32) + sb1_ref[...], 0.0)
    seq_logit = (jnp.dot(h1s.astype(jnp.bfloat16), sw2_ref[...],
                         preferred_element_type=jnp.float32)
                 + sb2_ref[...])                                   # [B, 1]

    comb_ref[...] = _sigmoid(seq_logit + graph_logit)
    gprob_ref[...] = _sigmoid(graph_logit)
    sprob_ref[...] = _sigmoid(seq_logit)


def fused_forward(packed, x, adj, assign, counts, cls_last):
    c1, c2, c3 = packed["conv1"], packed["conv2"], packed["conv3"]
    mw1, mb1, mw2, mb2 = packed["mlp"]
    sw1, sb1, sw2, sb2 = packed["mlp2"]
    num_graphs = assign.shape[0]
    batch_size = cls_last.shape[0]

    args = (x, adj,
            c1["w"], c1["asrc"], c1["adst"], c1["bias"],
            c2["w"], c2["asrc"], c2["adst"], c2["bias"],
            c3["w"], c3["asrc"], c3["adst"], c3["bias"],
            assign, counts,
            mw1, mb1, mw2, mb2,
            cls_last, sw1, sb1, sw2, sb2)
    out_shape = (jax.ShapeDtypeStruct((num_graphs, 1), jnp.float32),
                 jax.ShapeDtypeStruct((num_graphs, 1), jnp.float32),
                 jax.ShapeDtypeStruct((batch_size, 1), jnp.float32))

    kernel = functools.partial(_fused_gat_kernel, layer_cfg=_LAYER_CFG)
    return pl.pallas_call(
        kernel,
        out_shape=out_shape,
        grid=(1,),
        in_specs=[_full_spec(a.shape) for a in args],
        out_specs=tuple(_full_spec(s.shape) for s in out_shape),
        compiler_params=_COMPILER_PARAMS,
    )(*args)


# ----------------------------------------------------------------------------
# parameter initialization (deterministic, synthetic) + packing for the kernel
# ----------------------------------------------------------------------------
def init_params(key, num_node_features, hid=128, heads=2, seq_dim=768):
    keys = iter(jax.random.split(key, 64))

    def lin_w(fin, fout):
        return (jax.random.normal(next(keys), (fin, fout), jnp.float32)
                / np.sqrt(float(fin)))

    def gat_params(fin, out_ch):
        w = lin_w(fin, heads * out_ch)                        # GATConv lin (bias=False)
        a_src = jax.random.normal(next(keys), (heads, out_ch), jnp.float32) * 0.1
        a_dst = jax.random.normal(next(keys), (heads, out_ch), jnp.float32) * 0.1
        b = jax.random.normal(next(keys), (out_ch,), jnp.float32) * 0.01
        return (w, a_src, a_dst, b)

    params = {
        "convA": gat_params(num_node_features, hid),
        "convB": gat_params(num_node_features, hid),
        "convC": gat_params(num_node_features, hid),
        "convD": gat_params(num_node_features, hid),
        "conv2": gat_params(hid * 4, hid * 2),
        "conv3": gat_params(hid * 2, hid),
        "mlp": (lin_w(hid * 2, 8),
                jax.random.normal(next(keys), (1, 8), jnp.float32) * 0.01,
                lin_w(8, 1),
                jax.random.normal(next(keys), (1, 1), jnp.float32) * 0.01),
        "mlp2": (lin_w(seq_dim, 8),
                 jax.random.normal(next(keys), (1, 8), jnp.float32) * 0.01,
                 lin_w(8, 1),
                 jax.random.normal(next(keys), (1, 1), jnp.float32) * 0.01),
    }
    return params


def _att_blocks(att_src, att_dst):
    """Block-diagonal attention matrices so all heads' coefficients are one matmul.

    src_blk[h, h*C + c] = att_src[h, c]   -> [H, H*C]
    dst_blk[h*C + c, h] = att_dst[h, c]   -> [H*C, H]
    """
    hh, cc = att_src.shape
    eye = jnp.eye(hh, dtype=jnp.float32)
    src_blk = (eye[:, :, None] * att_src[:, None, :]).reshape(hh, hh * cc)
    dst_blk = (eye[:, :, None] * att_dst[:, None, :]).reshape(hh, hh * cc).T
    return src_blk.astype(jnp.bfloat16), dst_blk.astype(jnp.bfloat16)


def pack_params(params):
    """Fuse convA..D, build block attention matrices, cast matmul weights to bf16."""
    ws, asrcs, adsts, bs = zip(*(params[k] for k in ("convA", "convB", "convC", "convD")))
    w1 = jnp.concatenate(ws, axis=1).astype(jnp.bfloat16)          # [Fin, 4*H*C]
    asrc1_blk, adst1_blk = _att_blocks(jnp.concatenate(asrcs, axis=0),
                                       jnp.concatenate(adsts, axis=0))
    bias1 = jnp.concatenate(bs, axis=0).reshape(1, -1)             # [1, 4*C] f32

    def pack_conv(p):
        w, a_src, a_dst, bias = p
        sblk, dblk = _att_blocks(a_src, a_dst)
        return {"w": w.astype(jnp.bfloat16), "asrc": sblk, "adst": dblk,
                "bias": bias.reshape(1, -1)}

    return {
        "conv1": {"w": w1, "asrc": asrc1_blk, "adst": adst1_blk, "bias": bias1},
        "conv2": pack_conv(params["conv2"]),
        "conv3": pack_conv(params["conv3"]),
        "mlp": (params["mlp"][0].astype(jnp.bfloat16), params["mlp"][1],
                params["mlp"][2].astype(jnp.bfloat16), params["mlp"][3]),
        "mlp2": (params["mlp2"][0].astype(jnp.bfloat16), params["mlp2"][1],
                 params["mlp2"][2].astype(jnp.bfloat16), params["mlp2"][3]),
    }


# ----------------------------------------------------------------------------
# full GAT.forward
# ----------------------------------------------------------------------------
def gat_forward(packed, x, edge_index, edge_attr, batch, cls_last, num_graphs):
    del edge_attr  # GATConv built with edge_dim=None -> edge_attr[:, k].long() is ignored
    n = x.shape[0]
    src, dst = edge_index[0], edge_index[1]
    # dense adjacency mask (messages flow src -> dst); add_self_loops=True in GATConv
    adj = jnp.zeros((n, n), jnp.float32).at[dst, src].set(1.0)
    adj = jnp.maximum(adj, jnp.eye(n, dtype=jnp.float32))

    assign = (batch[None, :] == jnp.arange(num_graphs, dtype=batch.dtype)[:, None])
    assign = assign.astype(jnp.float32)                            # [G, N]
    counts = jnp.sum(assign, axis=1, keepdims=True)                # [G, 1]

    # TODO(synk): self.encoder is an external HuggingFace RoBERTa; its last hidden
    #             state is supplied as the synthetic input `cls_last`. cross_att and
    #             multi_classifier are unused in the reference forward().
    combined, graph_prob, seq_prob = fused_forward(packed, x, adj, assign, counts, cls_last)
    return combined, graph_prob, seq_prob


# ----------------------------------------------------------------------------
# demo
# ----------------------------------------------------------------------------
if __name__ == "__main__":
    key = jax.random.PRNGKey(0)
    k_param, k_x, k_attr, k_cls = jax.random.split(key, 4)

    num_node_features = 64
    num_nodes = 16           # 2 graphs x 8 nodes
    num_graphs = 2
    batch_size = 2           # one sequence per graph
    seq_len = 8
    seq_dim = 768

    params = init_params(k_param, num_node_features)
    packed = pack_params(params)

    # graph inputs
    x = jax.random.normal(k_x, (num_nodes, num_node_features), jnp.float32)
    src, dst = [], []
    for base in (0, 8):                      # bidirectional chain within each graph
        for i in range(7):
            src += [base + i, base + i + 1]
            dst += [base + i + 1, base + i]
    edge_index = jnp.array([src, dst], dtype=jnp.int32)              # [2, 28]
    edge_attr = jax.random.randint(k_attr, (edge_index.shape[1], 4), 0, 2, jnp.int32)
    batch = jnp.array([0] * 8 + [1] * 8, dtype=jnp.int32)            # [16]

    # encoder last hidden state (synthetic stand-in for RoBERTa output)
    cls_last = jax.random.normal(k_cls, (batch_size, seq_len, seq_dim), jnp.float32)

    fwd = jax.jit(functools.partial(gat_forward, num_graphs=num_graphs))
    combined, graph_prob, seq_prob = fwd(packed, x, edge_index, edge_attr, batch, cls_last)
    jax.block_until_ready((combined, graph_prob, seq_prob))

    assert combined.shape == (num_graphs, 1)
    assert graph_prob.shape == (num_graphs, 1)
    assert seq_prob.shape == (batch_size, 1)
    assert bool(jnp.all(jnp.isfinite(combined)))
    assert bool(jnp.all((combined >= 0.0) & (combined <= 1.0)))
    print("KERNEL_OK")
</pallas_src>

<mosaic_0001>
module attributes {stable_mosaic.version = 11 : i64} {
  func.func @_fused_gat_kernel(%arg0: i32, %arg1: memref<16x64xf32, #tpu.memory_space<vmem>>, %arg2: memref<16x16xf32, #tpu.memory_space<vmem>>, %arg3: memref<64x1024xbf16, #tpu.memory_space<vmem>>, %arg4: memref<8x1024xbf16, #tpu.memory_space<vmem>>, %arg5: memref<1024x8xbf16, #tpu.memory_space<vmem>>, %arg6: memref<1x512xf32, #tpu.memory_space<vmem>>, %arg7: memref<512x512xbf16, #tpu.memory_space<vmem>>, %arg8: memref<2x512xbf16, #tpu.memory_space<vmem>>, %arg9: memref<512x2xbf16, #tpu.memory_space<vmem>>, %arg10: memref<1x256xf32, #tpu.memory_space<vmem>>, %arg11: memref<256x256xbf16, #tpu.memory_space<vmem>>, %arg12: memref<2x256xbf16, #tpu.memory_space<vmem>>, %arg13: memref<256x2xbf16, #tpu.memory_space<vmem>>, %arg14: memref<1x128xf32, #tpu.memory_space<vmem>>, %arg15: memref<2x16xf32, #tpu.memory_space<vmem>>, %arg16: memref<2x1xf32, #tpu.memory_space<vmem>>, %arg17: memref<256x8xbf16, #tpu.memory_space<vmem>>, %arg18: memref<1x8xf32, #tpu.memory_space<vmem>>, %arg19: memref<8x1xbf16, #tpu.memory_space<vmem>>, %arg20: memref<1x1xf32, #tpu.memory_space<vmem>>, %arg21: memref<2x8x768xf32, #tpu.memory_space<vmem>>, %arg22: memref<768x8xbf16, #tpu.memory_space<vmem>>, %arg23: memref<1x8xf32, #tpu.memory_space<vmem>>, %arg24: memref<8x1xbf16, #tpu.memory_space<vmem>>, %arg25: memref<1x1xf32, #tpu.memory_space<vmem>>, %arg26: memref<2x1xf32, #tpu.memory_space<vmem>>, %arg27: memref<2x1xf32, #tpu.memory_space<vmem>>, %arg28: memref<2x1xf32, #tpu.memory_space<vmem>>) attributes {dimension_semantics = [#tpu.dimension_semantics<arbitrary>], iteration_bounds = array<i64: 1>, scalar_prefetch = 0 : i64, scratch_operands = 0 : i64, tpu.core_type = #tpu.core_type<tc>, window_params = [{pipeline_mode = #tpu.pipeline_mode<synchronous>, transform_indices = @transform_0, window_bounds = array<i64: 16, 64>}, {pipeline_mode = #tpu.pipeline_mode<synchronous>, transform_indices = @transform_1, window_bounds = array<i64: 16, 16>}, {pipeline_mode = #tpu.pipeline_mode<synchronous>, transform_indices = @transform_2, window_bounds = array<i64: 64, 1024>}, {pipeline_mode = #tpu.pipeline_mode<synchronous>, transform_indices = @transform_3, window_bounds = array<i64: 8, 1024>}, {pipeline_mode = #tpu.pipeline_mode<synchronous>, transform_indices = @transform_4, window_bounds = array<i64: 1024, 8>}, {pipeline_mode = #tpu.pipeline_mode<synchronous>, transform_indices = @transform_5, window_bounds = array<i64: 1, 512>}, {pipeline_mode = #tpu.pipeline_mode<synchronous>, transform_indices = @transform_6, window_bounds = array<i64: 512, 512>}, {pipeline_mode = #tpu.pipeline_mode<synchronous>, transform_indices = @transform_7, window_bounds = array<i64: 2, 512>}, {pipeline_mode = #tpu.pipeline_mode<synchronous>, transform_indices = @transform_8, window_bounds = array<i64: 512, 2>}, {pipeline_mode = #tpu.pipeline_mode<synchronous>, transform_indices = @transform_9, window_bounds = array<i64: 1, 256>}, {pipeline_mode = #tpu.pipeline_mode<synchronous>, transform_indices = @transform_10, window_bounds = array<i64: 256, 256>}, {pipeline_mode = #tpu.pipeline_mode<synchronous>, transform_indices = @transform_11, window_bounds = array<i64: 2, 256>}, {pipeline_mode = #tpu.pipeline_mode<synchronous>, transform_indices = @transform_12, window_bounds = array<i64: 256, 2>}, {pipeline_mode = #tpu.pipeline_mode<synchronous>, transform_indices = @transform_13, window_bounds = array<i64: 1, 128>}, {pipeline_mode = #tpu.pipeline_mode<synchronous>, transform_indices = @transform_14, window_bounds = array<i64: 2, 16>}, {pipeline_mode = #tpu.pipeline_mode<synchronous>, transform_indices = @transform_15, window_bounds = array<i64: 2, 1>}, {pipeline_mode = #tpu.pipeline_mode<synchronous>, transform_indices = @transform_16, window_bounds = array<i64: 256, 8>}, {pipeline_mode = #tpu.pipeline_mode<synchronous>, transform_indices = @transform_17, window_bounds = array<i64: 1, 8>}, {pipeline_mode = #tpu.pipeline_mode<synchronous>, transform_indices = @transform_18, window_bounds = array<i64: 8, 1>}, {pipeline_mode = #tpu.pipeline_mode<synchronous>, transform_indices = @transform_19, window_bounds = array<i64: 1, 1>}, {pipeline_mode = #tpu.pipeline_mode<synchronous>, transform_indices = @transform_20, window_bounds = array<i64: 2, 8, 768>}, {pipeline_mode = #tpu.pipeline_mode<synchronous>, transform_indices = @transform_21, window_bounds = array<i64: 768, 8>}, {pipeline_mode = #tpu.pipeline_mode<synchronous>, transform_indices = @transform_22, window_bounds = array<i64: 1, 8>}, {pipeline_mode = #tpu.pipeline_mode<synchronous>, transform_indices = @transform_23, window_bounds = array<i64: 8, 1>}, {pipeline_mode = #tpu.pipeline_mode<synchronous>, transform_indices = @transform_24, window_bounds = array<i64: 1, 1>}, {pipeline_mode = #tpu.pipeline_mode<synchronous>, transform_indices = @transform_25, window_bounds = array<i64: 2, 1>}, {pipeline_mode = #tpu.pipeline_mode<synchronous>, transform_indices = @transform_26, window_bounds = array<i64: 2, 1>}, {pipeline_mode = #tpu.pipeline_mode<synchronous>, transform_indices = @transform_27, window_bounds = array<i64: 2, 1>}]} {
    %c0 = arith.constant 0 : index
    %c0_0 = arith.constant 0 : index
    %0 = vector.load %arg2[%c0, %c0_0] : memref<16x16xf32, #tpu.memory_space<vmem>>, vector<16x16xf32>
    %cst = arith.constant 0.000000e+00 : f32
    %1 = vector.broadcast %cst : f32 to vector<16x16xf32>
    %2 = arith.cmpf ogt, %0, %1 : vector<16x16xf32>
    %c0_1 = arith.constant 0 : index
    %c0_2 = arith.constant 0 : index
    %3 = vector.load %arg1[%c0_1, %c0_2] : memref<16x64xf32, #tpu.memory_space<vmem>>, vector<16x64xf32>
    %4 = arith.truncf %3 : vector<16x64xf32> to vector<16x64xbf16>
    %c0_3 = arith.constant 0 : index
    %c0_4 = arith.constant 0 : index
    %5 = vector.load %arg3[%c0_3, %c0_4] : memref<64x1024xbf16, #tpu.memory_space<vmem>>, vector<64x1024xbf16>
    %cst_5 = arith.constant dense<0.000000e+00> : vector<16x1024xf32>
    %6 = tpu.matmul %4, %5, %cst_5 {dimension_numbers = #tpu.dot_dimension_numbers<[1], [0], [0], [1], [0, 0, 1, 1], [], []>} : vector<16x64xbf16>, vector<64x1024xbf16>, vector<16x1024xf32> -> vector<16x1024xf32>
    %7 = arith.truncf %6 : vector<16x1024xf32> to vector<16x1024xbf16>
    %c0_6 = arith.constant 0 : index
    %c0_7 = arith.constant 0 : index
    %8 = vector.load %arg4[%c0_6, %c0_7] : memref<8x1024xbf16, #tpu.memory_space<vmem>>, vector<8x1024xbf16>
    %cst_8 = arith.constant dense<0.000000e+00> : vector<8x16xf32>
    %9 = tpu.matmul %8, %7, %cst_8 {dimension_numbers = #tpu.dot_dimension_numbers<[1], [1], [0], [0], [0, 0, 1, 0], [], []>} : vector<8x1024xbf16>, vector<16x1024xbf16>, vector<8x16xf32> -> vector<8x16xf32>
    %c0_9 = arith.constant 0 : index
    %c0_10 = arith.constant 0 : index
    %10 = vector.load %arg5[%c0_9, %c0_10] : memref<1024x8xbf16, #tpu.memory_space<vmem>>, vector<1024x8xbf16>
    %cst_11 = arith.constant dense<0.000000e+00> : vector<16x8xf32>
    %11 = tpu.matmul %7, %10, %cst_11 {dimension_numbers = #tpu.dot_dimension_numbers<[1], [0], [0], [1], [0, 0, 1, 1], [], []>} : vector<16x1024xbf16>, vector<1024x8xbf16>, vector<16x8xf32> -> vector<16x8xf32>
    %cst_12 = arith.constant 0.000000e+00 : f32
    %12 = vector.broadcast %cst_12 : f32 to vector<16x128xf32>
    %13 = vector.extract_strided_slice %11 {offsets = [0, 0], sizes = [16, 1], strides = [1, 1]} : vector<16x8xf32> to vector<16x1xf32>
    %14 = vector.extract_strided_slice %9 {offsets = [0, 0], sizes = [1, 16], strides = [1, 1]} : vector<8x16xf32> to vector<1x16xf32>
    %15 = vector.broadcast %13 : vector<16x1xf32> to vector<16x16xf32>
    %16 = vector.broadcast %14 : vector<1x16xf32> to vector<16x16xf32>
    %17 = arith.addf %15, %16 : vector<16x16xf32>
    %cst_13 = arith.constant 0.000000e+00 : f32
    %18 = vector.broadcast %cst_13 : f32 to vector<16x16xf32>
    %19 = arith.cmpf ogt, %17, %18 : vector<16x16xf32>
    %cst_14 = arith.constant 2.000000e-01 : f32
    %20 = vector.broadcast %cst_14 : f32 to vector<16x16xf32>
    %21 = arith.mulf %20, %17 : vector<16x16xf32>
    %22 = arith.select %19, %17, %21 : vector<16x16xi1>, vector<16x16xf32>
    %cst_15 = arith.constant -1.000000e+30 : f32
    %23 = vector.broadcast %cst_15 : f32 to vector<16x16xf32>
    %24 = arith.select %2, %22, %23 : vector<16x16xi1>, vector<16x16xf32>
    %cst_16 = arith.constant dense<0xFF800000> : vector<16xf32>
    %25 = vector.multi_reduction <maximumf>, %24, %cst_16 [1] : vector<16x16xf32> to vector<16xf32>
    %26 = vector.shape_cast %25 : vector<16xf32> to vector<16x1xf32>
    %27 = vector.broadcast %26 : vector<16x1xf32> to vector<16x16xf32>
    %28 = arith.subf %24, %27 : vector<16x16xf32>
    %29 = math.exp %28 : vector<16x16xf32>
    %cst_17 = arith.constant dense<0.000000e+00> : vector<16xf32>
    %30 = vector.multi_reduction <add>, %29, %cst_17 [1] : vector<16x16xf32> to vector<16xf32>
    %31 = vector.shape_cast %30 : vector<16xf32> to vector<16x1xf32>
    %32 = vector.extract_strided_slice %7 {offsets = [0, 0], sizes = [16, 128], strides = [1, 1]} : vector<16x1024xbf16> to vector<16x128xbf16>
    %33 = arith.truncf %29 : vector<16x16xf32> to vector<16x16xbf16>
    %cst_18 = arith.constant dense<0.000000e+00> : vector<16x128xf32>
    %34 = tpu.matmul %33, %32, %cst_18 {dimension_numbers = #tpu.dot_dimension_numbers<[1], [0], [0], [1], [0, 0, 1, 1], [], []>} : vector<16x16xbf16>, vector<16x128xbf16>, vector<16x128xf32> -> vector<16x128xf32>
    %35 = tpu.reciprocal %31 {approx = true} : vector<16x1xf32> -> vector<16x1xf32>
    %36 = vector.broadcast %35 : vector<16x1xf32> to vector<16x128xf32>
    %37 = arith.mulf %34, %36 : vector<16x128xf32>
    %38 = arith.addf %12, %37 : vector<16x128xf32>
    %39 = vector.extract_strided_slice %11 {offsets = [0, 1], sizes = [16, 1], strides = [1, 1]} : vector<16x8xf32> to vector<16x1xf32>
    %40 = vector.extract_strided_slice %9 {offsets = [1, 0], sizes = [1, 16], strides = [1, 1]} : vector<8x16xf32> to vector<1x16xf32>
    %41 = vector.broadcast %39 : vector<16x1xf32> to vector<16x16xf32>
    %42 = vector.broadcast %40 : vector<1x16xf32> to vector<16x16xf32>
    %43 = arith.addf %41, %42 : vector<16x16xf32>
    %cst_19 = arith.constant 0.000000e+00 : f32
    %44 = vector.broadcast %cst_19 : f32 to vector<16x16xf32>
    %45 = arith.cmpf ogt, %43, %44 : vector<16x16xf32>
    %cst_20 = arith.constant 2.000000e-01 : f32
    %46 = vector.broadcast %cst_20 : f32 to vector<16x16xf32>
    %47 = arith.mulf %46, %43 : vector<16x16xf32>
    %48 = arith.select %45, %43, %47 : vector<16x16xi1>, vector<16x16xf32>
    %cst_21 = arith.constant -1.000000e+30 : f32
    %49 = vector.broadcast %cst_21 : f32 to vector<16x16xf32>
    %50 = arith.select %2, %48, %49 : vector<16x16xi1>, vector<16x16xf32>
    %cst_22 = arith.constant dense<0xFF800000> : vector<16xf32>
    %51 = vector.multi_reduction <maximumf>, %50, %cst_22 [1] : vector<16x16xf32> to vector<16xf32>
    %52 = vector.shape_cast %51 : vector<16xf32> to vector<16x1xf32>
    %53 = vector.broadcast %52 : vector<16x1xf32> to vector<16x16xf32>
    %54 = arith.subf %50, %53 : vector<16x16xf32>
    %55 = math.exp %54 : vector<16x16xf32>
    %cst_23 = arith.constant dense<0.000000e+00> : vector<16xf32>
    %56 = vector.multi_reduction <add>, %55, %cst_23 [1] : vector<16x16xf32> to vector<16xf32>
    %57 = vector.shape_cast %56 : vector<16xf32> to vector<16x1xf32>
    %58 = vector.extract_strided_slice %7 {offsets = [0, 128], sizes = [16, 128], strides = [1, 1]} : vector<16x1024xbf16> to vector<16x128xbf16>
    %59 = arith.truncf %55 : vector<16x16xf32> to vector<16x16xbf16>
    %cst_24 = arith.constant dense<0.000000e+00> : vector<16x128xf32>
    %60 = tpu.matmul %59, %58, %cst_24 {dimension_numbers = #tpu.dot_dimension_numbers<[1], [0], [0], [1], [0, 0, 1, 1], [], []>} : vector<16x16xbf16>, vector<16x128xbf16>, vector<16x128xf32> -> vector<16x128xf32>
    %61 = tpu.reciprocal %57 {approx = true} : vector<16x1xf32> -> vector<16x1xf32>
    %62 = vector.broadcast %61 : vector<16x1xf32> to vector<16x128xf32>
    %63 = arith.mulf %60, %62 : vector<16x128xf32>
    %64 = arith.addf %38, %63 : vector<16x128xf32>
    %cst_25 = arith.constant 5.000000e-01 : f32
    %65 = vector.broadcast %cst_25 : f32 to vector<16x128xf32>
    %66 = arith.mulf %64, %65 : vector<16x128xf32>
    %c0_26 = arith.constant 0 : index
    %c0_27 = arith.constant 0 : index
    %67 = vector.load %arg6[%c0_26, %c0_27] : memref<1x512xf32, #tpu.memory_space<vmem>>, vector<1x128xf32>
    %68 = vector.broadcast %67 : vector<1x128xf32> to vector<16x128xf32>
    %69 = arith.addf %66, %68 : vector<16x128xf32>
    %cst_28 = arith.constant 0.000000e+00 : f32
    %70 = vector.broadcast %cst_28 : f32 to vector<16x128xf32>
    %71 = arith.maximumf %69, %70 : vector<16x128xf32>
    %cst_29 = arith.constant 0.000000e+00 : f32
    %72 = vector.broadcast %cst_29 : f32 to vector<16x128xf32>
    %73 = vector.extract_strided_slice %11 {offsets = [0, 2], sizes = [16, 1], strides = [1, 1]} : vector<16x8xf32> to vector<16x1xf32>
    %74 = vector.extract_strided_slice %9 {offsets = [2, 0], sizes = [1, 16], strides = [1, 1]} : vector<8x16xf32> to vector<1x16xf32>
    %75 = vector.broadcast %73 : vector<16x1xf32> to vector<16x16xf32>
    %76 = vector.broadcast %74 : vector<1x16xf32> to vector<16x16xf32>
    %77 = arith.addf %75, %76 : vector<16x16xf32>
    %cst_30 = arith.constant 0.000000e+00 : f32
    %78 = vector.broadcast %cst_30 : f32 to vector<16x16xf32>
    %79 = arith.cmpf ogt, %77, %78 : vector<16x16xf32>
    %cst_31 = arith.constant 2.000000e-01 : f32
    %80 = vector.broadcast %cst_31 : f32 to vector<16x16xf32>
    %81 = arith.mulf %80, %77 : vector<16x16xf32>
    %82 = arith.select %79, %77, %81 : vector<16x16xi1>, vector<16x16xf32>
    %cst_32 = arith.constant -1.000000e+30 : f32
    %83 = vector.broadcast %cst_32 : f32 to vector<16x16xf32>
    %84 = arith.select %2, %82, %83 : vector<16x16xi1>, vector<16x16xf32>
    %cst_33 = arith.constant dense<0xFF800000> : vector<16xf32>
    %85 = vector.multi_reduction <maximumf>, %84, %cst_33 [1] : vector<16x16xf32> to vector<16xf32>
    %86 = vector.shape_cast %85 : vector<16xf32> to vector<16x1xf32>
    %87 = vector.broadcast %86 : vector<16x1xf32> to vector<16x16xf32>
    %88 = arith.subf %84, %87 : vector<16x16xf32>
    %89 = math.exp %88 : vector<16x16xf32>
    %cst_34 = arith.constant dense<0.000000e+00> : vector<16xf32>
    %90 = vector.multi_reduction <add>, %89, %cst_34 [1] : vector<16x16xf32> to vector<16xf32>
    %91 = vector.shape_cast %90 : vector<16xf32> to vector<16x1xf32>
    %92 = vector.extract_strided_slice %7 {offsets = [0, 256], sizes = [16, 128], strides = [1, 1]} : vector<16x1024xbf16> to vector<16x128xbf16>
    %93 = arith.truncf %89 : vector<16x16xf32> to vector<16x16xbf16>
    %cst_35 = arith.constant dense<0.000000e+00> : vector<16x128xf32>
    %94 = tpu.matmul %93, %92, %cst_35 {dimension_numbers = #tpu.dot_dimension_numbers<[1], [0], [0], [1], [0, 0, 1, 1], [], []>} : vector<16x16xbf16>, vector<16x128xbf16>, vector<16x128xf32> -> vector<16x128xf32>
    %95 = tpu.reciprocal %91 {approx = true} : vector<16x1xf32> -> vector<16x1xf32>
    %96 = vector.broadcast %95 : vector<16x1xf32> to vector<16x128xf32>
    %97 = arith.mulf %94, %96 : vector<16x128xf32>
    %98 = arith.addf %72, %97 : vector<16x128xf32>
    %99 = vector.extract_strided_slice %11 {offsets = [0, 3], sizes = [16, 1], strides = [1, 1]} : vector<16x8xf32> to vector<16x1xf32>
    %100 = vector.extract_strided_slice %9 {offsets = [3, 0], sizes = [1, 16], strides = [1, 1]} : vector<8x16xf32> to vector<1x16xf32>
    %101 = vector.broadcast %99 : vector<16x1xf32> to vector<16x16xf32>
    %102 = vector.broadcast %100 : vector<1x16xf32> to vector<16x16xf32>
    %103 = arith.addf %101, %102 : vector<16x16xf32>
    %cst_36 = arith.constant 0.000000e+00 : f32
    %104 = vector.broadcast %cst_36 : f32 to vector<16x16xf32>
    %105 = arith.cmpf ogt, %103, %104 : vector<16x16xf32>
    %cst_37 = arith.constant 2.000000e-01 : f32
    %106 = vector.broadcast %cst_37 : f32 to vector<16x16xf32>
    %107 = arith.mulf %106, %103 : vector<16x16xf32>
    %108 = arith.select %105, %103, %107 : vector<16x16xi1>, vector<16x16xf32>
    %cst_38 = arith.constant -1.000000e+30 : f32
    %109 = vector.broadcast %cst_38 : f32 to vector<16x16xf32>
    %110 = arith.select %2, %108, %109 : vector<16x16xi1>, vector<16x16xf32>
    %cst_39 = arith.constant dense<0xFF800000> : vector<16xf32>
    %111 = vector.multi_reduction <maximumf>, %110, %cst_39 [1] : vector<16x16xf32> to vector<16xf32>
    %112 = vector.shape_cast %111 : vector<16xf32> to vector<16x1xf32>
    %113 = vector.broadcast %112 : vector<16x1xf32> to vector<16x16xf32>
    %114 = arith.subf %110, %113 : vector<16x16xf32>
    %115 = math.exp %114 : vector<16x16xf32>
    %cst_40 = arith.constant dense<0.000000e+00> : vector<16xf32>
    %116 = vector.multi_reduction <add>, %115, %cst_40 [1] : vector<16x16xf32> to vector<16xf32>
    %117 = vector.shape_cast %116 : vector<16xf32> to vector<16x1xf32>
    %118 = vector.extract_strided_slice %7 {offsets = [0, 384], sizes = [16, 128], strides = [1, 1]} : vector<16x1024xbf16> to vector<16x128xbf16>
    %119 = arith.truncf %115 : vector<16x16xf32> to vector<16x16xbf16>
    %cst_41 = arith.constant dense<0.000000e+00> : vector<16x128xf32>
    %120 = tpu.matmul %119, %118, %cst_41 {dimension_numbers = #tpu.dot_dimension_numbers<[1], [0], [0], [1], [0, 0, 1, 1], [], []>} : vector<16x16xbf16>, vector<16x128xbf16>, vector<16x128xf32> -> vector<16x128xf32>
    %121 = tpu.reciprocal %117 {approx = true} : vector<16x1xf32> -> vector<16x1xf32>
    %122 = vector.broadcast %121 : vector<16x1xf32> to vector<16x128xf32>
    %123 = arith.mulf %120, %122 : vector<16x128xf32>
    %124 = arith.addf %98, %123 : vector<16x128xf32>
    %cst_42 = arith.constant 5.000000e-01 : f32
    %125 = vector.broadcast %cst_42 : f32 to vector<16x128xf32>
    %126 = arith.mulf %124, %125 : vector<16x128xf32>
    %c0_43 = arith.constant 0 : index
    %c128 = arith.constant 128 : index
    %127 = vector.load %arg6[%c0_43, %c128] : memref<1x512xf32, #tpu.memory_space<vmem>>, vector<1x128xf32>
    %128 = vector.broadcast %127 : vector<1x128xf32> to vector<16x128xf32>
    %129 = arith.addf %126, %128 : vector<16x128xf32>
    %cst_44 = arith.constant 0.000000e+00 : f32
    %130 = vector.broadcast %cst_44 : f32 to vector<16x128xf32>
    %131 = arith.maximumf %129, %130 : vector<16x128xf32>
    %cst_45 = arith.constant 0.000000e+00 : f32
    %132 = vector.broadcast %cst_45 : f32 to vector<16x128xf32>
    %133 = vector.extract_strided_slice %11 {offsets = [0, 4], sizes = [16, 1], strides = [1, 1]} : vector<16x8xf32> to vector<16x1xf32>
    %134 = vector.extract_strided_slice %9 {offsets = [4, 0], sizes = [1, 16], strides = [1, 1]} : vector<8x16xf32> to vector<1x16xf32>
    %135 = vector.broadcast %133 : vector<16x1xf32> to vector<16x16xf32>
    %136 = vector.broadcast %134 : vector<1x16xf32> to vector<16x16xf32>
    %137 = arith.addf %135, %136 : vector<16x16xf32>
    %cst_46 = arith.constant 0.000000e+00 : f32
    %138 = vector.broadcast %cst_46 : f32 to vector<16x16xf32>
    %139 = arith.cmpf ogt, %137, %138 : vector<16x16xf32>
    %cst_47 = arith.constant 2.000000e-01 : f32
    %140 = vector.broadcast %cst_47 : f32 to vector<16x16xf32>
    %141 = arith.mulf %140, %137 : vector<16x16xf32>
    %142 = arith.select %139, %137, %141 : vector<16x16xi1>, vector<16x16xf32>
    %cst_48 = arith.constant -1.000000e+30 : f32
    %143 = vector.broadcast %cst_48 : f32 to vector<16x16xf32>
    %144 = arith.select %2, %142, %143 : vector<16x16xi1>, vector<16x16xf32>
    %cst_49 = arith.constant dense<0xFF800000> : vector<16xf32>
    %145 = vector.multi_reduction <maximumf>, %144, %cst_49 [1] : vector<16x16xf32> to vector<16xf32>
    %146 = vector.shape_cast %145 : vector<16xf32> to vector<16x1xf32>
    %147 = vector.broadcast %146 : vector<16x1xf32> to vector<16x16xf32>
    %148 = arith.subf %144, %147 : vector<16x16xf32>
    %149 = math.exp %148 : vector<16x16xf32>
    %cst_50 = arith.constant dense<0.000000e+00> : vector<16xf32>
    %150 = vector.multi_reduction <add>, %149, %cst_50 [1] : vector<16x16xf32> to vector<16xf32>
    %151 = vector.shape_cast %150 : vector<16xf32> to vector<16x1xf32>
    %152 = vector.extract_strided_slice %7 {offsets = [0, 512], sizes = [16, 128], strides = [1, 1]} : vector<16x1024xbf16> to vector<16x128xbf16>
    %153 = arith.truncf %149 : vector<16x16xf32> to vector<16x16xbf16>
    %cst_51 = arith.constant dense<0.000000e+00> : vector<16x128xf32>
    %154 = tpu.matmul %153, %152, %cst_51 {dimension_numbers = #tpu.dot_dimension_numbers<[1], [0], [0], [1], [0, 0, 1, 1], [], []>} : vector<16x16xbf16>, vector<16x128xbf16>, vector<16x128xf32> -> vector<16x128xf32>
    %155 = tpu.reciprocal %151 {approx = true} : vector<16x1xf32> -> vector<16x1xf32>
    %156 = vector.broadcast %155 : vector<16x1xf32> to vector<16x128xf32>
    %157 = arith.mulf %154, %156 : vector<16x128xf32>
    %158 = arith.addf %132, %157 : vector<16x128xf32>
    %159 = vector.extract_strided_slice %11 {offsets = [0, 5], sizes = [16, 1], strides = [1, 1]} : vector<16x8xf32> to vector<16x1xf32>
    %160 = vector.extract_strided_slice %9 {offsets = [5, 0], sizes = [1, 16], strides = [1, 1]} : vector<8x16xf32> to vector<1x16xf32>
    %161 = vector.broadcast %159 : vector<16x1xf32> to vector<16x16xf32>
    %162 = vector.broadcast %160 : vector<1x16xf32> to vector<16x16xf32>
    %163 = arith.addf %161, %162 : vector<16x16xf32>
    %cst_52 = arith.constant 0.000000e+00 : f32
    %164 = vector.broadcast %cst_52 : f32 to vector<16x16xf32>
    %165 = arith.cmpf ogt, %163, %164 : vector<16x16xf32>
    %cst_53 = arith.constant 2.000000e-01 : f32
    %166 = vector.broadcast %cst_53 : f32 to vector<16x16xf32>
    %167 = arith.mulf %166, %163 : vector<16x16xf32>
    %168 = arith.select %165, %163, %167 : vector<16x16xi1>, vector<16x16xf32>
    %cst_54 = arith.constant -1.000000e+30 : f32
    %169 = vector.broadcast %cst_54 : f32 to vector<16x16xf32>
    %170 = arith.select %2, %168, %169 : vector<16x16xi1>, vector<16x16xf32>
    %cst_55 = arith.constant dense<0xFF800000> : vector<16xf32>
    %171 = vector.multi_reduction <maximumf>, %170, %cst_55 [1] : vector<16x16xf32> to vector<16xf32>
    %172 = vector.shape_cast %171 : vector<16xf32> to vector<16x1xf32>
    %173 = vector.broadcast %172 : vector<16x1xf32> to vector<16x16xf32>
    %174 = arith.subf %170, %173 : vector<16x16xf32>
    %175 = math.exp %174 : vector<16x16xf32>
    %cst_56 = arith.constant dense<0.000000e+00> : vector<16xf32>
    %176 = vector.multi_reduction <add>, %175, %cst_56 [1] : vector<16x16xf32> to vector<16xf32>
    %177 = vector.shape_cast %176 : vector<16xf32> to vector<16x1xf32>
    %178 = vector.extract_strided_slice %7 {offsets = [0, 640], sizes = [16, 128], strides = [1, 1]} : vector<16x1024xbf16> to vector<16x128xbf16>
    %179 = arith.truncf %175 : vector<16x16xf32> to vector<16x16xbf16>
    %cst_57 = arith.constant dense<0.000000e+00> : vector<16x128xf32>
    %180 = tpu.matmul %179, %178, %cst_57 {dimension_numbers = #tpu.dot_dimension_numbers<[1], [0], [0], [1], [0, 0, 1, 1], [], []>} : vector<16x16xbf16>, vector<16x128xbf16>, vector<16x128xf32> -> vector<16x128xf32>
    %181 = tpu.reciprocal %177 {approx = true} : vector<16x1xf32> -> vector<16x1xf32>
    %182 = vector.broadcast %181 : vector<16x1xf32> to vector<16x128xf32>
    %183 = arith.mulf %180, %182 : vector<16x128xf32>
    %184 = arith.addf %158, %183 : vector<16x128xf32>
    %cst_58 = arith.constant 5.000000e-01 : f32
    %185 = vector.broadcast %cst_58 : f32 to vector<16x128xf32>
    %186 = arith.mulf %184, %185 : vector<16x128xf32>
    %c0_59 = arith.constant 0 : index
    %c256 = arith.constant 256 : index
    %187 = vector.load %arg6[%c0_59, %c256] : memref<1x512xf32, #tpu.memory_space<vmem>>, vector<1x128xf32>
    %188 = vector.broadcast %187 : vector<1x128xf32> to vector<16x128xf32>
    %189 = arith.addf %186, %188 : vector<16x128xf32>
    %cst_60 = arith.constant 0.000000e+00 : f32
    %190 = vector.broadcast %cst_60 : f32 to vector<16x128xf32>
    %191 = arith.maximumf %189, %190 : vector<16x128xf32>
    %cst_61 = arith.constant 0.000000e+00 : f32
    %192 = vector.broadcast %cst_61 : f32 to vector<16x128xf32>
    %193 = vector.extract_strided_slice %11 {offsets = [0, 6], sizes = [16, 1], strides = [1, 1]} : vector<16x8xf32> to vector<16x1xf32>
    %194 = vector.extract_strided_slice %9 {offsets = [6, 0], sizes = [1, 16], strides = [1, 1]} : vector<8x16xf32> to vector<1x16xf32>
    %195 = vector.broadcast %193 : vector<16x1xf32> to vector<16x16xf32>
    %196 = vector.broadcast %194 : vector<1x16xf32> to vector<16x16xf32>
    %197 = arith.addf %195, %196 : vector<16x16xf32>
    %cst_62 = arith.constant 0.000000e+00 : f32
    %198 = vector.broadcast %cst_62 : f32 to vector<16x16xf32>
    %199 = arith.cmpf ogt, %197, %198 : vector<16x16xf32>
    %cst_63 = arith.constant 2.000000e-01 : f32
    %200 = vector.broadcast %cst_63 : f32 to vector<16x16xf32>
    %201 = arith.mulf %200, %197 : vector<16x16xf32>
    %202 = arith.select %199, %197, %201 : vector<16x16xi1>, vector<16x16xf32>
    %cst_64 = arith.constant -1.000000e+30 : f32
    %203 = vector.broadcast %cst_64 : f32 to vector<16x16xf32>
    %204 = arith.select %2, %202, %203 : vector<16x16xi1>, vector<16x16xf32>
    %cst_65 = arith.constant dense<0xFF800000> : vector<16xf32>
    %205 = vector.multi_reduction <maximumf>, %204, %cst_65 [1] : vector<16x16xf32> to vector<16xf32>
    %206 = vector.shape_cast %205 : vector<16xf32> to vector<16x1xf32>
    %207 = vector.broadcast %206 : vector<16x1xf32> to vector<16x16xf32>
    %208 = arith.subf %204, %207 : vector<16x16xf32>
    %209 = math.exp %208 : vector<16x16xf32>
    %cst_66 = arith.constant dense<0.000000e+00> : vector<16xf32>
    %210 = vector.multi_reduction <add>, %209, %cst_66 [1] : vector<16x16xf32> to vector<16xf32>
    %211 = vector.shape_cast %210 : vector<16xf32> to vector<16x1xf32>
    %212 = vector.extract_strided_slice %7 {offsets = [0, 768], sizes = [16, 128], strides = [1, 1]} : vector<16x1024xbf16> to vector<16x128xbf16>
    %213 = arith.truncf %209 : vector<16x16xf32> to vector<16x16xbf16>
    %cst_67 = arith.constant dense<0.000000e+00> : vector<16x128xf32>
    %214 = tpu.matmul %213, %212, %cst_67 {dimension_numbers = #tpu.dot_dimension_numbers<[1], [0], [0], [1], [0, 0, 1, 1], [], []>} : vector<16x16xbf16>, vector<16x128xbf16>, vector<16x128xf32> -> vector<16x128xf32>
    %215 = tpu.reciprocal %211 {approx = true} : vector<16x1xf32> -> vector<16x1xf32>
    %216 = vector.broadcast %215 : vector<16x1xf32> to vector<16x128xf32>
    %217 = arith.mulf %214, %216 : vector<16x128xf32>
    %218 = arith.addf %192, %217 : vector<16x128xf32>
    %219 = vector.extract_strided_slice %11 {offsets = [0, 7], sizes = [16, 1], strides = [1, 1]} : vector<16x8xf32> to vector<16x1xf32>
    %220 = vector.extract_strided_slice %9 {offsets = [7, 0], sizes = [1, 16], strides = [1, 1]} : vector<8x16xf32> to vector<1x16xf32>
    %221 = vector.broadcast %219 : vector<16x1xf32> to vector<16x16xf32>
    %222 = vector.broadcast %220 : vector<1x16xf32> to vector<16x16xf32>
    %223 = arith.addf %221, %222 : vector<16x16xf32>
    %cst_68 = arith.constant 0.000000e+00 : f32
    %224 = vector.broadcast %cst_68 : f32 to vector<16x16xf32>
    %225 = arith.cmpf ogt, %223, %224 : vector<16x16xf32>
    %cst_69 = arith.constant 2.000000e-01 : f32
    %226 = vector.broadcast %cst_69 : f32 to vector<16x16xf32>
    %227 = arith.mulf %226, %223 : vector<16x16xf32>
    %228 = arith.select %225, %223, %227 : vector<16x16xi1>, vector<16x16xf32>
    %cst_70 = arith.constant -1.000000e+30 : f32
    %229 = vector.broadcast %cst_70 : f32 to vector<16x16xf32>
    %230 = arith.select %2, %228, %229 : vector<16x16xi1>, vector<16x16xf32>
    %cst_71 = arith.constant dense<0xFF800000> : vector<16xf32>
    %231 = vector.multi_reduction <maximumf>, %230, %cst_71 [1] : vector<16x16xf32> to vector<16xf32>
    %232 = vector.shape_cast %231 : vector<16xf32> to vector<16x1xf32>
    %233 = vector.broadcast %232 : vector<16x1xf32> to vector<16x16xf32>
    %234 = arith.subf %230, %233 : vector<16x16xf32>
    %235 = math.exp %234 : vector<16x16xf32>
    %cst_72 = arith.constant dense<0.000000e+00> : vector<16xf32>
    %236 = vector.multi_reduction <add>, %235, %cst_72 [1] : vector<16x16xf32> to vector<16xf32>
    %237 = vector.shape_cast %236 : vector<16xf32> to vector<16x1xf32>
    %238 = vector.extract_strided_slice %7 {offsets = [0, 896], sizes = [16, 128], strides = [1, 1]} : vector<16x1024xbf16> to vector<16x128xbf16>
    %239 = arith.truncf %235 : vector<16x16xf32> to vector<16x16xbf16>
    %cst_73 = arith.constant dense<0.000000e+00> : vector<16x128xf32>
    %240 = tpu.matmul %239, %238, %cst_73 {dimension_numbers = #tpu.dot_dimension_numbers<[1], [0], [0], [1], [0, 0, 1, 1], [], []>} : vector<16x16xbf16>, vector<16x128xbf16>, vector<16x128xf32> -> vector<16x128xf32>
    %241 = tpu.reciprocal %237 {approx = true} : vector<16x1xf32> -> vector<16x1xf32>
    %242 = vector.broadcast %241 : vector<16x1xf32> to vector<16x128xf32>
    %243 = arith.mulf %240, %242 : vector<16x128xf32>
    %244 = arith.addf %218, %243 : vector<16x128xf32>
    %cst_74 = arith.constant 5.000000e-01 : f32
    %245 = vector.broadcast %cst_74 : f32 to vector<16x128xf32>
    %246 = arith.mulf %244, %245 : vector<16x128xf32>
    %c0_75 = arith.constant 0 : index
    %c384 = arith.constant 384 : index
    %247 = vector.load %arg6[%c0_75, %c384] : memref<1x512xf32, #tpu.memory_space<vmem>>, vector<1x128xf32>
    %248 = vector.broadcast %247 : vector<1x128xf32> to vector<16x128xf32>
    %249 = arith.addf %246, %248 : vector<16x128xf32>
    %cst_76 = arith.constant 0.000000e+00 : f32
    %250 = vector.broadcast %cst_76 : f32 to vector<16x128xf32>
    %251 = arith.maximumf %249, %250 : vector<16x128xf32>
    %252 = tpu.concatenate %71, %131, %191, %251 in 1 : vector<16x128xf32>, vector<16x128xf32>, vector<16x128xf32>, vector<16x128xf32> -> vector<16x512xf32>
    %253 = arith.truncf %252 : vector<16x512xf32> to vector<16x512xbf16>
    %c0_77 = arith.constant 0 : index
    %c0_78 = arith.constant 0 : index
    %254 = vector.load %arg7[%c0_77, %c0_78] : memref<512x512xbf16, #tpu.memory_space<vmem>>, vector<512x512xbf16>
    %cst_79 = arith.constant dense<0.000000e+00> : vector<16x512xf32>
    %255 = tpu.matmul %253, %254, %cst_79 {dimension_numbers = #tpu.dot_dimension_numbers<[1], [0], [0], [1], [0, 0, 1, 1], [], []>} : vector<16x512xbf16>, vector<512x512xbf16>, vector<16x512xf32> -> vector<16x512xf32>
    %256 = arith.truncf %255 : vector<16x512xf32> to vector<16x512xbf16>
    %c0_80 = arith.constant 0 : index
    %c0_81 = arith.constant 0 : index
    %257 = vector.load %arg8[%c0_80, %c0_81] : memref<2x512xbf16, #tpu.memory_space<vmem>>, vector<2x512xbf16>
    %cst_82 = arith.constant dense<0.000000e+00> : vector<2x16xf32>
    %258 = tpu.matmul %257, %256, %cst_82 {dimension_numbers = #tpu.dot_dimension_numbers<[1], [1], [0], [0], [0, 0, 1, 0], [], []>} : vector<2x512xbf16>, vector<16x512xbf16>, vector<2x16xf32> -> vector<2x16xf32>
    %c0_83 = arith.constant 0 : index
    %c0_84 = arith.constant 0 : index
    %259 = vector.load %arg9[%c0_83, %c0_84] : memref<512x2xbf16, #tpu.memory_space<vmem>>, vector<512x2xbf16>
    %cst_85 = arith.constant dense<0.000000e+00> : vector<16x2xf32>
    %260 = tpu.matmul %256, %259, %cst_85 {dimension_numbers = #tpu.dot_dimension_numbers<[1], [0], [0], [1], [0, 0, 1, 1], [], []>} : vector<16x512xbf16>, vector<512x2xbf16>, vector<16x2xf32> -> vector<16x2xf32>
    %cst_86 = arith.constant 0.000000e+00 : f32
    %261 = vector.broadcast %cst_86 : f32 to vector<16x256xf32>
    %262 = vector.extract_strided_slice %260 {offsets = [0, 0], sizes = [16, 1], strides = [1, 1]} : vector<16x2xf32> to vector<16x1xf32>
    %263 = vector.extract_strided_slice %258 {offsets = [0, 0], sizes = [1, 16], strides = [1, 1]} : vector<2x16xf32> to vector<1x16xf32>
    %264 = vector.broadcast %262 : vector<16x1xf32> to vector<16x16xf32>
    %265 = vector.broadcast %263 : vector<1x16xf32> to vector<16x16xf32>
    %266 = arith.addf %264, %265 : vector<16x16xf32>
    %cst_87 = arith.constant 0.000000e+00 : f32
    %267 = vector.broadcast %cst_87 : f32 to vector<16x16xf32>
    %268 = arith.cmpf ogt, %266, %267 : vector<16x16xf32>
    %cst_88 = arith.constant 2.000000e-01 : f32
    %269 = vector.broadcast %cst_88 : f32 to vector<16x16xf32>
    %270 = arith.mulf %269, %266 : vector<16x16xf32>
    %271 = arith.select %268, %266, %270 : vector<16x16xi1>, vector<16x16xf32>
    %cst_89 = arith.constant -1.000000e+30 : f32
    %272 = vector.broadcast %cst_89 : f32 to vector<16x16xf32>
    %273 = arith.select %2, %271, %272 : vector<16x16xi1>, vector<16x16xf32>
    %cst_90 = arith.constant dense<0xFF800000> : vector<16xf32>
    %274 = vector.multi_reduction <maximumf>, %273, %cst_90 [1] : vector<16x16xf32> to vector<16xf32>
    %275 = vector.shape_cast %274 : vector<16xf32> to vector<16x1xf32>
    %276 = vector.broadcast %275 : vector<16x1xf32> to vector<16x16xf32>
    %277 = arith.subf %273, %276 : vector<16x16xf32>
    %278 = math.exp %277 : vector<16x16xf32>
    %cst_91 = arith.constant dense<0.000000e+00> : vector<16xf32>
    %279 = vector.multi_reduction <add>, %278, %cst_91 [1] : vector<16x16xf32> to vector<16xf32>
    %280 = vector.shape_cast %279 : vector<16xf32> to vector<16x1xf32>
    %281 = vector.extract_strided_slice %256 {offsets = [0, 0], sizes = [16, 256], strides = [1, 1]} : vector<16x512xbf16> to vector<16x256xbf16>
    %282 = arith.truncf %278 : vector<16x16xf32> to vector<16x16xbf16>
    %cst_92 = arith.constant dense<0.000000e+00> : vector<16x256xf32>
    %283 = tpu.matmul %282, %281, %cst_92 {dimension_numbers = #tpu.dot_dimension_numbers<[1], [0], [0], [1], [0, 0, 1, 1], [], []>} : vector<16x16xbf16>, vector<16x256xbf16>, vector<16x256xf32> -> vector<16x256xf32>
    %284 = tpu.reciprocal %280 {approx = true} : vector<16x1xf32> -> vector<16x1xf32>
    %285 = vector.broadcast %284 : vector<16x1xf32> to vector<16x256xf32>
    %286 = arith.mulf %283, %285 : vector<16x256xf32>
    %287 = arith.addf %261, %286 : vector<16x256xf32>
    %288 = vector.extract_strided_slice %260 {offsets = [0, 1], sizes = [16, 1], strides = [1, 1]} : vector<16x2xf32> to vector<16x1xf32>
    %289 = vector.extract_strided_slice %258 {offsets = [1, 0], sizes = [1, 16], strides = [1, 1]} : vector<2x16xf32> to vector<1x16xf32>
    %290 = vector.broadcast %288 : vector<16x1xf32> to vector<16x16xf32>
    %291 = vector.broadcast %289 : vector<1x16xf32> to vector<16x16xf32>
    %292 = arith.addf %290, %291 : vector<16x16xf32>
    %cst_93 = arith.constant 0.000000e+00 : f32
    %293 = vector.broadcast %cst_93 : f32 to vector<16x16xf32>
    %294 = arith.cmpf ogt, %292, %293 : vector<16x16xf32>
    %cst_94 = arith.constant 2.000000e-01 : f32
    %295 = vector.broadcast %cst_94 : f32 to vector<16x16xf32>
    %296 = arith.mulf %295, %292 : vector<16x16xf32>
    %297 = arith.select %294, %292, %296 : vector<16x16xi1>, vector<16x16xf32>
    %cst_95 = arith.constant -1.000000e+30 : f32
    %298 = vector.broadcast %cst_95 : f32 to vector<16x16xf32>
    %299 = arith.select %2, %297, %298 : vector<16x16xi1>, vector<16x16xf32>
    %cst_96 = arith.constant dense<0xFF800000> : vector<16xf32>
    %300 = vector.multi_reduction <maximumf>, %299, %cst_96 [1] : vector<16x16xf32> to vector<16xf32>
    %301 = vector.shape_cast %300 : vector<16xf32> to vector<16x1xf32>
    %302 = vector.broadcast %301 : vector<16x1xf32> to vector<16x16xf32>
    %303 = arith.subf %299, %302 : vector<16x16xf32>
    %304 = math.exp %303 : vector<16x16xf32>
    %cst_97 = arith.constant dense<0.000000e+00> : vector<16xf32>
    %305 = vector.multi_reduction <add>, %304, %cst_97 [1] : vector<16x16xf32> to vector<16xf32>
    %306 = vector.shape_cast %305 : vector<16xf32> to vector<16x1xf32>
    %307 = vector.extract_strided_slice %256 {offsets = [0, 256], sizes = [16, 256], strides = [1, 1]} : vector<16x512xbf16> to vector<16x256xbf16>
    %308 = arith.truncf %304 : vector<16x16xf32> to vector<16x16xbf16>
    %cst_98 = arith.constant dense<0.000000e+00> : vector<16x256xf32>
    %309 = tpu.matmul %308, %307, %cst_98 {dimension_numbers = #tpu.dot_dimension_numbers<[1], [0], [0], [1], [0, 0, 1, 1], [], []>} : vector<16x16xbf16>, vector<16x256xbf16>, vector<16x256xf32> -> vector<16x256xf32>
    %310 = tpu.reciprocal %306 {approx = true} : vector<16x1xf32> -> vector<16x1xf32>
    %311 = vector.broadcast %310 : vector<16x1xf32> to vector<16x256xf32>
    %312 = arith.mulf %309, %311 : vector<16x256xf32>
    %313 = arith.addf %287, %312 : vector<16x256xf32>
    %cst_99 = arith.constant 5.000000e-01 : f32
    %314 = vector.broadcast %cst_99 : f32 to vector<16x256xf32>
    %315 = arith.mulf %313, %314 : vector<16x256xf32>
    %c0_100 = arith.constant 0 : index
    %c0_101 = arith.constant 0 : index
    %316 = vector.load %arg10[%c0_100, %c0_101] : memref<1x256xf32, #tpu.memory_space<vmem>>, vector<1x256xf32>
    %317 = vector.broadcast %316 : vector<1x256xf32> to vector<16x256xf32>
    %318 = arith.addf %315, %317 : vector<16x256xf32>
    %319 = arith.truncf %318 : vector<16x256xf32> to vector<16x256xbf16>
    %c0_102 = arith.constant 0 : index
    %c0_103 = arith.constant 0 : index
    %320 = vector.load %arg11[%c0_102, %c0_103] : memref<256x256xbf16, #tpu.memory_space<vmem>>, vector<256x256xbf16>
    %cst_104 = arith.constant dense<0.000000e+00> : vector<16x256xf32>
    %321 = tpu.matmul %319, %320, %cst_104 {dimension_numbers = #tpu.dot_dimension_numbers<[1], [0], [0], [1], [0, 0, 1, 1], [], []>} : vector<16x256xbf16>, vector<256x256xbf16>, vector<16x256xf32> -> vector<16x256xf32>
    %322 = arith.truncf %321 : vector<16x256xf32> to vector<16x256xbf16>
    %c0_105 = arith.constant 0 : index
    %c0_106 = arith.constant 0 : index
    %323 = vector.load %arg12[%c0_105, %c0_106] : memref<2x256xbf16, #tpu.memory_space<vmem>>, vector<2x256xbf16>
    %cst_107 = arith.constant dense<0.000000e+00> : vector<2x16xf32>
    %324 = tpu.matmul %323, %322, %cst_107 {dimension_numbers = #tpu.dot_dimension_numbers<[1], [1], [0], [0], [0, 0, 1, 0], [], []>} : vector<2x256xbf16>, vector<16x256xbf16>, vector<2x16xf32> -> vector<2x16xf32>
    %c0_108 = arith.constant 0 : index
    %c0_109 = arith.constant 0 : index
    %325 = vector.load %arg13[%c0_108, %c0_109] : memref<256x2xbf16, #tpu.memory_space<vmem>>, vector<256x2xbf16>
    %cst_110 = arith.constant dense<0.000000e+00> : vector<16x2xf32>
    %326 = tpu.matmul %322, %325, %cst_110 {dimension_numbers = #tpu.dot_dimension_numbers<[1], [0], [0], [1], [0, 0, 1, 1], [], []>} : vector<16x256xbf16>, vector<256x2xbf16>, vector<16x2xf32> -> vector<16x2xf32>
    %cst_111 = arith.constant 0.000000e+00 : f32
    %327 = vector.broadcast %cst_111 : f32 to vector<16x128xf32>
    %328 = vector.extract_strided_slice %326 {offsets = [0, 0], sizes = [16, 1], strides = [1, 1]} : vector<16x2xf32> to vector<16x1xf32>
    %329 = vector.extract_strided_slice %324 {offsets = [0, 0], sizes = [1, 16], strides = [1, 1]} : vector<2x16xf32> to vector<1x16xf32>
    %330 = vector.broadcast %328 : vector<16x1xf32> to vector<16x16xf32>
    %331 = vector.broadcast %329 : vector<1x16xf32> to vector<16x16xf32>
    %332 = arith.addf %330, %331 : vector<16x16xf32>
    %cst_112 = arith.constant 0.000000e+00 : f32
    %333 = vector.broadcast %cst_112 : f32 to vector<16x16xf32>
    %334 = arith.cmpf ogt, %332, %333 : vector<16x16xf32>
    %cst_113 = arith.constant 2.000000e-01 : f32
    %335 = vector.broadcast %cst_113 : f32 to vector<16x16xf32>
    %336 = arith.mulf %335, %332 : vector<16x16xf32>
    %337 = arith.select %334, %332, %336 : vector<16x16xi1>, vector<16x16xf32>
    %cst_114 = arith.constant -1.000000e+30 : f32
    %338 = vector.broadcast %cst_114 : f32 to vector<16x16xf32>
    %339 = arith.select %2, %337, %338 : vector<16x16xi1>, vector<16x16xf32>
    %cst_115 = arith.constant dense<0xFF800000> : vector<16xf32>
    %340 = vector.multi_reduction <maximumf>, %339, %cst_115 [1] : vector<16x16xf32> to vector<16xf32>
    %341 = vector.shape_cast %340 : vector<16xf32> to vector<16x1xf32>
    %342 = vector.broadcast %341 : vector<16x1xf32> to vector<16x16xf32>
    %343 = arith.subf %339, %342 : vector<16x16xf32>
    %344 = math.exp %343 : vector<16x16xf32>
    %cst_116 = arith.constant dense<0.000000e+00> : vector<16xf32>
    %345 = vector.multi_reduction <add>, %344, %cst_116 [1] : vector<16x16xf32> to vector<16xf32>
    %346 = vector.shape_cast %345 : vector<16xf32> to vector<16x1xf32>
    %347 = vector.extract_strided_slice %322 {offsets = [0, 0], sizes = [16, 128], strides = [1, 1]} : vector<16x256xbf16> to vector<16x128xbf16>
    %348 = arith.truncf %344 : vector<16x16xf32> to vector<16x16xbf16>
    %cst_117 = arith.constant dense<0.000000e+00> : vector<16x128xf32>
    %349 = tpu.matmul %348, %347, %cst_117 {dimension_numbers = #tpu.dot_dimension_numbers<[1], [0], [0], [1], [0, 0, 1, 1], [], []>} : vector<16x16xbf16>, vector<16x128xbf16>, vector<16x128xf32> -> vector<16x128xf32>
    %350 = tpu.reciprocal %346 {approx = true} : vector<16x1xf32> -> vector<16x1xf32>
    %351 = vector.broadcast %350 : vector<16x1xf32> to vector<16x128xf32>
    %352 = arith.mulf %349, %351 : vector<16x128xf32>
    %353 = arith.addf %327, %352 : vector<16x128xf32>
    %354 = vector.extract_strided_slice %326 {offsets = [0, 1], sizes = [16, 1], strides = [1, 1]} : vector<16x2xf32> to vector<16x1xf32>
    %355 = vector.extract_strided_slice %324 {offsets = [1, 0], sizes = [1, 16], strides = [1, 1]} : vector<2x16xf32> to vector<1x16xf32>
    %356 = vector.broadcast %354 : vector<16x1xf32> to vector<16x16xf32>
    %357 = vector.broadcast %355 : vector<1x16xf32> to vector<16x16xf32>
    %358 = arith.addf %356, %357 : vector<16x16xf32>
    %cst_118 = arith.constant 0.000000e+00 : f32
    %359 = vector.broadcast %cst_118 : f32 to vector<16x16xf32>
    %360 = arith.cmpf ogt, %358, %359 : vector<16x16xf32>
    %cst_119 = arith.constant 2.000000e-01 : f32
    %361 = vector.broadcast %cst_119 : f32 to vector<16x16xf32>
    %362 = arith.mulf %361, %358 : vector<16x16xf32>
    %363 = arith.select %360, %358, %362 : vector<16x16xi1>, vector<16x16xf32>
    %cst_120 = arith.constant -1.000000e+30 : f32
    %364 = vector.broadcast %cst_120 : f32 to vector<16x16xf32>
    %365 = arith.select %2, %363, %364 : vector<16x16xi1>, vector<16x16xf32>
    %cst_121 = arith.constant dense<0xFF800000> : vector<16xf32>
    %366 = vector.multi_reduction <maximumf>, %365, %cst_121 [1] : vector<16x16xf32> to vector<16xf32>
    %367 = vector.shape_cast %366 : vector<16xf32> to vector<16x1xf32>
    %368 = vector.broadcast %367 : vector<16x1xf32> to vector<16x16xf32>
    %369 = arith.subf %365, %368 : vector<16x16xf32>
    %370 = math.exp %369 : vector<16x16xf32>
    %cst_122 = arith.constant dense<0.000000e+00> : vector<16xf32>
    %371 = vector.multi_reduction <add>, %370, %cst_122 [1] : vector<16x16xf32> to vector<16xf32>
    %372 = vector.shape_cast %371 : vector<16xf32> to vector<16x1xf32>
    %373 = vector.extract_strided_slice %322 {offsets = [0, 128], sizes = [16, 128], strides = [1, 1]} : vector<16x256xbf16> to vector<16x128xbf16>
    %374 = arith.truncf %370 : vector<16x16xf32> to vector<16x16xbf16>
    %cst_123 = arith.constant dense<0.000000e+00> : vector<16x128xf32>
    %375 = tpu.matmul %374, %373, %cst_123 {dimension_numbers = #tpu.dot_dimension_numbers<[1], [0], [0], [1], [0, 0, 1, 1], [], []>} : vector<16x16xbf16>, vector<16x128xbf16>, vector<16x128xf32> -> vector<16x128xf32>
    %376 = tpu.reciprocal %372 {approx = true} : vector<16x1xf32> -> vector<16x1xf32>
    %377 = vector.broadcast %376 : vector<16x1xf32> to vector<16x128xf32>
    %378 = arith.mulf %375, %377 : vector<16x128xf32>
    %379 = arith.addf %353, %378 : vector<16x128xf32>
    %cst_124 = arith.constant 5.000000e-01 : f32
    %380 = vector.broadcast %cst_124 : f32 to vector<16x128xf32>
    %381 = arith.mulf %379, %380 : vector<16x128xf32>
    %c0_125 = arith.constant 0 : index
    %c0_126 = arith.constant 0 : index
    %382 = vector.load %arg14[%c0_125, %c0_126] : memref<1x128xf32, #tpu.memory_space<vmem>>, vector<1x128xf32>
    %383 = vector.broadcast %382 : vector<1x128xf32> to vector<16x128xf32>
    %384 = arith.addf %381, %383 : vector<16x128xf32>
    %c0_127 = arith.constant 0 : index
    %c0_128 = arith.constant 0 : index
    %385 = vector.load %arg15[%c0_127, %c0_128] : memref<2x16xf32, #tpu.memory_space<vmem>>, vector<2x16xf32>
    %c0_129 = arith.constant 0 : index
    %c0_130 = arith.constant 0 : index
    %386 = vector.load %arg16[%c0_129, %c0_130] : memref<2x1xf32, #tpu.memory_space<vmem>>, vector<2x1xf32>
    %387 = arith.truncf %384 : vector<16x128xf32> to vector<16x128xbf16>
    %388 = arith.truncf %385 : vector<2x16xf32> to vector<2x16xbf16>
    %cst_131 = arith.constant dense<0.000000e+00> : vector<2x128xf32>
    %389 = tpu.matmul %388, %387, %cst_131 {dimension_numbers = #tpu.dot_dimension_numbers<[1], [0], [0], [1], [0, 0, 1, 1], [], []>} : vector<2x16xbf16>, vector<16x128xbf16>, vector<2x128xf32> -> vector<2x128xf32>
    %390 = vector.broadcast %386 : vector<2x1xf32> to vector<2x128xf32>
    %391 = arith.divf %389, %390 : vector<2x128xf32>
    %392 = vector.shape_cast %385 : vector<2x16xf32> to vector<2x16x1xf32>
    %cst_132 = arith.constant 0.000000e+00 : f32
    %393 = vector.broadcast %cst_132 : f32 to vector<2x16x1xf32>
    %394 = arith.cmpf ogt, %392, %393 : vector<2x16x1xf32>
    %395 = vector.shape_cast %384 : vector<16x128xf32> to vector<1x16x128xf32>
    %cst_133 = arith.constant -1.000000e+30 : f32
    %396 = vector.shape_cast %394 : vector<2x16x1xi1> to vector<2x16x1xi1>
    %397 = vector.broadcast %396 : vector<2x16x1xi1> to vector<2x16x128xi1>
    %398 = vector.shape_cast %395 : vector<1x16x128xf32> to vector<1x16x128xf32>
    %399 = vector.broadcast %398 : vector<1x16x128xf32> to vector<2x16x128xf32>
    %400 = vector.broadcast %cst_133 : f32 to vector<2x16x128xf32>
    %401 = arith.select %397, %399, %400 : vector<2x16x128xi1>, vector<2x16x128xf32>
    %cst_134 = arith.constant dense<0xFF800000> : vector<2x128xf32>
    %402 = vector.multi_reduction <maximumf>, %401, %cst_134 [1] : vector<2x16x128xf32> to vector<2x128xf32>
    %c0_135 = arith.constant 0 : index
    %c0_136 = arith.constant 0 : index
    %403 = vector.load %arg17[%c0_135, %c0_136] : memref<256x8xbf16, #tpu.memory_space<vmem>>, vector<256x8xbf16>
    %404 = arith.truncf %391 : vector<2x128xf32> to vector<2x128xbf16>
    %405 = vector.extract_strided_slice %403 {offsets = [0, 0], sizes = [128, 8], strides = [1, 1]} : vector<256x8xbf16> to vector<128x8xbf16>
    %cst_137 = arith.constant dense<0.000000e+00> : vector<2x8xf32>
    %406 = tpu.matmul %404, %405, %cst_137 {dimension_numbers = #tpu.dot_dimension_numbers<[1], [0], [0], [1], [0, 0, 1, 1], [], []>} : vector<2x128xbf16>, vector<128x8xbf16>, vector<2x8xf32> -> vector<2x8xf32>
    %407 = arith.truncf %402 : vector<2x128xf32> to vector<2x128xbf16>
    %408 = vector.extract_strided_slice %403 {offsets = [128, 0], sizes = [128, 8], strides = [1, 1]} : vector<256x8xbf16> to vector<128x8xbf16>
    %cst_138 = arith.constant dense<0.000000e+00> : vector<2x8xf32>
    %409 = tpu.matmul %407, %408, %cst_138 {dimension_numbers = #tpu.dot_dimension_numbers<[1], [0], [0], [1], [0, 0, 1, 1], [], []>} : vector<2x128xbf16>, vector<128x8xbf16>, vector<2x8xf32> -> vector<2x8xf32>
    %410 = arith.addf %406, %409 : vector<2x8xf32>
    %c0_139 = arith.constant 0 : index
    %c0_140 = arith.constant 0 : index
    %411 = vector.load %arg18[%c0_139, %c0_140] : memref<1x8xf32, #tpu.memory_space<vmem>>, vector<1x8xf32>
    %412 = vector.broadcast %411 : vector<1x8xf32> to vector<2x8xf32>
    %413 = arith.addf %410, %412 : vector<2x8xf32>
    %cst_141 = arith.constant 0.000000e+00 : f32
    %414 = vector.broadcast %cst_141 : f32 to vector<2x8xf32>
    %415 = arith.maximumf %413, %414 : vector<2x8xf32>
    %416 = arith.truncf %415 : vector<2x8xf32> to vector<2x8xbf16>
    %c0_142 = arith.constant 0 : index
    %c0_143 = arith.constant 0 : index
    %417 = vector.load %arg19[%c0_142, %c0_143] : memref<8x1xbf16, #tpu.memory_space<vmem>>, vector<8x1xbf16>
    %cst_144 = arith.constant dense<0.000000e+00> : vector<2x1xf32>
    %418 = tpu.matmul %416, %417, %cst_144 {dimension_numbers = #tpu.dot_dimension_numbers<[1], [0], [0], [1], [0, 0, 1, 1], [], []>} : vector<2x8xbf16>, vector<8x1xbf16>, vector<2x1xf32> -> vector<2x1xf32>
    %c0_145 = arith.constant 0 : index
    %c0_146 = arith.constant 0 : index
    %419 = vector.load %arg20[%c0_145, %c0_146] : memref<1x1xf32, #tpu.memory_space<vmem>>, vector<1x1xf32>
    %420 = vector.broadcast %419 : vector<1x1xf32> to vector<2x1xf32>
    %421 = arith.addf %418, %420 : vector<2x1xf32>
    %c0_147 = arith.constant 0 : index
    %c0_148 = arith.constant 0 : index
    %c0_149 = arith.constant 0 : index
    %422 = vector.load %arg21[%c0_147, %c0_148, %c0_149] : memref<2x8x768xf32, #tpu.memory_space<vmem>>, vector<2x8x768xf32>
    %cst_150 = arith.constant dense<0.000000e+00> : vector<2x768xf32>
    %423 = vector.multi_reduction <add>, %422, %cst_150 [1] : vector<2x8x768xf32> to vector<2x768xf32>
    %cst_151 = arith.constant 8.000000e+00 : f32
    %424 = vector.broadcast %cst_151 : f32 to vector<2x768xf32>
    %425 = arith.divf %423, %424 : vector<2x768xf32>
    %426 = arith.truncf %425 : vector<2x768xf32> to vector<2x768xbf16>
    %c0_152 = arith.constant 0 : index
    %c0_153 = arith.constant 0 : index
    %427 = vector.load %arg22[%c0_152, %c0_153] : memref<768x8xbf16, #tpu.memory_space<vmem>>, vector<768x8xbf16>
    %cst_154 = arith.constant dense<0.000000e+00> : vector<2x8xf32>
    %428 = tpu.matmul %426, %427, %cst_154 {dimension_numbers = #tpu.dot_dimension_numbers<[1], [0], [0], [1], [0, 0, 1, 1], [], []>} : vector<2x768xbf16>, vector<768x8xbf16>, vector<2x8xf32> -> vector<2x8xf32>
    %c0_155 = arith.constant 0 : index
    %c0_156 = arith.constant 0 : index
    %429 = vector.load %arg23[%c0_155, %c0_156] : memref<1x8xf32, #tpu.memory_space<vmem>>, vector<1x8xf32>
    %430 = vector.broadcast %429 : vector<1x8xf32> to vector<2x8xf32>
    %431 = arith.addf %428, %430 : vector<2x8xf32>
    %cst_157 = arith.constant 0.000000e+00 : f32
    %432 = vector.broadcast %cst_157 : f32 to vector<2x8xf32>
    %433 = arith.maximumf %431, %432 : vector<2x8xf32>
    %434 = arith.truncf %433 : vector<2x8xf32> to vector<2x8xbf16>
    %c0_158 = arith.constant 0 : index
    %c0_159 = arith.constant 0 : index
    %435 = vector.load %arg24[%c0_158, %c0_159] : memref<8x1xbf16, #tpu.memory_space<vmem>>, vector<8x1xbf16>
    %cst_160 = arith.constant dense<0.000000e+00> : vector<2x1xf32>
    %436 = tpu.matmul %434, %435, %cst_160 {dimension_numbers = #tpu.dot_dimension_numbers<[1], [0], [0], [1], [0, 0, 1, 1], [], []>} : vector<2x8xbf16>, vector<8x1xbf16>, vector<2x1xf32> -> vector<2x1xf32>
    %c0_161 = arith.constant 0 : index
    %c0_162 = arith.constant 0 : index
    %437 = vector.load %arg25[%c0_161, %c0_162] : memref<1x1xf32, #tpu.memory_space<vmem>>, vector<1x1xf32>
    %438 = vector.broadcast %437 : vector<1x1xf32> to vector<2x1xf32>
    %439 = arith.addf %436, %438 : vector<2x1xf32>
    %440 = arith.addf %439, %421 : vector<2x1xf32>
    %cst_163 = arith.constant 0.000000e+00 : f32
    %441 = vector.broadcast %cst_163 : f32 to vector<2x1xf32>
    %442 = arith.subf %441, %440 : vector<2x1xf32>
    %443 = math.exp %442 : vector<2x1xf32>
    %cst_164 = arith.constant 1.000000e+00 : f32
    %444 = vector.broadcast %cst_164 : f32 to vector<2x1xf32>
    %445 = arith.addf %444, %443 : vector<2x1xf32>
    %cst_165 = arith.constant 1.000000e+00 : f32
    %446 = vector.broadcast %cst_165 : f32 to vector<2x1xf32>
    %447 = arith.divf %446, %445 : vector<2x1xf32>
    %c0_166 = arith.constant 0 : index
    %c0_167 = arith.constant 0 : index
    %448 = vector.load %arg26[%c0_166, %c0_167] : memref<2x1xf32, #tpu.memory_space<vmem>>, vector<2x1xf32>
    tpu.vector_store %arg26[%c0_166, %c0_167], %447 {strides = array<i32>} : memref<2x1xf32, #tpu.memory_space<vmem>>, vector<2x1xf32>,
    %cst_168 = arith.constant 0.000000e+00 : f32
    %449 = vector.broadcast %cst_168 : f32 to vector<2x1xf32>
    %450 = arith.subf %449, %421 : vector<2x1xf32>
    %451 = math.exp %450 : vector<2x1xf32>
    %cst_169 = arith.constant 1.000000e+00 : f32
    %452 = vector.broadcast %cst_169 : f32 to vector<2x1xf32>
    %453 = arith.addf %452, %451 : vector<2x1xf32>
    %cst_170 = arith.constant 1.000000e+00 : f32
    %454 = vector.broadcast %cst_170 : f32 to vector<2x1xf32>
    %455 = arith.divf %454, %453 : vector<2x1xf32>
    %c0_171 = arith.constant 0 : index
    %c0_172 = arith.constant 0 : index
    %456 = vector.load %arg27[%c0_171, %c0_172] : memref<2x1xf32, #tpu.memory_space<vmem>>, vector<2x1xf32>
    tpu.vector_store %arg27[%c0_171, %c0_172], %455 {strides = array<i32>} : memref<2x1xf32, #tpu.memory_space<vmem>>, vector<2x1xf32>,
    %cst_173 = arith.constant 0.000000e+00 : f32
    %457 = vector.broadcast %cst_173 : f32 to vector<2x1xf32>
    %458 = arith.subf %457, %439 : vector<2x1xf32>
    %459 = math.exp %458 : vector<2x1xf32>
    %cst_174 = arith.constant 1.000000e+00 : f32
    %460 = vector.broadcast %cst_174 : f32 to vector<2x1xf32>
    %461 = arith.addf %460, %459 : vector<2x1xf32>
    %cst_175 = arith.constant 1.000000e+00 : f32
    %462 = vector.broadcast %cst_175 : f32 to vector<2x1xf32>
    %463 = arith.divf %462, %461 : vector<2x1xf32>
    %c0_176 = arith.constant 0 : index
    %c0_177 = arith.constant 0 : index
    %464 = vector.load %arg28[%c0_176, %c0_177] : memref<2x1xf32, #tpu.memory_space<vmem>>, vector<2x1xf32>
    tpu.vector_store %arg28[%c0_176, %c0_177], %463 {strides = array<i32>} : memref<2x1xf32, #tpu.memory_space<vmem>>, vector<2x1xf32>,
    return
  }
  func.func @transform_0(%arg0: i32) -> (i32, i32) {
    %c0_i32 = arith.constant 0 : i32
    %c0_i32_0 = arith.constant 0 : i32
    %c0_i32_1 = arith.constant 0 : i32
    return %c0_i32, %c0_i32_0 : i32, i32
  }
  func.func @transform_1(%arg0: i32) -> (i32, i32) {
    %c0_i32 = arith.constant 0 : i32
    %c0_i32_0 = arith.constant 0 : i32
    %c0_i32_1 = arith.constant 0 : i32
    return %c0_i32, %c0_i32_0 : i32, i32
  }
  func.func @transform_2(%arg0: i32) -> (i32, i32) {
    %c0_i32 = arith.constant 0 : i32
    %c0_i32_0 = arith.constant 0 : i32
    %c0_i32_1 = arith.constant 0 : i32
    return %c0_i32, %c0_i32_0 : i32, i32
  }
  func.func @transform_3(%arg0: i32) -> (i32, i32) {
    %c0_i32 = arith.constant 0 : i32
    %c0_i32_0 = arith.constant 0 : i32
    %c0_i32_1 = arith.constant 0 : i32
    return %c0_i32, %c0_i32_0 : i32, i32
  }
  func.func @transform_4(%arg0: i32) -> (i32, i32) {
    %c0_i32 = arith.constant 0 : i32
    %c0_i32_0 = arith.constant 0 : i32
    %c0_i32_1 = arith.constant 0 : i32
    return %c0_i32, %c0_i32_0 : i32, i32
  }
  func.func @transform_5(%arg0: i32) -> (i32, i32) {
    %c0_i32 = arith.constant 0 : i32
    %c0_i32_0 = arith.constant 0 : i32
    %c0_i32_1 = arith.constant 0 : i32
    return %c0_i32, %c0_i32_0 : i32, i32
  }
  func.func @transform_6(%arg0: i32) -> (i32, i32) {
    %c0_i32 = arith.constant 0 : i32
    %c0_i32_0 = arith.constant 0 : i32
    %c0_i32_1 = arith.constant 0 : i32
    return %c0_i32, %c0_i32_0 : i32, i32
  }
  func.func @transform_7(%arg0: i32) -> (i32, i32) {
    %c0_i32 = arith.constant 0 : i32
    %c0_i32_0 = arith.constant 0 : i32
    %c0_i32_1 = arith.constant 0 : i32
    return %c0_i32, %c0_i32_0 : i32, i32
  }
  func.func @transform_8(%arg0: i32) -> (i32, i32) {
    %c0_i32 = arith.constant 0 : i32
    %c0_i32_0 = arith.constant 0 : i32
    %c0_i32_1 = arith.constant 0 : i32
    return %c0_i32, %c0_i32_0 : i32, i32
  }
  func.func @transform_9(%arg0: i32) -> (i32, i32) {
    %c0_i32 = arith.constant 0 : i32
    %c0_i32_0 = arith.constant 0 : i32
    %c0_i32_1 = arith.constant 0 : i32
    return %c0_i32, %c0_i32_0 : i32, i32
  }
  func.func @transform_10(%arg0: i32) -> (i32, i32) {
    %c0_i32 = arith.constant 0 : i32
    %c0_i32_0 = arith.constant 0 : i32
    %c0_i32_1 = arith.constant 0 : i32
    return %c0_i32, %c0_i32_0 : i32, i32
  }
  func.func @transform_11(%arg0: i32) -> (i32, i32) {
    %c0_i32 = arith.constant 0 : i32
    %c0_i32_0 = arith.constant 0 : i32
    %c0_i32_1 = arith.constant 0 : i32
    return %c0_i32, %c0_i32_0 : i32, i32
  }
  func.func @transform_12(%arg0: i32) -> (i32, i32) {
    %c0_i32 = arith.constant 0 : i32
    %c0_i32_0 = arith.constant 0 : i32
    %c0_i32_1 = arith.constant 0 : i32
    return %c0_i32, %c0_i32_0 : i32, i32
  }
  func.func @transform_13(%arg0: i32) -> (i32, i32) {
    %c0_i32 = arith.constant 0 : i32
    %c0_i32_0 = arith.constant 0 : i32
    %c0_i32_1 = arith.constant 0 : i32
    return %c0_i32, %c0_i32_0 : i32, i32
  }
  func.func @transform_14(%arg0: i32) -> (i32, i32) {
    %c0_i32 = arith.constant 0 : i32
    %c0_i32_0 = arith.constant 0 : i32
    %c0_i32_1 = arith.constant 0 : i32
    return %c0_i32, %c0_i32_0 : i32, i32
  }
  func.func @transform_15(%arg0: i32) -> (i32, i32) {
    %c0_i32 = arith.constant 0 : i32
    %c0_i32_0 = arith.constant 0 : i32
    %c0_i32_1 = arith.constant 0 : i32
    return %c0_i32, %c0_i32_0 : i32, i32
  }
  func.func @transform_16(%arg0: i32) -> (i32, i32) {
    %c0_i32 = arith.constant 0 : i32
    %c0_i32_0 = arith.constant 0 : i32
    %c0_i32_1 = arith.constant 0 : i32
    return %c0_i32, %c0_i32_0 : i32, i32
  }
  func.func @transform_17(%arg0: i32) -> (i32, i32) {
    %c0_i32 = arith.constant 0 : i32
    %c0_i32_0 = arith.constant 0 : i32
    %c0_i32_1 = arith.constant 0 : i32
    return %c0_i32, %c0_i32_0 : i32, i32
  }
  func.func @transform_18(%arg0: i32) -> (i32, i32) {
    %c0_i32 = arith.constant 0 : i32
    %c0_i32_0 = arith.constant 0 : i32
    %c0_i32_1 = arith.constant 0 : i32
    return %c0_i32, %c0_i32_0 : i32, i32
  }
  func.func @transform_19(%arg0: i32) -> (i32, i32) {
    %c0_i32 = arith.constant 0 : i32
    %c0_i32_0 = arith.constant 0 : i32
    %c0_i32_1 = arith.constant 0 : i32
    return %c0_i32, %c0_i32_0 : i32, i32
  }
  func.func @transform_20(%arg0: i32) -> (i32, i32, i32) {
    %c0_i32 = arith.constant 0 : i32
    %c0_i32_0 = arith.constant 0 : i32
    %c0_i32_1 = arith.constant 0 : i32
    %c0_i32_2 = arith.constant 0 : i32
    return %c0_i32, %c0_i32_0, %c0_i32_1 : i32, i32, i32
  }
  func.func @transform_21(%arg0: i32) -> (i32, i32) {
    %c0_i32 = arith.constant 0 : i32
    %c0_i32_0 = arith.constant 0 : i32
    %c0_i32_1 = arith.constant 0 : i32
    return %c0_i32, %c0_i32_0 : i32, i32
  }
  func.func @transform_22(%arg0: i32) -> (i32, i32) {
    %c0_i32 = arith.constant 0 : i32
    %c0_i32_0 = arith.constant 0 : i32
    %c0_i32_1 = arith.constant 0 : i32
    return %c0_i32, %c0_i32_0 : i32, i32
  }
  func.func @transform_23(%arg0: i32) -> (i32, i32) {
    %c0_i32 = arith.constant 0 : i32
    %c0_i32_0 = arith.constant 0 : i32
    %c0_i32_1 = arith.constant 0 : i32
    return %c0_i32, %c0_i32_0 : i32, i32
  }
  func.func @transform_24(%arg0: i32) -> (i32, i32) {
    %c0_i32 = arith.constant 0 : i32
    %c0_i32_0 = arith.constant 0 : i32
    %c0_i32_1 = arith.constant 0 : i32
    return %c0_i32, %c0_i32_0 : i32, i32
  }
  func.func @transform_25(%arg0: i32) -> (i32, i32) {
    %c0_i32 = arith.constant 0 : i32
    %c0_i32_0 = arith.constant 0 : i32
    %c0_i32_1 = arith.constant 0 : i32
    return %c0_i32, %c0_i32_0 : i32, i32
  }
  func.func @transform_26(%arg0: i32) -> (i32, i32) {
    %c0_i32 = arith.constant 0 : i32
    %c0_i32_0 = arith.constant 0 : i32
    %c0_i32_1 = arith.constant 0 : i32
    return %c0_i32, %c0_i32_0 : i32, i32
  }
  func.func @transform_27(%arg0: i32) -> (i32, i32) {
    %c0_i32 = arith.constant 0 : i32
    %c0_i32_0 = arith.constant 0 : i32
    %c0_i32_1 = arith.constant 0 : i32
    return %c0_i32, %c0_i32_0 : i32, i32
  }
}

</mosaic_0001>

<llo_original>
// kernel: gat_forward.1
$region0: #{gat_forward.1}
  #allocation0 [shape = 'u32[]', space=smem, size = 0x4, offset = 0x4, fixed_abs, tag = 'smem constant byte address 0x4 - core index']
  #allocation1 [shape = 'u32[144,128]{1,0:T(1,128)}', space=vmem, size = 0x12000, scoped, tag = 'internal scratch']
  #allocation2 [shape = 'f32[1,1]{1,0:T(1,128)S(1)}', space=vmem, size = 0x200, scoped, tag = 'scoped memory for gat_forward.1']
  #allocation3 [shape = 'f32[1,1]{1,0:T(1,128)S(1)}', space=vmem, size = 0x200, scoped, tag = 'scoped memory for gat_forward.1']
  %s0 = inlined_call_operand.vmem [shape: f32[16,64], index: 0, kind: input, shape index: {}]
  %s1 = inlined_call_operand.vmem [shape: f32[16,16], index: 1, kind: input, shape index: {}]
  %s2 = inlined_call_operand.vmem [shape: bf16[64,1024], index: 2, kind: input, shape index: {}]
  %s3 = inlined_call_operand.vmem [shape: bf16[8,1024], index: 3, kind: input, shape index: {}]
  %s4 = inlined_call_operand.vmem [shape: bf16[1024,8], index: 4, kind: input, shape index: {}]
  %s5 = inlined_call_operand.vmem [shape: f32[1,512], index: 5, kind: input, shape index: {}]
  %s6 = inlined_call_operand.vmem [shape: bf16[512,512], index: 6, kind: input, shape index: {}]
  %s7 = inlined_call_operand.vmem [shape: bf16[2,512], index: 7, kind: input, shape index: {}]
  %s8 = inlined_call_operand.vmem [shape: bf16[512,2], index: 8, kind: input, shape index: {}]
  %s9 = inlined_call_operand.vmem [shape: f32[1,256], index: 9, kind: input, shape index: {}]
  %s10 = inlined_call_operand.vmem [shape: bf16[256,256], index: 10, kind: input, shape index: {}]
  %s11 = inlined_call_operand.vmem [shape: bf16[2,256], index: 11, kind: input, shape index: {}]
  %s12 = inlined_call_operand.vmem [shape: bf16[256,2], index: 12, kind: input, shape index: {}]
  %s13 = inlined_call_operand.vmem [shape: f32[1,128], index: 13, kind: input, shape index: {}]
  %s14 = inlined_call_operand.vmem [shape: f32[2,16], index: 14, kind: input, shape index: {}]
  %s15 = inlined_call_operand.vmem [shape: f32[2,1], index: 15, kind: input, shape index: {}]
  %s16 = inlined_call_operand.vmem [shape: bf16[256,8], index: 16, kind: input, shape index: {}]
  %s17 = inlined_call_operand.vmem [shape: f32[1,8], index: 17, kind: input, shape index: {}]
  %s18 = inlined_call_operand.vmem [shape: bf16[8,1], index: 18, kind: input, shape index: {}]
  %s19 = inlined_call_operand.<no memory space> [shape: f32[1,1], index: 19, kind: input, shape index: {}]
  %s20 = inlined_call_operand.vmem [shape: f32[2,8,768], index: 20, kind: input, shape index: {}]
  %s21 = inlined_call_operand.vmem [shape: bf16[768,8], index: 21, kind: input, shape index: {}]
  %s22 = inlined_call_operand.vmem [shape: f32[1,8], index: 22, kind: input, shape index: {}]
  %s23 = inlined_call_operand.vmem [shape: bf16[8,1], index: 23, kind: input, shape index: {}]
  %s24 = inlined_call_operand.<no memory space> [shape: f32[1,1], index: 24, kind: input, shape index: {}]
  %s25 = inlined_call_operand.vmem [shape: f32[2,1], index: 25, kind: output, shape index: {0}]
  %s26 = inlined_call_operand.vmem [shape: f32[2,1], index: 26, kind: output, shape index: {1}]
  %s27 = inlined_call_operand.vmem [shape: f32[2,1], index: 27, kind: output, shape index: {2}]
  %28 = xla_tuple %s25, %s26, %s27
  %s29 = sld [smem:[#allocation0]]
  $region126: #{gat_forward.1} parent=0
    _
  %s31 = ssub.s32 1, %s29
  %s32 = scalar_select 0, %s31, %s29
  %v33 = vstv %s19
  %34 = vst [vmem:[#allocation2] sm:$0x1] %v33
  %v35 = vstv %s24
  %36 = vst [vmem:[#allocation3] sm:$0x1] %v35
  // Predicated region
  $region2: #{gat_forward.1} parent=0 // pred_check
    _
  $region3: #{gat_forward.1} parent=0 // pred_check_branch
    %38 = sbr.rel (0) target = $region5
  $region4: #{gat_forward.1} parent=0 // pred_region
    _
  $region5: #{gat_forward.1} parent=0 // pred_fallthru
    _
  // Predicated region
  $region6: #{gat_forward.1} parent=0 // pred_check
    _
  $region7: #{gat_forward.1} parent=0 // pred_check_branch
    %40 = sbr.rel (0) target = $region9
  $region8: #{gat_forward.1} parent=0 // pred_region
    _
  $region9: #{gat_forward.1} parent=0 // pred_fallthru
    _
  // Predicated region
  $region10: #{gat_forward.1} parent=0 // pred_check
    _
  $region11: #{gat_forward.1} parent=0 // pred_check_branch
    %42 = sbr.rel (0) target = $region13
  $region12: #{gat_forward.1} parent=0 // pred_region
    _
  $region13: #{gat_forward.1} parent=0 // pred_fallthru
    _
  // Predicated region
  $region14: #{gat_forward.1} parent=0 // pred_check
    _
  $region15: #{gat_forward.1} parent=0 // pred_check_branch
    %44 = sbr.rel (0) target = $region17
  $region16: #{gat_forward.1} parent=0 // pred_region
    _
  $region17: #{gat_forward.1} parent=0 // pred_fallthru
    _
  // Predicated region
  $region18: #{gat_forward.1} parent=0 // pred_check
    _
  $region19: #{gat_forward.1} parent=0 // pred_check_branch
    %46 = sbr.rel (0) target = $region21
  $region20: #{gat_forward.1} parent=0 // pred_region
    _
  $region21: #{gat_forward.1} parent=0 // pred_fallthru
    _
  // Predicated region
  $region22: #{gat_forward.1} parent=0 // pred_check
    _
  $region23: #{gat_forward.1} parent=0 // pred_check_branch
    %48 = sbr.rel (0) target = $region25
  $region24: #{gat_forward.1} parent=0 // pred_region
    _
  $region25: #{gat_forward.1} parent=0 // pred_fallthru
    _
  // Predicated region
  $region26: #{gat_forward.1} parent=0 // pred_check
    _
  $region27: #{gat_forward.1} parent=0 // pred_check_branch
    %50 = sbr.rel (0) target = $region29
  $region28: #{gat_forward.1} parent=0 // pred_region
    _
  $region29: #{gat_forward.1} parent=0 // pred_fallthru
    _
  // Predicated region
  $region30: #{gat_forward.1} parent=0 // pred_check
    _
  $region31: #{gat_forward.1} parent=0 // pred_check_branch
    %52 = sbr.rel (0) target = $region33
  $region32: #{gat_forward.1} parent=0 // pred_region
    _
  $region33: #{gat_forward.1} parent=0 // pred_fallthru
    _
  // Predicated region
  $region34: #{gat_forward.1} parent=0 // pred_check
    _
  $region35: #{gat_forward.1} parent=0 // pred_check_branch
    %54 = sbr.rel (0) target = $region37
  $region36: #{gat_forward.1} parent=0 // pred_region
    _
  $region37: #{gat_forward.1} parent=0 // pred_fallthru
    _
  // Predicated region
  $region38: #{gat_forward.1} parent=0 // pred_check
    _
  $region39: #{gat_forward.1} parent=0 // pred_check_branch
    %56 = sbr.rel (0) target = $region41
  $region40: #{gat_forward.1} parent=0 // pred_region
    _
  $region41: #{gat_forward.1} parent=0 // pred_fallthru
    _
  // Predicated region
  $region42: #{gat_forward.1} parent=0 // pred_check
    _
  $region43: #{gat_forward.1} parent=0 // pred_check_branch
    %58 = sbr.rel (0) target = $region45
  $region44: #{gat_forward.1} parent=0 // pred_region
    _
  $region45: #{gat_forward.1} parent=0 // pred_fallthru
    _
  // Predicated region
  $region46: #{gat_forward.1} parent=0 // pred_check
    _
  $region47: #{gat_forward.1} parent=0 // pred_check_branch
    %60 = sbr.rel (0) target = $region49
  $region48: #{gat_forward.1} parent=0 // pred_region
    _
  $region49: #{gat_forward.1} parent=0 // pred_fallthru
    _
  // Predicated region
  $region50: #{gat_forward.1} parent=0 // pred_check
    _
  $region51: #{gat_forward.1} parent=0 // pred_check_branch
    %62 = sbr.rel (0) target = $region53
  $region52: #{gat_forward.1} parent=0 // pred_region
    _
  $region53: #{gat_forward.1} parent=0 // pred_fallthru
    _
  // Predicated region
  $region54: #{gat_forward.1} parent=0 // pred_check
    _
  $region55: #{gat_forward.1} parent=0 // pred_check_branch
    %64 = sbr.rel (0) target = $region57
  $region56: #{gat_forward.1} parent=0 // pred_region
    _
  $region57: #{gat_forward.1} parent=0 // pred_fallthru
    _
  // Predicated region
  $region58: #{gat_forward.1} parent=0 // pred_check
    _
  $region59: #{gat_forward.1} parent=0 // pred_check_branch
    %66 = sbr.rel (0) target = $region61
  $region60: #{gat_forward.1} parent=0 // pred_region
    _
  $region61: #{gat_forward.1} parent=0 // pred_fallthru
    _
  // Predicated region
  $region62: #{gat_forward.1} parent=0 // pred_check
    _
  $region63: #{gat_forward.1} parent=0 // pred_check_branch
    %68 = sbr.rel (0) target = $region65
  $region64: #{gat_forward.1} parent=0 // pred_region
    _
  $region65: #{gat_forward.1} parent=0 // pred_fallthru
    _
  // Predicated region
  $region66: #{gat_forward.1} parent=0 // pred_check
    _
  $region67: #{gat_forward.1} parent=0 // pred_check_branch
    %70 = sbr.rel (0) target = $region69
  $region68: #{gat_forward.1} parent=0 // pred_region
    _
  $region69: #{gat_forward.1} parent=0 // pred_fallthru
    _
  // Predicated region
  $region70: #{gat_forward.1} parent=0 // pred_check
    _
  $region71: #{gat_forward.1} parent=0 // pred_check_branch
    %72 = sbr.rel (0) target = $region73
  $region72: #{gat_forward.1} parent=0 // pred_region
    _
  $region73: #{gat_forward.1} parent=0 // pred_fallthru
    _
  // Predicated region
  $region74: #{gat_forward.1} parent=0 // pred_check
    _
  $region75: #{gat_forward.1} parent=0 // pred_check_branch
    %74 = sbr.rel (0) target = $region77
  $region76: #{gat_forward.1} parent=0 // pred_region
    _
  $region77: #{gat_forward.1} parent=0 // pred_fallthru
    _
  // Predicated region
  $region78: #{gat_forward.1} parent=0 // pred_check
    _
  $region79: #{gat_forward.1} parent=0 // pred_check_branch
    %76 = sbr.rel (0) target = $region81
  $region80: #{gat_forward.1} parent=0 // pred_region
    _
  $region81: #{gat_forward.1} parent=0 // pred_fallthru
    _
  // Predicated region
  $region82: #{gat_forward.1} parent=0 // pred_check
    _
  $region83: #{gat_forward.1} parent=0 // pred_check_branch
    %78 = sbr.rel (0) target = $region85
  $region84: #{gat_forward.1} parent=0 // pred_region
    _
  $region85: #{gat_forward.1} parent=0 // pred_fallthru
    _
  // Predicated region
  $region86: #{gat_forward.1} parent=0 // pred_check
    _
  $region87: #{gat_forward.1} parent=0 // pred_check_branch
    %80 = sbr.rel (0) target = $region89
  $region88: #{gat_forward.1} parent=0 // pred_region
    _
  $region89: #{gat_forward.1} parent=0 // pred_fallthru
    _
  // Predicated region
  $region90: #{gat_forward.1} parent=0 // pred_check
    _
  $region91: #{gat_forward.1} parent=0 // pred_check_branch
    %82 = sbr.rel (0) target = $region93
  $region92: #{gat_forward.1} parent=0 // pred_region
    _
  $region93: #{gat_forward.1} parent=0 // pred_fallthru
    _
  // Predicated region
  $region94: #{gat_forward.1} parent=0 // pred_check
    _
  $region95: #{gat_forward.1} parent=0 // pred_check_branch
    %84 = sbr.rel (0) target = $region97
  $region96: #{gat_forward.1} parent=0 // pred_region
    _
  $region97: #{gat_forward.1} parent=0 // pred_fallthru
    _
  // Predicated region
  $region98: #{gat_forward.1} parent=0 // pred_check
    _
  $region99: #{gat_forward.1} parent=0 // pred_check_branch
    %86 = sbr.rel (0) target = $region101
  $region100: #{gat_forward.1} parent=0 // pred_region
    _
  $region101: #{gat_forward.1} parent=0 // pred_fallthru
    _
  %v88 = vld [vmem:[%s1] sm:$0xff]
  %v89 = vld [vmem:[%s1 + $0x8] sm:$0xff]
  %vm90 = vcmp.gt.f32.partialorder %v88, 0.0
  %vm91 = vcmp.gt.f32.partialorder %v89, 0.0
  %v92 = vld [vmem:[%s0] sm:$0xff]
  %v93 = vld [vmem:[%s0 + $0x8] sm:$0xff]
  %v94 = vpack.c.bf16 %v93, %v92
  %v95 = vld [vmem:[%s2] sm:$0xff]
  %v96 = vld [vmem:[%s2 + $0x8] sm:$0xff]
  %v97 = vld [vmem:[%s2 + $0x10] sm:$0xff]
  %v98 = vld [vmem:[%s2 + $0x18] sm:$0xff]
  %v99 = vld [vmem:[%s2 + $0x20] sm:$0xff]
  %v100 = vld [vmem:[%s2 + $0x28] sm:$0xff]
  %v101 = vld [vmem:[%s2 + $0x30] sm:$0xff]
  %v102 = vld [vmem:[%s2 + $0x38] sm:$0xff]
  %v103 = vld [vmem:[%s2 + $0x40] sm:$0xff]
  %v104 = vld [vmem:[%s2 + $0x48] sm:$0xff]
  %v105 = vld [vmem:[%s2 + $0x50] sm:$0xff]
  %v106 = vld [vmem:[%s2 + $0x58] sm:$0xff]
  %v107 = vld [vmem:[%s2 + $0x60] sm:$0xff]
  %v108 = vld [vmem:[%s2 + $0x68] sm:$0xff]
  %v109 = vld [vmem:[%s2 + $0x70] sm:$0xff]
  %v110 = vld [vmem:[%s2 + $0x78] sm:$0xff]
  %v111 = vld [vmem:[%s2 + $0x80] sm:$0xff]
  %v112 = vld [vmem:[%s2 + $0x88] sm:$0xff]
  %v113 = vld [vmem:[%s2 + $0x90] sm:$0xff]
  %v114 = vld [vmem:[%s2 + $0x98] sm:$0xff]
  %v115 = vld [vmem:[%s2 + $0xa0] sm:$0xff]
  %v116 = vld [vmem:[%s2 + $0xa8] sm:$0xff]
  %v117 = vld [vmem:[%s2 + $0xb0] sm:$0xff]
  %v118 = vld [vmem:[%s2 + $0xb8] sm:$0xff]
  %v119 = vld [vmem:[%s2 + $0xc0] sm:$0xff]
  %v120 = vld [vmem:[%s2 + $0xc8] sm:$0xff]
  %v121 = vld [vmem:[%s2 + $0xd0] sm:$0xff]
  %v122 = vld [vmem:[%s2 + $0xd8] sm:$0xff]
  %v123 = vld [vmem:[%s2 + $0xe0] sm:$0xff]
  %v124 = vld [vmem:[%s2 + $0xe8] sm:$0xff]
  %v125 = vld [vmem:[%s2 + $0xf0] sm:$0xff]
  %v126 = vld [vmem:[%s2 + $0xf8] sm:$0xff]
  %v159 = vunpack.c.l.b16 %v95
  %v160 = vunpack.c.h.b16 %v95
  %v161 = vunpack.c.l.b16 %v96
  %v162 = vunpack.c.h.b16 %v96
  %v163 = vunpack.c.l.b16 %v97
  %v164 = vunpack.c.h.b16 %v97
  %v165 = vunpack.c.l.b16 %v98
  %v166 = vunpack.c.h.b16 %v98
  %v167 = vunpack.c.l.b16 %v99
  %v168 = vunpack.c.h.b16 %v99
  %v169 = vunpack.c.l.b16 %v100
  %v170 = vunpack.c.h.b16 %v100
  %v171 = vunpack.c.l.b16 %v101
  %v172 = vunpack.c.h.b16 %v101
  %v173 = vunpack.c.l.b16 %v102
  %v174 = vunpack.c.h.b16 %v102
  %v175 = vunpack.c.l.b16 %v103
  %v176 = vunpack.c.h.b16 %v103
  %v177 = vunpack.c.l.b16 %v104
  %v178 = vunpack.c.h.b16 %v104
  %v179 = vunpack.c.l.b16 %v105
  %v180 = vunpack.c.h.b16 %v105
  %v181 = vunpack.c.l.b16 %v106
  %v182 = vunpack.c.h.b16 %v106
  %v183 = vunpack.c.l.b16 %v107
  %v184 = vunpack.c.h.b16 %v107
  %v185 = vunpack.c.l.b16 %v108
  %v186 = vunpack.c.h.b16 %v108
  %v187 = vunpack.c.l.b16 %v109
  %v188 = vunpack.c.h.b16 %v109
  %v189 = vunpack.c.l.b16 %v110
  %v190 = vunpack.c.h.b16 %v110
  %v191 = vunpack.c.l.b16 %v111
  %v192 = vunpack.c.h.b16 %v111
  %v193 = vunpack.c.l.b16 %v112
  %v194 = vunpack.c.h.b16 %v112
  %v195 = vunpack.c.l.b16 %v113
  %v196 = vunpack.c.h.b16 %v113
  %v197 = vunpack.c.l.b16 %v114
  %v198 = vunpack.c.h.b16 %v114
  %v199 = vunpack.c.l.b16 %v115
  %v200 = vunpack.c.h.b16 %v115
  %v201 = vunpack.c.l.b16 %v116
  %v202 = vunpack.c.h.b16 %v116
  %v203 = vunpack.c.l.b16 %v117
  %v204 = vunpack.c.h.b16 %v117
  %v205 = vunpack.c.l.b16 %v118
  %v206 = vunpack.c.h.b16 %v118
  %v207 = vunpack.c.l.b16 %v119
  %v208 = vunpack.c.h.b16 %v119
  %v209 = vunpack.c.l.b16 %v120
  %v210 = vunpack.c.h.b16 %v120
  %v211 = vunpack.c.l.b16 %v121
  %v212 = vunpack.c.h.b16 %v121
  %v213 = vunpack.c.l.b16 %v122
  %v214 = vunpack.c.h.b16 %v122
  %v215 = vunpack.c.l.b16 %v123
  %v216 = vunpack.c.h.b16 %v123
  %v217 = vunpack.c.l.b16 %v124
  %v218 = vunpack.c.h.b16 %v124
  %v219 = vunpack.c.l.b16 %v125
  %v220 = vunpack.c.h.b16 %v125
  %v221 = vunpack.c.l.b16 %v126
  %v222 = vunpack.c.h.b16 %v126
  %v223 = vpack.c.b16 %v167, %v159
  %v224 = vpack.c.b16 %v168, %v160
  %v225 = vpack.c.b16 %v169, %v161
  %v226 = vpack.c.b16 %v170, %v162
  %v227 = vpack.c.b16 %v171, %v163
  %v228 = vpack.c.b16 %v172, %v164
  %v229 = vpack.c.b16 %v173, %v165
  %v230 = vpack.c.b16 %v174, %v166
  %v231 = vpack.c.b16 %v183, %v175
  %v232 = vpack.c.b16 %v184, %v176
  %v233 = vpack.c.b16 %v185, %v177
  %v234 = vpack.c.b16 %v186, %v178
  %v235 = vpack.c.b16 %v187, %v179
  %v236 = vpack.c.b16 %v188, %v180
  %v237 = vpack.c.b16 %v189, %v181
  %v238 = vpack.c.b16 %v190, %v182
  %v239 = vpack.c.b16 %v199, %v191
  %v240 = vpack.c.b16 %v200, %v192
  %v241 = vpack.c.b16 %v201, %v193
  %v242 = vpack.c.b16 %v202, %v194
  %v243 = vpack.c.b16 %v203, %v195
  %v244 = vpack.c.b16 %v204, %v196
  %v245 = vpack.c.b16 %v205, %v197
  %v246 = vpack.c.b16 %v206, %v198
  %v247 = vpack.c.b16 %v215, %v207
  %v248 = vpack.c.b16 %v216, %v208
  %v249 = vpack.c.b16 %v217, %v209
  %v250 = vpack.c.b16 %v218, %v210
  %v251 = vpack.c.b16 %v219, %v211
  %v252 = vpack.c.b16 %v220, %v212
  %v253 = vpack.c.b16 %v221, %v213
  %v254 = vpack.c.b16 %v222, %v214
  %vm287 = vcmask 523264
  %v289 = vsel %vm287, %v94, 0
  %291 = vmatprep.subr.bf16.mxu0 %v224
  %292 = vmatpush1.bf16.msra.mxu0 %v223
  %293 = vmatprep.subr.bf16.mxu0 %v232
  %294 = vmatpush1.bf16.msra.mxu0 %v231
  %295 = vmatprep.subr.bf16.mxu0 %v240
  %296 = vmatpush1.bf16.msra.mxu0 %v239
  %297 = vmatprep.subr.bf16.mxu0 %v248
  %298 = vmatpush1.bf16.msra.mxu0 %v247
  %299 = vmatprep.subr.bf16.mxu0 0
  %300 = vmatpush1.bf16.msra.mxu0 0
  %301 = vmatprep.subr.bf16.mxu0 0
  %302 = vmatpush1.bf16.msra.mxu0 0
  %303 = vmatprep.subr.bf16.mxu0 0
  %304 = vmatpush1.bf16.msra.mxu0 0
  %305 = vmatprep.subr.bf16.mxu0 0
  %306 = vmatpush1.bf16.msra.mxu0 0
  %307 = vmatprep.subr.bf16.mxu0 0
  %308 = vmatpush1.bf16.msra.mxu0 0
  %309 = vmatprep.subr.bf16.mxu0 0
  %310 = vmatpush1.bf16.msra.mxu0 0
  %311 = vmatprep.subr.bf16.mxu0 0
  %312 = vmatpush1.bf16.msra.mxu0 0
  %313 = vmatprep.subr.bf16.mxu0 0
  %314 = vmatpush1.bf16.msra.mxu0 0
  %315 = vmatprep.subr.bf16.mxu0 0
  %316 = vmatpush1.bf16.msra.mxu0 0
  %317 = vmatprep.subr.bf16.mxu0 0
  %318 = vmatpush1.bf16.msra.mxu0 0
  %319 = vmatprep.subr.bf16.mxu0 0
  %320 = vmatpush1.bf16.msra.mxu0 0
  %321 = vmatprep.subr.bf16.mxu0 0
  %322 = vmatpush1.bf16.msra.mxu0 0
  %323 = vmatprep.mubr.bf16.mxu0 0
  %324 = vmatmul.mubr.bf16.gmra.mrb[0].mxu0 %v289
  %v325 = vpop.f32.mrb[0].mxu0
  %v326 = vadd.f32 0.0, %v325
  %v327 = vpop.f32.mrb[0].mxu0
  %v328 = vadd.f32 0.0, %v327
  %v329 = vpop.f32.mrb[0].mxu0
  %v330 = vadd.f32 0.0, %v329
  %v331 = vpop.f32.mrb[0].mxu0
  %v332 = vadd.f32 0.0, %v331
  %333 = vdwg.mxu0
  %334 = vmatprep.subr.bf16.mxu0 %v226
  %335 = vmatpush1.bf16.msra.mxu0 %v225
  %336 = vmatprep.subr.bf16.mxu0 %v234
  %337 = vmatpush1.bf16.msra.mxu0 %v233
  %338 = vmatprep.subr.bf16.mxu0 %v242
  %339 = vmatpush1.bf16.msra.mxu0 %v241
  %340 = vmatprep.subr.bf16.mxu0 %v250
  %341 = vmatpush1.bf16.msra.mxu0 %v249
  %342 = vmatprep.subr.bf16.mxu0 0
  %343 = vmatpush1.bf16.msra.mxu0 0
  %344 = vmatprep.subr.bf16.mxu0 0
  %345 = vmatpush1.bf16.msra.mxu0 0
  %346 = vmatprep.subr.bf16.mxu0 0
  %347 = vmatpush1.bf16.msra.mxu0 0
  %348 = vmatprep.subr.bf16.mxu0 0
  %349 = vmatpush1.bf16.msra.mxu0 0
  %350 = vmatprep.subr.bf16.mxu0 0
  %351 = vmatpush1.bf16.msra.mxu0 0
  %352 = vmatprep.subr.bf16.mxu0 0
  %353 = vmatpush1.bf16.msra.mxu0 0
  %354 = vmatprep.subr.bf16.mxu0 0
  %355 = vmatpush1.bf16.msra.mxu0 0
  %356 = vmatprep.subr.bf16.mxu0 0
  %357 = vmatpush1.bf16.msra.mxu0 0
  %358 = vmatprep.subr.bf16.mxu0 0
  %359 = vmatpush1.bf16.msra.mxu0 0
  %360 = vmatprep.subr.bf16.mxu0 0
  %361 = vmatpush1.bf16.msra.mxu0 0
  %362 = vmatprep.subr.bf16.mxu0 0
  %363 = vmatpush1.bf16.msra.mxu0 0
  %364 = vmatprep.subr.bf16.mxu0 0
  %365 = vmatpush1.bf16.msra.mxu0 0
  %366 = vmatprep.mubr.bf16.mxu0 0
  %367 = vmatmul.mubr.bf16.gmra.mrb[0].mxu0 %v289
  %v368 = vpop.f32.mrb[0].mxu0
  %v369 = vadd.f32 0.0, %v368
  %v370 = vpop.f32.mrb[0].mxu0
  %v371 = vadd.f32 0.0, %v370
  %v372 = vpop.f32.mrb[0].mxu0
  %v373 = vadd.f32 0.0, %v372
  %v374 = vpop.f32.mrb[0].mxu0
  %v375 = vadd.f32 0.0, %v374
  %376 = vdwg.mxu0
  %377 = vmatprep.subr.bf16.mxu0 %v228
  %378 = vmatpush1.bf16.msra.mxu0 %v227
  %379 = vmatprep.subr.bf16.mxu0 %v236
  %380 = vmatpush1.bf16.msra.mxu0 %v235
  %381 = vmatprep.subr.bf16.mxu0 %v244
  %382 = vmatpush1.bf16.msra.mxu0 %v243
  %383 = vmatprep.subr.bf16.mxu0 %v252
  %384 = vmatpush1.bf16.msra.mxu0 %v251
  %385 = vmatprep.subr.bf16.mxu0 0
  %386 = vmatpush1.bf16.msra.mxu0 0
  %387 = vmatprep.subr.bf16.mxu0 0
  %388 = vmatpush1.bf16.msra.mxu0 0
  %389 = vmatprep.subr.bf16.mxu0 0
  %390 = vmatpush1.bf16.msra.mxu0 0
  %391 = vmatprep.subr.bf16.mxu0 0
  %392 = vmatpush1.bf16.msra.mxu0 0
  %393 = vmatprep.subr.bf16.mxu0 0
  %394 = vmatpush1.bf16.msra.mxu0 0
  %395 = vmatprep.subr.bf16.mxu0 0
  %396 = vmatpush1.bf16.msra.mxu0 0
  %397 = vmatprep.subr.bf16.mxu0 0
  %398 = vmatpush1.bf16.msra.mxu0 0
  %399 = vmatprep.subr.bf16.mxu0 0
  %400 = vmatpush1.bf16.msra.mxu0 0
  %401 = vmatprep.subr.bf16.mxu0 0
  %402 = vmatpush1.bf16.msra.mxu0 0
  %403 = vmatprep.subr.bf16.mxu0 0
  %404 = vmatpush1.bf16.msra.mxu0 0
  %405 = vmatprep.subr.bf16.mxu0 0
  %406 = vmatpush1.bf16.msra.mxu0 0
  %407 = vmatprep.subr.bf16.mxu0 0
  %408 = vmatpush1.bf16.msra.mxu0 0
  %409 = vmatprep.mubr.bf16.mxu0 0
  %410 = vmatmul.mubr.bf16.gmra.mrb[0].mxu0 %v289
  %v411 = vpop.f32.mrb[0].mxu0
  %v412 = vadd.f32 0.0, %v411
  %v413 = vpop.f32.mrb[0].mxu0
  %v414 = vadd.f32 0.0, %v413
  %v415 = vpop.f32.mrb[0].mxu0
  %v416 = vadd.f32 0.0, %v415
  %v417 = vpop.f32.mrb[0].mxu0
  %v418 = vadd.f32 0.0, %v417
  %419 = vdwg.mxu0
  %420 = vmatprep.subr.bf16.mxu0 %v230
  %421 = vmatpush1.bf16.msra.mxu0 %v229
  %422 = vmatprep.subr.bf16.mxu0 %v238
  %423 = vmatpush1.bf16.msra.mxu0 %v237
  %424 = vmatprep.subr.bf16.mxu0 %v246
  %425 = vmatpush1.bf16.msra.mxu0 %v245
  %426 = vmatprep.subr.bf16.mxu0 %v254
  %427 = vmatpush1.bf16.msra.mxu0 %v253
  %428 = vmatprep.subr.bf16.mxu0 0
  %429 = vmatpush1.bf16.msra.mxu0 0
  %430 = vmatprep.subr.bf16.mxu0 0
  %431 = vmatpush1.bf16.msra.mxu0 0
  %432 = vmatprep.subr.bf16.mxu0 0
  %433 = vmatpush1.bf16.msra.mxu0 0
  %434 = vmatprep.subr.bf16.mxu0 0
  %435 = vmatpush1.bf16.msra.mxu0 0
  %436 = vmatprep.subr.bf16.mxu0 0
  %437 = vmatpush1.bf16.msra.mxu0 0
  %438 = vmatprep.subr.bf16.mxu0 0
  %439 = vmatpush1.bf16.msra.mxu0 0
  %440 = vmatprep.subr.bf16.mxu0 0
  %441 = vmatpush1.bf16.msra.mxu0 0
  %442 = vmatprep.subr.bf16.mxu0 0
  %443 = vmatpush1.bf16.msra.mxu0 0
  %444 = vmatprep.subr.bf16.mxu0 0
  %445 = vmatpush1.bf16.msra.mxu0 0
  %446 = vmatprep.subr.bf16.mxu0 0
  %447 = vmatpush1.bf16.msra.mxu0 0
  %448 = vmatprep.subr.bf16.mxu0 0
  %449 = vmatpush1.bf16.msra.mxu0 0
  %450 = vmatprep.subr.bf16.mxu0 0
  %451 = vmatpush1.bf16.msra.mxu0 0
  %452 = vmatprep.mubr.bf16.mxu0 0
  %453 = vmatmul.mubr.bf16.gmra.mrb[0].mxu0 %v289
  %v454 = vpop.f32.mrb[0].mxu0
  %v455 = vadd.f32 0.0, %v454
  %v456 = vpop.f32.mrb[0].mxu0
  %v457 = vadd.f32 0.0, %v456
  %v458 = vpop.f32.mrb[0].mxu0
  %v459 = vadd.f32 0.0, %v458
  %v460 = vpop.f32.mrb[0].mxu0
  %v461 = vadd.f32 0.0, %v460
  %462 = vdwg.mxu0
  %v463 = vpack.c.bf16 %v330, %v326
  %v464 = vpack.c.bf16 %v332, %v328
  %v465 = vpack.c.bf16 %v373, %v369
  %v466 = vpack.c.bf16 %v375, %v371
  %v467 = vpack.c.bf16 %v416, %v412
  %v468 = vpack.c.bf16 %v418, %v414
  %v469 = vpack.c.bf16 %v459, %v455
  %v470 = vpack.c.bf16 %v461, %v457
  %v471 = vld [vmem:[%s3] sm:$0xff]
  %v472 = vld [vmem:[%s3 + $0x8] sm:$0xff]
  %v473 = vld [vmem:[%s3 + $0x10] sm:$0xff]
  %v474 = vld [vmem:[%s3 + $0x18] sm:$0xff]
  %v479 = vunpack.c.l.b16 %v471
  %v480 = vunpack.c.h.b16 %v471
  %v481 = vunpack.c.l.b16 %v472
  %v482 = vunpack.c.h.b16 %v472
  %v483 = vunpack.c.l.b16 %v473
  %v484 = vunpack.c.h.b16 %v473
  %v485 = vunpack.c.l.b16 %v474
  %v486 = vunpack.c.h.b16 %v474
  %v487 = vpack.c.b16 %v479, %v479
  %v488 = vpack.c.b16 %v480, %v480
  %v489 = vpack.c.b16 %v481, %v481
  %v490 = vpack.c.b16 %v482, %v482
  %v491 = vpack.c.b16 %v483, %v483
  %v492 = vpack.c.b16 %v484, %v484
  %v493 = vpack.c.b16 %v485, %v485
  %v494 = vpack.c.b16 %v486, %v486
  %503 = vmatprep.subr.bf16.mxu0 %v464
  %504 = vmatpush1.bf16.xpose.msra.mxu0 %v463
  %505 = vmatprep.subr.bf16.mxu0 0
  %506 = vmatpush1.bf16.xpose.msra.mxu0 0
  %507 = vmatprep.subr.bf16.mxu0 0
  %508 = vmatpush1.bf16.xpose.msra.mxu0 0
  %509 = vmatprep.subr.bf16.mxu0 0
  %510 = vmatpush1.bf16.xpose.msra.mxu0 0
  %511 = vmatprep.subr.bf16.mxu0 0
  %512 = vmatpush1.bf16.xpose.msra.mxu0 0
  %513 = vmatprep.subr.bf16.mxu0 0
  %514 = vmatpush1.bf16.xpose.msra.mxu0 0
  %515 = vmatprep.subr.bf16.mxu0 0
  %516 = vmatpush1.bf16.xpose.msra.mxu0 0
  %517 = vmatprep.subr.bf16.mxu0 0
  %518 = vmatpush1.bf16.xpose.msra.mxu0 0
  %519 = vmatprep.subr.bf16.mxu0 0
  %520 = vmatpush1.bf16.xpose.msra.mxu0 0
  %521 = vmatprep.subr.bf16.mxu0 0
  %522 = vmatpush1.bf16.xpose.msra.mxu0 0
  %523 = vmatprep.subr.bf16.mxu0 0
  %524 = vmatpush1.bf16.xpose.msra.mxu0 0
  %525 = vmatprep.subr.bf16.mxu0 0
  %526 = vmatpush1.bf16.xpose.msra.mxu0 0
  %527 = vmatprep.subr.bf16.mxu0 0
  %528 = vmatpush1.bf16.xpose.msra.mxu0 0
  %529 = vmatprep.subr.bf16.mxu0 0
  %530 = vmatpush1.bf16.xpose.msra.mxu0 0
  %531 = vmatprep.subr.bf16.mxu0 0
  %532 = vmatpush1.bf16.xpose.msra.mxu0 0
  %533 = vmatprep.subr.bf16.mxu0 0
  %534 = vmatpush1.bf16.xpose.msra.mxu0 0
  %535 = vmatprep.mubr.bf16.mxu0 %v488
  %536 = vmatmul.mubr.bf16.gmra.mrb[0].mxu0 %v487
  %v537 = vpop.f32.mrb[0].mxu0
  %v538 = vadd.f32 0.0, %v537
  %v539 = vpop.f32.mrb[0].mxu0
  %v540 = vpop.f32.mrb[0].mxu0
  %v541 = vpop.f32.mrb[0].mxu0
  %542 = vdwg.mxu0
  %543 = vmatprep.subr.bf16.mxu0 %v466
  %544 = vmatpush1.bf16.xpose.msra.mxu0 %v465
  %545 = vmatprep.subr.bf16.mxu0 0
  %546 = vmatpush1.bf16.xpose.msra.mxu0 0
  %547 = vmatprep.subr.bf16.mxu0 0
  %548 = vmatpush1.bf16.xpose.msra.mxu0 0
  %549 = vmatprep.subr.bf16.mxu0 0
  %550 = vmatpush1.bf16.xpose.msra.mxu0 0
  %551 = vmatprep.subr.bf16.mxu0 0
  %552 = vmatpush1.bf16.xpose.msra.mxu0 0
  %553 = vmatprep.subr.bf16.mxu0 0
  %554 = vmatpush1.bf16.xpose.msra.mxu0 0
  %555 = vmatprep.subr.bf16.mxu0 0
  %556 = vmatpush1.bf16.xpose.msra.mxu0 0
  %557 = vmatprep.subr.bf16.mxu0 0
  %558 = vmatpush1.bf16.xpose.msra.mxu0 0
  %559 = vmatprep.subr.bf16.mxu0 0
  %560 = vmatpush1.bf16.xpose.msra.mxu0 0
  %561 = vmatprep.subr.bf16.mxu0 0
  %562 = vmatpush1.bf16.xpose.msra.mxu0 0
  %563 = vmatprep.subr.bf16.mxu0 0
  %564 = vmatpush1.bf16.xpose.msra.mxu0 0
  %565 = vmatprep.subr.bf16.mxu0 0
  %566 = vmatpush1.bf16.xpose.msra.mxu0 0
  %567 = vmatprep.subr.bf16.mxu0 0
  %568 = vmatpush1.bf16.xpose.msra.mxu0 0
  %569 = vmatprep.subr.bf16.mxu0 0
  %570 = vmatpush1.bf16.xpose.msra.mxu0 0
  %571 = vmatprep.subr.bf16.mxu0 0
  %572 = vmatpush1.bf16.xpose.msra.mxu0 0
  %573 = vmatprep.subr.bf16.mxu0 0
  %574 = vmatpush1.bf16.xpose.msra.mxu0 0
  %575 = vmatprep.mubr.bf16.mxu0 %v490
  %576 = vmatmul.mubr.bf16.gmra.mrb[0].mxu0 %v489
  %v577 = vpop.f32.mrb[0].mxu0
  %v578 = vadd.f32 %v538, %v577
  %v579 = vpop.f32.mrb[0].mxu0
  %v580 = vpop.f32.mrb[0].mxu0
  %v581 = vpop.f32.mrb[0].mxu0
  %582 = vdwg.mxu0
  %583 = vmatprep.subr.bf16.mxu0 %v468
  %584 = vmatpush1.bf16.xpose.msra.mxu0 %v467
  %585 = vmatprep.subr.bf16.mxu0 0
  %586 = vmatpush1.bf16.xpose.msra.mxu0 0
  %587 = vmatprep.subr.bf16.mxu0 0
  %588 = vmatpush1.bf16.xpose.msra.mxu0 0
  %589 = vmatprep.subr.bf16.mxu0 0
  %590 = vmatpush1.bf16.xpose.msra.mxu0 0
  %591 = vmatprep.subr.bf16.mxu0 0
  %592 = vmatpush1.bf16.xpose.msra.mxu0 0
  %593 = vmatprep.subr.bf16.mxu0 0
  %594 = vmatpush1.bf16.xpose.msra.mxu0 0
  %595 = vmatprep.subr.bf16.mxu0 0
  %596 = vmatpush1.bf16.xpose.msra.mxu0 0
  %597 = vmatprep.subr.bf16.mxu0 0
  %598 = vmatpush1.bf16.xpose.msra.mxu0 0
  %599 = vmatprep.subr.bf16.mxu0 0
  %600 = vmatpush1.bf16.xpose.msra.mxu0 0
  %601 = vmatprep.subr.bf16.mxu0 0
  %602 = vmatpush1.bf16.xpose.msra.mxu0 0
  %603 = vmatprep.subr.bf16.mxu0 0
  %604 = vmatpush1.bf16.xpose.msra.mxu0 0
  %605 = vmatprep.subr.bf16.mxu0 0
  %606 = vmatpush1.bf16.xpose.msra.mxu0 0
  %607 = vmatprep.subr.bf16.mxu0 0
  %608 = vmatpush1.bf16.xpose.msra.mxu0 0
  %609 = vmatprep.subr.bf16.mxu0 0
  %610 = vmatpush1.bf16.xpose.msra.mxu0 0
  %611 = vmatprep.subr.bf16.mxu0 0
  %612 = vmatpush1.bf16.xpose.msra.mxu0 0
  %613 = vmatprep.subr.bf16.mxu0 0
  %614 = vmatpush1.bf16.xpose.msra.mxu0 0
  %615 = vmatprep.mubr.bf16.mxu0 %v492
  %616 = vmatmul.mubr.bf16.gmra.mrb[0].mxu0 %v491
  %v617 = vpop.f32.mrb[0].mxu0
  %v618 = vadd.f32 %v578, %v617
  %v619 = vpop.f32.mrb[0].mxu0
  %v620 = vpop.f32.mrb[0].mxu0
  %v621 = vpop.f32.mrb[0].mxu0
  %622 = vdwg.mxu0
  %623 = vmatprep.subr.bf16.mxu0 %v470
  %624 = vmatpush1.bf16.xpose.msra.mxu0 %v469
  %625 = vmatprep.subr.bf16.mxu0 0
  %626 = vmatpush1.bf16.xpose.msra.mxu0 0
  %627 = vmatprep.subr.bf16.mxu0 0
  %628 = vmatpush1.bf16.xpose.msra.mxu0 0
  %629 = vmatprep.subr.bf16.mxu0 0
  %630 = vmatpush1.bf16.xpose.msra.mxu0 0
  %631 = vmatprep.subr.bf16.mxu0 0
  %632 = vmatpush1.bf16.xpose.msra.mxu0 0
  %633 = vmatprep.subr.bf16.mxu0 0
  %634 = vmatpush1.bf16.xpose.msra.mxu0 0
  %635 = vmatprep.subr.bf16.mxu0 0
  %636 = vmatpush1.bf16.xpose.msra.mxu0 0
  %637 = vmatprep.subr.bf16.mxu0 0
  %638 = vmatpush1.bf16.xpose.msra.mxu0 0
  %639 = vmatprep.subr.bf16.mxu0 0
  %640 = vmatpush1.bf16.xpose.msra.mxu0 0
  %641 = vmatprep.subr.bf16.mxu0 0
  %642 = vmatpush1.bf16.xpose.msra.mxu0 0
  %643 = vmatprep.subr.bf16.mxu0 0
  %644 = vmatpush1.bf16.xpose.msra.mxu0 0
  %645 = vmatprep.subr.bf16.mxu0 0
  %646 = vmatpush1.bf16.xpose.msra.mxu0 0
  %647 = vmatprep.subr.bf16.mxu0 0
  %648 = vmatpush1.bf16.xpose.msra.mxu0 0
  %649 = vmatprep.subr.bf16.mxu0 0
  %650 = vmatpush1.bf16.xpose.msra.mxu0 0
  %651 = vmatprep.subr.bf16.mxu0 0
  %652 = vmatpush1.bf16.xpose.msra.mxu0 0
  %653 = vmatprep.subr.bf16.mxu0 0
  %654 = vmatpush1.bf16.xpose.msra.mxu0 0
  %655 = vmatprep.mubr.bf16.mxu0 %v494
  %656 = vmatmul.mubr.bf16.gmra.mrb[0].mxu0 %v493
  %v657 = vpop.f32.mrb[0].mxu0
  %v658 = vadd.f32 %v618, %v657
  %v659 = vpop.f32.mrb[0].mxu0
  %v660 = vpop.f32.mrb[0].mxu0
  %v661 = vpop.f32.mrb[0].mxu0
  %662 = vdwg.mxu0
  %v663 = vld [vmem:[%s4] sm:$0xf]
  %v664 = vld [vmem:[%s4 + $0x4] sm:$0xf]
  %v665 = vld [vmem:[%s4 + $0x8] sm:$0xf]
  %v666 = vld [vmem:[%s4 + $0xc] sm:$0xf]
  %v667 = vld [vmem:[%s4 + $0x10] sm:$0xf]
  %v668 = vld [vmem:[%s4 + $0x14] sm:$0xf]
  %v669 = vld [vmem:[%s4 + $0x18] sm:$0xf]
  %v670 = vld [vmem:[%s4 + $0x1c] sm:$0xf]
  %v671 = vld [vmem:[%s4 + $0x20] sm:$0xf]
  %v672 = vld [vmem:[%s4 + $0x24] sm:$0xf]
  %v673 = vld [vmem:[%s4 + $0x28] sm:$0xf]
  %v674 = vld [vmem:[%s4 + $0x2c] sm:$0xf]
  %v675 = vld [vmem:[%s4 + $0x30] sm:$0xf]
  %v676 = vld [vmem:[%s4 + $0x34] sm:$0xf]
  %v677 = vld [vmem:[%s4 + $0x38] sm:$0xf]
  %v678 = vld [vmem:[%s4 + $0x3c] sm:$0xf]
  %v679 = vld [vmem:[%s4 + $0x40] sm:$0xf]
  %v680 = vld [vmem:[%s4 + $0x44] sm:$0xf]
  %v681 = vld [vmem:[%s4 + $0x48] sm:$0xf]
  %v682 = vld [vmem:[%s4 + $0x4c] sm:$0xf]
  %v683 = vld [vmem:[%s4 + $0x50] sm:$0xf]
  %v684 = vld [vmem:[%s4 + $0x54] sm:$0xf]
  %v685 = vld [vmem:[%s4 + $0x58] sm:$0xf]
  %v686 = vld [vmem:[%s4 + $0x5c] sm:$0xf]
  %v687 = vld [vmem:[%s4 + $0x60] sm:$0xf]
  %v688 = vld [vmem:[%s4 + $0x64] sm:$0xf]
  %v689 = vld [vmem:[%s4 + $0x68] sm:$0xf]
  %v690 = vld [vmem:[%s4 + $0x6c] sm:$0xf]
  %v691 = vld [vmem:[%s4 + $0x70] sm:$0xf]
  %v692 = vld [vmem:[%s4 + $0x74] sm:$0xf]
  %v693 = vld [vmem:[%s4 + $0x78] sm:$0xf]
  %v694 = vld [vmem:[%s4 + $0x7c] sm:$0xf]
  %v695 = vld [vmem:[%s4 + $0x80] sm:$0xf]
  %v696 = vld [vmem:[%s4 + $0x84] sm:$0xf]
  %v697 = vld [vmem:[%s4 + $0x88] sm:$0xf]
  %v698 = vld [vmem:[%s4 + $0x8c] sm:$0xf]
  %v699 = vld [vmem:[%s4 + $0x90] sm:$0xf]
  %v700 = vld [vmem:[%s4 + $0x94] sm:$0xf]
  %v701 = vld [vmem:[%s4 + $0x98] sm:$0xf]
  %v702 = vld [vmem:[%s4 + $0x9c] sm:$0xf]
  %v703 = vld [vmem:[%s4 + $0xa0] sm:$0xf]
  %v704 = vld [vmem:[%s4 + $0xa4] sm:$0xf]
  %v705 = vld [vmem:[%s4 + $0xa8] sm:$0xf]
  %v706 = vld [vmem:[%s4 + $0xac] sm:$0xf]
  %v707 = vld [vmem:[%s4 + $0xb0] sm:$0xf]
  %v708 = vld [vmem:[%s4 + $0xb4] sm:$0xf]
  %v709 = vld [vmem:[%s4 + $0xb8] sm:$0xf]
  %v710 = vld [vmem:[%s4 + $0xbc] sm:$0xf]
  %v711 = vld [vmem:[%s4 + $0xc0] sm:$0xf]
  %v712 = vld [vmem:[%s4 + $0xc4] sm:$0xf]
  %v713 = vld [vmem:[%s4 + $0xc8] sm:$0xf]
  %v714 = vld [vmem:[%s4 + $0xcc] sm:$0xf]
  %v715 = vld [vmem:[%s4 + $0xd0] sm:$0xf]
  %v716 = vld [vmem:[%s4 + $0xd4] sm:$0xf]
  %v717 = vld [vmem:[%s4 + $0xd8] sm:$0xf]
  %v718 = vld [vmem:[%s4 + $0xdc] sm:$0xf]
  %v719 = vld [vmem:[%s4 + $0xe0] sm:$0xf]
  %v720 = vld [vmem:[%s4 + $0xe4] sm:$0xf]
  %v721 = vld [vmem:[%s4 + $0xe8] sm:$0xf]
  %v722 = vld [vmem:[%s4 + $0xec] sm:$0xf]
  %v723 = vld [vmem:[%s4 + $0xf0] sm:$0xf]
  %v724 = vld [vmem:[%s4 + $0xf4] sm:$0xf]
  %v725 = vld [vmem:[%s4 + $0xf8] sm:$0xf]
  %v726 = vld [vmem:[%s4 + $0xfc] sm:$0xf]
  %v727 = vld [vmem:[%s4 + $0x100] sm:$0xf]
  %v728 = vld [vmem:[%s4 + $0x104] sm:$0xf]
  %v729 = vld [vmem:[%s4 + $0x108] sm:$0xf]
  %v730 = vld [vmem:[%s4 + $0x10c] sm:$0xf]
  %v731 = vld [vmem:[%s4 + $0x110] sm:$0xf]
  %v732 = vld [vmem:[%s4 + $0x114] sm:$0xf]
  %v733 = vld [vmem:[%s4 + $0x118] sm:$0xf]
  %v734 = vld [vmem:[%s4 + $0x11c] sm:$0xf]
  %v735 = vld [vmem:[%s4 + $0x120] sm:$0xf]
  %v736 = vld [vmem:[%s4 + $0x124] sm:$0xf]
  %v737 = vld [vmem:[%s4 + $0x128] sm:$0xf]
  %v738 = vld [vmem:[%s4 + $0x12c] sm:$0xf]
  %v739 = vld [vmem:[%s4 + $0x130] sm:$0xf]
  %v740 = vld [vmem:[%s4 + $0x134] sm:$0xf]
  %v741 = vld [vmem:[%s4 + $0x138] sm:$0xf]
  %v742 = vld [vmem:[%s4 + $0x13c] sm:$0xf]
  %v743 = vld [vmem:[%s4 + $0x140] sm:$0xf]
  %v744 = vld [vmem:[%s4 + $0x144] sm:$0xf]
  %v745 = vld [vmem:[%s4 + $0x148] sm:$0xf]
  %v746 = vld [vmem:[%s4 + $0x14c] sm:$0xf]
  %v747 = vld [vmem:[%s4 + $0x150] sm:$0xf]
  %v748 = vld [vmem:[%s4 + $0x154] sm:$0xf]
  %v749 = vld [vmem:[%s4 + $0x158] sm:$0xf]
  %v750 = vld [vmem:[%s4 + $0x15c] sm:$0xf]
  %v751 = vld [vmem:[%s4 + $0x160] sm:$0xf]
  %v752 = vld [vmem:[%s4 + $0x164] sm:$0xf]
  %v753 = vld [vmem:[%s4 + $0x168] sm:$0xf]
  %v754 = vld [vmem:[%s4 + $0x16c] sm:$0xf]
  %v755 = vld [vmem:[%s4 + $0x170] sm:$0xf]
  %v756 = vld [vmem:[%s4 + $0x174] sm:$0xf]
  %v757 = vld [vmem:[%s4 + $0x178] sm:$0xf]
  %v758 = vld [vmem:[%s4 + $0x17c] sm:$0xf]
  %v759 = vld [vmem:[%s4 + $0x180] sm:$0xf]
  %v760 = vld [vmem:[%s4 + $0x184] sm:$0xf]
  %v761 = vld [vmem:[%s4 + $0x188] sm:$0xf]
  %v762 = vld [vmem:[%s4 + $0x18c] sm:$0xf]
  %v763 = vld [vmem:[%s4 + $0x190] sm:$0xf]
  %v764 = vld [vmem:[%s4 + $0x194] sm:$0xf]
  %v765 = vld [vmem:[%s4 + $0x198] sm:$0xf]
  %v766 = vld [vmem:[%s4 + $0x19c] sm:$0xf]
  %v767 = vld [vmem:[%s4 + $0x1a0] sm:$0xf]
  %v768 = vld [vmem:[%s4 + $0x1a4] sm:$0xf]
  %v769 = vld [vmem:[%s4 + $0x1a8] sm:$0xf]
  %v770 = vld [vmem:[%s4 + $0x1ac] sm:$0xf]
  %v771 = vld [vmem:[%s4 + $0x1b0] sm:$0xf]
  %v772 = vld [vmem:[%s4 + $0x1b4] sm:$0xf]
  %v773 = vld [vmem:[%s4 + $0x1b8] sm:$0xf]
  %v774 = vld [vmem:[%s4 + $0x1bc] sm:$0xf]
  %v775 = vld [vmem:[%s4 + $0x1c0] sm:$0xf]
  %v776 = vld [vmem:[%s4 + $0x1c4] sm:$0xf]
  %v777 = vld [vmem:[%s4 + $0x1c8] sm:$0xf]
  %v778 = vld [vmem:[%s4 + $0x1cc] sm:$0xf]
  %v779 = vld [vmem:[%s4 + $0x1d0] sm:$0xf]
  %v780 = vld [vmem:[%s4 + $0x1d4] sm:$0xf]
  %v781 = vld [vmem:[%s4 + $0x1d8] sm:$0xf]
  %v782 = vld [vmem:[%s4 + $0x1dc] sm:$0xf]
  %v783 = vld [vmem:[%s4 + $0x1e0] sm:$0xf]
  %v784 = vld [vmem:[%s4 + $0x1e4] sm:$0xf]
  %v785 = vld [vmem:[%s4 + $0x1e8] sm:$0xf]
  %v786 = vld [vmem:[%s4 + $0x1ec] sm:$0xf]
  %v787 = vld [vmem:[%s4 + $0x1f0] sm:$0xf]
  %v788 = vld [vmem:[%s4 + $0x1f4] sm:$0xf]
  %v789 = vld [vmem:[%s4 + $0x1f8] sm:$0xf]
  %v790 = vld [vmem:[%s4 + $0x1fc] sm:$0xf]
  %v919 = vunpack.c.l.b16 %v663
  %v920 = vunpack.c.l.b16 %v664
  %v921 = vunpack.c.l.b16 %v665
  %v922 = vunpack.c.l.b16 %v666
  %v923 = vunpack.c.l.b16 %v667
  %v924 = vunpack.c.l.b16 %v668
  %v925 = vunpack.c.l.b16 %v669
  %v926 = vunpack.c.l.b16 %v670
  %v927 = vunpack.c.l.b16 %v671
  %v928 = vunpack.c.l.b16 %v672
  %v929 = vunpack.c.l.b16 %v673
  %v930 = vunpack.c.l.b16 %v674
  %v931 = vunpack.c.l.b16 %v675
  %v932 = vunpack.c.l.b16 %v676
  %v933 = vunpack.c.l.b16 %v677
  %v934 = vunpack.c.l.b16 %v678
  %v935 = vunpack.c.l.b16 %v679
  %v936 = vunpack.c.l.b16 %v680
  %v937 = vunpack.c.l.b16 %v681
  %v938 = vunpack.c.l.b16 %v682
  %v939 = vunpack.c.l.b16 %v683
  %v940 = vunpack.c.l.b16 %v684
  %v941 = vunpack.c.l.b16 %v685
  %v942 = vunpack.c.l.b16 %v686
  %v943 = vunpack.c.l.b16 %v687
  %v944 = vunpack.c.l.b16 %v688
  %v945 = vunpack.c.l.b16 %v689
  %v946 = vunpack.c.l.b16 %v690
  %v947 = vunpack.c.l.b16 %v691
  %v948 = vunpack.c.l.b16 %v692
  %v949 = vunpack.c.l.b16 %v693
  %v950 = vunpack.c.l.b16 %v694
  %v951 = vunpack.c.l.b16 %v695
  %v952 = vunpack.c.l.b16 %v696
  %v953 = vunpack.c.l.b16 %v697
  %v954 = vunpack.c.l.b16 %v698
  %v955 = vunpack.c.l.b16 %v699
  %v956 = vunpack.c.l.b16 %v700
  %v957 = vunpack.c.l.b16 %v701
  %v958 = vunpack.c.l.b16 %v702
  %v959 = vunpack.c.l.b16 %v703
  %v960 = vunpack.c.l.b16 %v704
  %v961 = vunpack.c.l.b16 %v705
  %v962 = vunpack.c.l.b16 %v706
  %v963 = vunpack.c.l.b16 %v707
  %v964 = vunpack.c.l.b16 %v708
  %v965 = vunpack.c.l.b16 %v709
  %v966 = vunpack.c.l.b16 %v710
  %v967 = vunpack.c.l.b16 %v711
  %v968 = vunpack.c.l.b16 %v712
  %v969 = vunpack.c.l.b16 %v713
  %v970 = vunpack.c.l.b16 %v714
  %v971 = vunpack.c.l.b16 %v715
  %v972 = vunpack.c.l.b16 %v716
  %v973 = vunpack.c.l.b16 %v717
  %v974 = vunpack.c.l.b16 %v718
  %v975 = vunpack.c.l.b16 %v719
  %v976 = vunpack.c.l.b16 %v720
  %v977 = vunpack.c.l.b16 %v721
  %v978 = vunpack.c.l.b16 %v722
  %v979 = vunpack.c.l.b16 %v723
  %v980 = vunpack.c.l.b16 %v724
  %v981 = vunpack.c.l.b16 %v725
  %v982 = vunpack.c.l.b16 %v726
  %v983 = vunpack.c.l.b16 %v727
  %v984 = vunpack.c.l.b16 %v728
  %v985 = vunpack.c.l.b16 %v729
  %v986 = vunpack.c.l.b16 %v730
  %v987 = vunpack.c.l.b16 %v731
  %v988 = vunpack.c.l.b16 %v732
  %v989 = vunpack.c.l.b16 %v733
  %v990 = vunpack.c.l.b16 %v734
  %v991 = vunpack.c.l.b16 %v735
  %v992 = vunpack.c.l.b16 %v736
  %v993 = vunpack.c.l.b16 %v737
  %v994 = vunpack.c.l.b16 %v738
  %v995 = vunpack.c.l.b16 %v739
  %v996 = vunpack.c.l.b16 %v740
  %v997 = vunpack.c.l.b16 %v741
  %v998 = vunpack.c.l.b16 %v742
  %v999 = vunpack.c.l.b16 %v743
  %v1000 = vunpack.c.l.b16 %v744
  %v1001 = vunpack.c.l.b16 %v745
  %v1002 = vunpack.c.l.b16 %v746
  %v1003 = vunpack.c.l.b16 %v747
  %v1004 = vunpack.c.l.b16 %v748
  %v1005 = vunpack.c.l.b16 %v749
  %v1006 = vunpack.c.l.b16 %v750
  %v1007 = vunpack.c.l.b16 %v751
  %v1008 = vunpack.c.l.b16 %v752
  %v1009 = vunpack.c.l.b16 %v753
  %v1010 = vunpack.c.l.b16 %v754
  %v1011 = vunpack.c.l.b16 %v755
  %v1012 = vunpack.c.l.b16 %v756
  %v1013 = vunpack.c.l.b16 %v757
  %v1014 = vunpack.c.l.b16 %v758
  %v1015 = vunpack.c.l.b16 %v759
  %v1016 = vunpack.c.l.b16 %v760
  %v1017 = vunpack.c.l.b16 %v761
  %v1018 = vunpack.c.l.b16 %v762
  %v1019 = vunpack.c.l.b16 %v763
  %v1020 = vunpack.c.l.b16 %v764
  %v1021 = vunpack.c.l.b16 %v765
  %v1022 = vunpack.c.l.b16 %v766
  %v1023 = vunpack.c.l.b16 %v767
  %v1024 = vunpack.c.l.b16 %v768
  %v1025 = vunpack.c.l.b16 %v769
  %v1026 = vunpack.c.l.b16 %v770
  %v1027 = vunpack.c.l.b16 %v771
  %v1028 = vunpack.c.l.b16 %v772
  %v1029 = vunpack.c.l.b16 %v773
  %v1030 = vunpack.c.l.b16 %v774
  %v1031 = vunpack.c.l.b16 %v775
  %v1032 = vunpack.c.l.b16 %v776
  %v1033 = vunpack.c.l.b16 %v777
  %v1034 = vunpack.c.l.b16 %v778
  %v1035 = vunpack.c.l.b16 %v779
  %v1036 = vunpack.c.l.b16 %v780
  %v1037 = vunpack.c.l.b16 %v781
  %v1038 = vunpack.c.l.b16 %v782
  %v1039 = vunpack.c.l.b16 %v783
  %v1040 = vunpack.c.l.b16 %v784
  %v1041 = vunpack.c.l.b16 %v785
  %v1042 = vunpack.c.l.b16 %v786
  %v1043 = vunpack.c.l.b16 %v787
  %v1044 = vunpack.c.l.b16 %v788
  %v1045 = vunpack.c.l.b16 %v789
  %v1046 = vunpack.c.l.b16 %v790
  %v1047 = vpack.c.b16 %v920, %v919
  %v1048 = vpack.c.b16 %v922, %v921
  %v1049 = vpack.c.b16 %v924, %v923
  %v1050 = vpack.c.b16 %v926, %v925
  %v1051 = vpack.c.b16 %v928, %v927
  %v1052 = vpack.c.b16 %v930, %v929
  %v1053 = vpack.c.b16 %v932, %v931
  %v1054 = vpack.c.b16 %v934, %v933
  %v1055 = vpack.c.b16 %v936, %v935
  %v1056 = vpack.c.b16 %v938, %v937
  %v1057 = vpack.c.b16 %v940, %v939
  %v1058 = vpack.c.b16 %v942, %v941
  %v1059 = vpack.c.b16 %v944, %v943
  %v1060 = vpack.c.b16 %v946, %v945
  %v1061 = vpack.c.b16 %v948, %v947
  %v1062 = vpack.c.b16 %v950, %v949
  %v1063 = vpack.c.b16 %v952, %v951
  %v1064 = vpack.c.b16 %v954, %v953
  %v1065 = vpack.c.b16 %v956, %v955
  %v1066 = vpack.c.b16 %v958, %v957
  %v1067 = vpack.c.b16 %v960, %v959
  %v1068 = vpack.c.b16 %v962, %v961
  %v1069 = vpack.c.b16 %v964, %v963
  %v1070 = vpack.c.b16 %v966, %v965
  %v1071 = vpack.c.b16 %v968, %v967
  %v1072 = vpack.c.b16 %v970, %v969
  %v1073 = vpack.c.b16 %v972, %v971
  %v1074 = vpack.c.b16 %v974, %v973
  %v1075 = vpack.c.b16 %v976, %v975
  %v1076 = vpack.c.b16 %v978, %v977
  %v1077 = vpack.c.b16 %v980, %v979
  %v1078 = vpack.c.b16 %v982, %v981
  %v1079 = vpack.c.b16 %v984, %v983
  %v1080 = vpack.c.b16 %v986, %v985
  %v1081 = vpack.c.b16 %v988, %v987
  %v1082 = vpack.c.b16 %v990, %v989
  %v1083 = vpack.c.b16 %v992, %v991
  %v1084 = vpack.c.b16 %v994, %v993
  %v1085 = vpack.c.b16 %v996, %v995
  %v1086 = vpack.c.b16 %v998, %v997
  %v1087 = vpack.c.b16 %v1000, %v999
  %v1088 = vpack.c.b16 %v1002, %v1001
  %v1089 = vpack.c.b16 %v1004, %v1003
  %v1090 = vpack.c.b16 %v1006, %v1005
  %v1091 = vpack.c.b16 %v1008, %v1007
  %v1092 = vpack.c.b16 %v1010, %v1009
  %v1093 = vpack.c.b16 %v1012, %v1011
  %v1094 = vpack.c.b16 %v1014, %v1013
  %v1095 = vpack.c.b16 %v1016, %v1015
  %v1096 = vpack.c.b16 %v1018, %v1017
  %v1097 = vpack.c.b16 %v1020, %v1019
  %v1098 = vpack.c.b16 %v1022, %v1021
  %v1099 = vpack.c.b16 %v1024, %v1023
  %v1100 = vpack.c.b16 %v1026, %v1025
  %v1101 = vpack.c.b16 %v1028, %v1027
  %v1102 = vpack.c.b16 %v1030, %v1029
  %v1103 = vpack.c.b16 %v1032, %v1031
  %v1104 = vpack.c.b16 %v1034, %v1033
  %v1105 = vpack.c.b16 %v1036, %v1035
  %v1106 = vpack.c.b16 %v1038, %v1037
  %v1107 = vpack.c.b16 %v1040, %v1039
  %v1108 = vpack.c.b16 %v1042, %v1041
  %v1109 = vpack.c.b16 %v1044, %v1043
  %v1110 = vpack.c.b16 %v1046, %v1045
  %1175 = vmatprep.subr.bf16.mxu0 0
  %1176 = vmatpush1.bf16.msra.mxu0 %v1047
  %1177 = vmatprep.subr.bf16.mxu0 0
  %1178 = vmatpush1.bf16.msra.mxu0 %v1048
  %1179 = vmatprep.subr.bf16.mxu0 0
  %1180 = vmatpush1.bf16.msra.mxu0 %v1049
  %1181 = vmatprep.subr.bf16.mxu0 0
  %1182 = vmatpush1.bf16.msra.mxu0 %v1050
  %1183 = vmatprep.subr.bf16.mxu0 0
  %1184 = vmatpush1.bf16.msra.mxu0 %v1051
  %1185 = vmatprep.subr.bf16.mxu0 0
  %1186 = vmatpush1.bf16.msra.mxu0 %v1052
  %1187 = vmatprep.subr.bf16.mxu0 0
  %1188 = vmatpush1.bf16.msra.mxu0 %v1053
  %1189 = vmatprep.subr.bf16.mxu0 0
  %1190 = vmatpush1.bf16.msra.mxu0 %v1054
  %1191 = vmatprep.subr.bf16.mxu0 0
  %1192 = vmatpush1.bf16.msra.mxu0 %v1055
  %1193 = vmatprep.subr.bf16.mxu0 0
  %1194 = vmatpush1.bf16.msra.mxu0 %v1056
  %1195 = vmatprep.subr.bf16.mxu0 0
  %1196 = vmatpush1.bf16.msra.mxu0 %v1057
  %1197 = vmatprep.subr.bf16.mxu0 0
  %1198 = vmatpush1.bf16.msra.mxu0 %v1058
  %1199 = vmatprep.subr.bf16.mxu0 0
  %1200 = vmatpush1.bf16.msra.mxu0 %v1059
  %1201 = vmatprep.subr.bf16.mxu0 0
  %1202 = vmatpush1.bf16.msra.mxu0 %v1060
  %1203 = vmatprep.subr.bf16.mxu0 0
  %1204 = vmatpush1.bf16.msra.mxu0 %v1061
  %1205 = vmatprep.subr.bf16.mxu0 0
  %1206 = vmatpush1.bf16.msra.mxu0 %v1062
  %1207 = vmatprep.mubr.bf16.mxu0 %v464
  %1208 = vmatmul.mubr.bf16.gmra.mrb[0].mxu0 %v463
  %v1209 = vpop.f32.mrb[0].mxu0
  %v1210 = vadd.f32 0.0, %v1209
  %v1211 = vpop.f32.mrb[0].mxu0
  %v1212 = vpop.f32.mrb[0].mxu0
  %v1213 = vadd.f32 0.0, %v1212
  %v1214 = vpop.f32.mrb[0].mxu0
  %1215 = vdwg.mxu0
  %1216 = vmatprep.subr.bf16.mxu0 0
  %1217 = vmatpush1.bf16.msra.mxu0 %v1063
  %1218 = vmatprep.subr.bf16.mxu0 0
  %1219 = vmatpush1.bf16.msra.mxu0 %v1064
  %1220 = vmatprep.subr.bf16.mxu0 0
  %1221 = vmatpush1.bf16.msra.mxu0 %v1065
  %1222 = vmatprep.subr.bf16.mxu0 0
  %1223 = vmatpush1.bf16.msra.mxu0 %v1066
  %1224 = vmatprep.subr.bf16.mxu0 0
  %1225 = vmatpush1.bf16.msra.mxu0 %v1067
  %1226 = vmatprep.subr.bf16.mxu0 0
  %1227 = vmatpush1.bf16.msra.mxu0 %v1068
  %1228 = vmatprep.subr.bf16.mxu0 0
  %1229 = vmatpush1.bf16.msra.mxu0 %v1069
  %1230 = vmatprep.subr.bf16.mxu0 0
  %1231 = vmatpush1.bf16.msra.mxu0 %v1070
  %1232 = vmatprep.subr.bf16.mxu0 0
  %1233 = vmatpush1.bf16.msra.mxu0 %v1071
  %1234 = vmatprep.subr.bf16.mxu0 0
  %1235 = vmatpush1.bf16.msra.mxu0 %v1072
  %1236 = vmatprep.subr.bf16.mxu0 0
  %1237 = vmatpush1.bf16.msra.mxu0 %v1073
  %1238 = vmatprep.subr.bf16.mxu0 0
  %1239 = vmatpush1.bf16.msra.mxu0 %v1074
  %1240 = vmatprep.subr.bf16.mxu0 0
  %1241 = vmatpush1.bf16.msra.mxu0 %v1075
  %1242 = vmatprep.subr.bf16.mxu0 0
  %1243 = vmatpush1.bf16.msra.mxu0 %v1076
  %1244 = vmatprep.subr.bf16.mxu0 0
  %1245 = vmatpush1.bf16.msra.mxu0 %v1077
  %1246 = vmatprep.subr.bf16.mxu0 0
  %1247 = vmatpush1.bf16.msra.mxu0 %v1078
  %1248 = vmatprep.mubr.bf16.mxu0 %v466
  %1249 = vmatmul.mubr.bf16.gmra.mrb[0].mxu0 %v465
  %v1250 = vpop.f32.mrb[0].mxu0
  %v1251 = vadd.f32 %v1210, %v1250
  %v1252 = vpop.f32.mrb[0].mxu0
  %v1253 = vpop.f32.mrb[0].mxu0
  %v1254 = vadd.f32 %v1213, %v1253
  %v1255 = vpop.f32.mrb[0].mxu0
  %1256 = vdwg.mxu0
  %1257 = vmatprep.subr.bf16.mxu0 0
  %1258 = vmatpush1.bf16.msra.mxu0 %v1079
  %1259 = vmatprep.subr.bf16.mxu0 0
  %1260 = vmatpush1.bf16.msra.mxu0 %v1080
  %1261 = vmatprep.subr.bf16.mxu0 0
  %1262 = vmatpush1.bf16.msra.mxu0 %v1081
  %1263 = vmatprep.subr.bf16.mxu0 0
  %1264 = vmatpush1.bf16.msra.mxu0 %v1082
  %1265 = vmatprep.subr.bf16.mxu0 0
  %1266 = vmatpush1.bf16.msra.mxu0 %v1083
  %1267 = vmatprep.subr.bf16.mxu0 0
  %1268 = vmatpush1.bf16.msra.mxu0 %v1084
  %1269 = vmatprep.subr.bf16.mxu0 0
  %1270 = vmatpush1.bf16.msra.mxu0 %v1085
  %1271 = vmatprep.subr.bf16.mxu0 0
  %1272 = vmatpush1.bf16.msra.mxu0 %v1086
  %1273 = vmatprep.subr.bf16.mxu0 0
  %1274 = vmatpush1.bf16.msra.mxu0 %v1087
  %1275 = vmatprep.subr.bf16.mxu0 0
  %1276 = vmatpush1.bf16.msra.mxu0 %v1088
  %1277 = vmatprep.subr.bf16.mxu0 0
  %1278 = vmatpush1.bf16.msra.mxu0 %v1089
  %1279 = vmatprep.subr.bf16.mxu0 0
  %1280 = vmatpush1.bf16.msra.mxu0 %v1090
  %1281 = vmatprep.subr.bf16.mxu0 0
  %1282 = vmatpush1.bf16.msra.mxu0 %v1091
  %1283 = vmatprep.subr.bf16.mxu0 0
  %1284 = vmatpush1.bf16.msra.mxu0 %v1092
  %1285 = vmatprep.subr.bf16.mxu0 0
  %1286 = vmatpush1.bf16.msra.mxu0 %v1093
  %1287 = vmatprep.subr.bf16.mxu0 0
  %1288 = vmatpush1.bf16.msra.mxu0 %v1094
  %1289 = vmatprep.mubr.bf16.mxu0 %v468
  %1290 = vmatmul.mubr.bf16.gmra.mrb[0].mxu0 %v467
  %v1291 = vpop.f32.mrb[0].mxu0
  %v1292 = vadd.f32 %v1251, %v1291
  %v1293 = vpop.f32.mrb[0].mxu0
  %v1294 = vpop.f32.mrb[0].mxu0
  %v1295 = vadd.f32 %v1254, %v1294
  %v1296 = vpop.f32.mrb[0].mxu0
  %1297 = vdwg.mxu0
  %1298 = vmatprep.subr.bf16.mxu0 0
  %1299 = vmatpush1.bf16.msra.mxu0 %v1095
  %1300 = vmatprep.subr.bf16.mxu0 0
  %1301 = vmatpush1.bf16.msra.mxu0 %v1096
  %1302 = vmatprep.subr.bf16.mxu0 0
  %1303 = vmatpush1.bf16.msra.mxu0 %v1097
  %1304 = vmatprep.subr.bf16.mxu0 0
  %1305 = vmatpush1.bf16.msra.mxu0 %v1098
  %1306 = vmatprep.subr.bf16.mxu0 0
  %1307 = vmatpush1.bf16.msra.mxu0 %v1099
  %1308 = vmatprep.subr.bf16.mxu0 0
  %1309 = vmatpush1.bf16.msra.mxu0 %v1100
  %1310 = vmatprep.subr.bf16.mxu0 0
  %1311 = vmatpush1.bf16.msra.mxu0 %v1101
  %1312 = vmatprep.subr.bf16.mxu0 0
  %1313 = vmatpush1.bf16.msra.mxu0 %v1102
  %1314 = vmatprep.subr.bf16.mxu0 0
  %1315 = vmatpush1.bf16.msra.mxu0 %v1103
  %1316 = vmatprep.subr.bf16.mxu0 0
  %1317 = vmatpush1.bf16.msra.mxu0 %v1104
  %1318 = vmatprep.subr.bf16.mxu0 0
  %1319 = vmatpush1.bf16.msra.mxu0 %v1105
  %1320 = vmatprep.subr.bf16.mxu0 0
  %1321 = vmatpush1.bf16.msra.mxu0 %v1106
  %1322 = vmatprep.subr.bf16.mxu0 0
  %1323 = vmatpush1.bf16.msra.mxu0 %v1107
  %1324 = vmatprep.subr.bf16.mxu0 0
  %1325 = vmatpush1.bf16.msra.mxu0 %v1108
  %1326 = vmatprep.subr.bf16.mxu0 0
  %1327 = vmatpush1.bf16.msra.mxu0 %v1109
  %1328 = vmatprep.subr.bf16.mxu0 0
  %1329 = vmatpush1.bf16.msra.mxu0 %v1110
  %1330 = vmatprep.mubr.bf16.mxu0 %v470
  %1331 = vmatmul.mubr.bf16.gmra.mrb[0].mxu0 %v469
  %v1332 = vpop.f32.mrb[0].mxu0
  %v1333 = vadd.f32 %v1292, %v1332
  %v1334 = vpop.f32.mrb[0].mxu0
  %v1335 = vpop.f32.mrb[0].mxu0
  %v1336 = vadd.f32 %v1295, %v1335
  %v1337 = vpop.f32.mrb[0].mxu0
  %1338 = vdwg.mxu0
  %1340 = vset.pattern.permute.xlu0 0
  %1341 = vperm.xlu0 %1340, %v1333
  %v1342 = vpop.permute.xlu0 %1341
  %1345 = vset.pattern.permute.xlu0 0
  %1346 = vperm.xlu0 %1345, %v1336
  %v1347 = vpop.permute.xlu0 %1346
  %v1349 = vlaneseq
  %v1350 = vshrl.u32 %v1349, 7
  %v1351 = vsub.s32 0, %v1350
  %v1352 = vrot.slane %v658, %v1351
  %v1353 = vadd.f32 %v1342, %v1352
  %v1354 = vadd.f32 %v1347, %v1352
  %vm1355 = vcmp.gt.f32.partialorder %v1353, 0.0
  %vm1356 = vcmp.gt.f32.partialorder %v1354, 0.0
  %v1357 = vmul.f32 %v1353, 0.2
  %v1358 = vmul.f32 %v1354, 0.2
  %v1359 = vsel %vm1355, %v1353, %v1357
  %v1360 = vsel %vm1356, %v1354, %v1358
  %v1361 = vsel %vm90, %v1359, -1e+30
  %v1362 = vsel %vm91, %v1360, -1e+30
  %vm1363 = vcmask 130048
  %v1364 = vsel %vm1363, %v1361, -inf
  %1365 = vmax.xlane.f32.xlu0 %v1364
  %v1366 = vpop.xlane.xlu0 %1365
  %v1367 = vsel %vm1363, %v1362, -inf
  %1368 = vmax.xlane.f32.xlu0 %v1367
  %v1369 = vpop.xlane.xlu0 %1368
  %v1370 = vsub.f32 %v1361, %v1366
  %v1371 = vsub.f32 %v1362, %v1369
  %v1372 = vmul.f32 %v1370, 1.442695
  %v1373 = vpow.pop %v1372
  %v1374 = vmul.f32 %v1371, 1.442695
  %v1375 = vpow.pop %v1374
  %v1376 = vsel %vm1363, %v1373, 0.0
  %1377 = vadd.xlane.f32.xlu0 %v1376
  %v1378 = vpop.xlane.xlu0 %1377
  %v1379 = vsel %vm1363, %v1375, 0.0
  %1380 = vadd.xlane.f32.xlu0 %v1379
  %v1381 = vpop.xlane.xlu0 %1380
  %v1382 = vpack.c.bf16 %v1375, %v1373
  %v1384 = vsel %vm1363, %v1382, 0
  %1386 = vmatprep.subr.bf16.mxu0 0
  %1387 = vmatpush1.bf16.msra.mxu0 %v463
  %1388 = vmatprep.subr.bf16.mxu0 0
  %1389 = vmatpush1.bf16.msra.mxu0 0
  %1390 = vmatprep.subr.bf16.mxu0 0
  %1391 = vmatpush1.bf16.msra.mxu0 0
  %1392 = vmatprep.subr.bf16.mxu0 0
  %1393 = vmatpush1.bf16.msra.mxu0 0
  %1394 = vmatprep.subr.bf16.mxu0 0
  %1395 = vmatpush1.bf16.msra.mxu0 0
  %1396 = vmatprep.subr.bf16.mxu0 0
  %1397 = vmatpush1.bf16.msra.mxu0 0
  %1398 = vmatprep.subr.bf16.mxu0 0
  %1399 = vmatpush1.bf16.msra.mxu0 0
  %1400 = vmatprep.subr.bf16.mxu0 0
  %1401 = vmatpush1.bf16.msra.mxu0 0
  %1402 = vmatprep.subr.bf16.mxu0 0
  %1403 = vmatpush1.bf16.msra.mxu0 0
  %1404 = vmatprep.subr.bf16.mxu0 0
  %1405 = vmatpush1.bf16.msra.mxu0 0
  %1406 = vmatprep.subr.bf16.mxu0 0
  %1407 = vmatpush1.bf16.msra.mxu0 0
  %1408 = vmatprep.subr.bf16.mxu0 0
  %1409 = vmatpush1.bf16.msra.mxu0 0
  %1410 = vmatprep.subr.bf16.mxu0 0
  %1411 = vmatpush1.bf16.msra.mxu0 0
  %1412 = vmatprep.subr.bf16.mxu0 0
  %1413 = vmatpush1.bf16.msra.mxu0 0
  %1414 = vmatprep.subr.bf16.mxu0 0
  %1415 = vmatpush1.bf16.msra.mxu0 0
  %1416 = vmatprep.subr.bf16.mxu0 0
  %1417 = vmatpush1.bf16.msra.mxu0 0
  %1418 = vmatprep.mubr.bf16.mxu0 0
  %1419 = vmatmul.mubr.bf16.gmra.mrb[0].mxu0 %v1384
  %v1420 = vpop.f32.mrb[0].mxu0
  %v1421 = vadd.f32 0.0, %v1420
  %v1422 = vpop.f32.mrb[0].mxu0
  %v1423 = vpop.f32.mrb[0].mxu0
  %v1424 = vadd.f32 0.0, %v1423
  %v1425 = vpop.f32.mrb[0].mxu0
  %1426 = vdwg.mxu0
  %v1427 = vrcp.pop %v1378
  %v1428 = vrcp.pop %v1381
  %v1429 = vmul.f32 %v1421, %v1427
  %v1430 = vmul.f32 %v1424, %v1428
  %v1431 = vadd.f32 %v1429, 0.0
  %v1432 = vadd.f32 %v1430, 0.0
  %1433 = vset.pattern.permute.xlu0 1
  %1434 = vperm.xlu0 %1433, %v1333
  %v1435 = vpop.permute.xlu0 %1434
  %1437 = vset.pattern.permute.xlu0 1
  %1438 = vperm.xlu0 %1437, %v1336
  %v1439 = vpop.permute.xlu0 %1438
  %v1441 = vlaneseq
  %v1442 = vshrl.u32 %v1441, 7
  %v1443 = vsub.s32 1, %v1442
  %v1444 = vrot.slane %v658, %v1443
  %v1445 = vadd.f32 %v1435, %v1444
  %v1446 = vadd.f32 %v1439, %v1444
  %vm1447 = vcmp.gt.f32.partialorder %v1445, 0.0
  %vm1448 = vcmp.gt.f32.partialorder %v1446, 0.0
  %v1449 = vmul.f32 %v1445, 0.2
  %v1450 = vmul.f32 %v1446, 0.2
  %v1451 = vsel %vm1447, %v1445, %v1449
  %v1452 = vsel %vm1448, %v1446, %v1450
  %v1453 = vsel %vm90, %v1451, -1e+30
  %v1454 = vsel %vm91, %v1452, -1e+30
  %v1455 = vsel %vm1363, %v1453, -inf
  %1456 = vmax.xlane.f32.xlu0 %v1455
  %v1457 = vpop.xlane.xlu0 %1456
  %v1458 = vsel %vm1363, %v1454, -inf
  %1459 = vmax.xlane.f32.xlu0 %v1458
  %v1460 = vpop.xlane.xlu0 %1459
  %v1461 = vsub.f32 %v1453, %v1457
  %v1462 = vsub.f32 %v1454, %v1460
  %v1463 = vmul.f32 %v1461, 1.442695
  %v1464 = vpow.pop %v1463
  %v1465 = vmul.f32 %v1462, 1.442695
  %v1466 = vpow.pop %v1465
  %v1467 = vsel %vm1363, %v1464, 0.0
  %1468 = vadd.xlane.f32.xlu0 %v1467
  %v1469 = vpop.xlane.xlu0 %1468
  %v1470 = vsel %vm1363, %v1466, 0.0
  %1471 = vadd.xlane.f32.xlu0 %v1470
  %v1472 = vpop.xlane.xlu0 %1471
  %v1473 = vpack.c.bf16 %v1466, %v1464
  %v1475 = vsel %vm1363, %v1473, 0
  %1477 = vmatprep.subr.bf16.mxu0 0
  %1478 = vmatpush1.bf16.msra.mxu0 %v464
  %1479 = vmatprep.subr.bf16.mxu0 0
  %1480 = vmatpush1.bf16.msra.mxu0 0
  %1481 = vmatprep.subr.bf16.mxu0 0
  %1482 = vmatpush1.bf16.msra.mxu0 0
  %1483 = vmatprep.subr.bf16.mxu0 0
  %1484 = vmatpush1.bf16.msra.mxu0 0
  %1485 = vmatprep.subr.bf16.mxu0 0
  %1486 = vmatpush1.bf16.msra.mxu0 0
  %1487 = vmatprep.subr.bf16.mxu0 0
  %1488 = vmatpush1.bf16.msra.mxu0 0
  %1489 = vmatprep.subr.bf16.mxu0 0
  %1490 = vmatpush1.bf16.msra.mxu0 0
  %1491 = vmatprep.subr.bf16.mxu0 0
  %1492 = vmatpush1.bf16.msra.mxu0 0
  %1493 = vmatprep.subr.bf16.mxu0 0
  %1494 = vmatpush1.bf16.msra.mxu0 0
  %1495 = vmatprep.subr.bf16.mxu0 0
  %1496 = vmatpush1.bf16.msra.mxu0 0
  %1497 = vmatprep.subr.bf16.mxu0 0
  %1498 = vmatpush1.bf16.msra.mxu0 0
  %1499 = vmatprep.subr.bf16.mxu0 0
  %1500 = vmatpush1.bf16.msra.mxu0 0
  %1501 = vmatprep.subr.bf16.mxu0 0
  %1502 = vmatpush1.bf16.msra.mxu0 0
  %1503 = vmatprep.subr.bf16.mxu0 0
  %1504 = vmatpush1.bf16.msra.mxu0 0
  %1505 = vmatprep.subr.bf16.mxu0 0
  %1506 = vmatpush1.bf16.msra.mxu0 0
  %1507 = vmatprep.subr.bf16.mxu0 0
  %1508 = vmatpush1.bf16.msra.mxu0 0
  %1509 = vmatprep.mubr.bf16.mxu0 0
  %1510 = vmatmul.mubr.bf16.gmra.mrb[0].mxu0 %v1475
  %v1511 = vpop.f32.mrb[0].mxu0
  %v1512 = vadd.f32 0.0, %v1511
  %v1513 = vpop.f32.mrb[0].mxu0
  %v1514 = vpop.f32.mrb[0].mxu0
  %v1515 = vadd.f32 0.0, %v1514
  %v1516 = vpop.f32.mrb[0].mxu0
  %1517 = vdwg.mxu0
  %v1518 = vrcp.pop %v1469
  %v1519 = vrcp.pop %v1472
  %v1520 = vmul.f32 %v1512, %v1518
  %v1521 = vmul.f32 %v1515, %v1519
  %v1522 = vadd.f32 %v1431, %v1520
  %v1523 = vadd.f32 %v1432, %v1521
  %v1524 = vmul.f32 %v1522, 0.5
  %v1525 = vmul.f32 %v1523, 0.5
  %v1526 = vld [vmem:[%s5] sm:$0x1]
  %v1528 = vlaneseq
  %v1529 = vshrl.u32 %v1528, 7
  %v1530 = vsub.s32 0, %v1529
  %v1531 = vrot.slane %v1526, %v1530
  %v1533 = vadd.f32 %v1524, %v1531
  %v1534 = vadd.f32 %v1525, %v1531
  %v1535 = vmax.f32 %v1533, 0.0
  %v1536 = vmax.f32 %v1534, 0.0
  %1537 = vset.pattern.permute.xlu0 2
  %1538 = vperm.xlu0 %1537, %v1333
  %v1539 = vpop.permute.xlu0 %1538
  %1541 = vset.pattern.permute.xlu0 2
  %1542 = vperm.xlu0 %1541, %v1336
  %v1543 = vpop.permute.xlu0 %1542
  %v1545 = vlaneseq
  %v1546 = vshrl.u32 %v1545, 7
  %v1547 = vsub.s32 2, %v1546
  %v1548 = vrot.slane %v658, %v1547
  %v1549 = vadd.f32 %v1539, %v1548
  %v1550 = vadd.f32 %v1543, %v1548
  %vm1551 = vcmp.gt.f32.partialorder %v1549, 0.0
  %vm1552 = vcmp.gt.f32.partialorder %v1550, 0.0
  %v1553 = vmul.f32 %v1549, 0.2
  %v1554 = vmul.f32 %v1550, 0.2
  %v1555 = vsel %vm1551, %v1549, %v1553
  %v1556 = vsel %vm1552, %v1550, %v1554
  %v1557 = vsel %vm90, %v1555, -1e+30
  %v1558 = vsel %vm91, %v1556, -1e+30
  %v1559 = vsel %vm1363, %v1557, -inf
  %1560 = vmax.xlane.f32.xlu0 %v1559
  %v1561 = vpop.xlane.xlu0 %1560
  %v1562 = vsel %vm1363, %v1558, -inf
  %1563 = vmax.xlane.f32.xlu0 %v1562
  %v1564 = vpop.xlane.xlu0 %1563
  %v1565 = vsub.f32 %v1557, %v1561
  %v1566 = vsub.f32 %v1558, %v1564
  %v1567 = vmul.f32 %v1565, 1.442695
  %v1568 = vpow.pop %v1567
  %v1569 = vmul.f32 %v1566, 1.442695
  %v1570 = vpow.pop %v1569
  %v1571 = vsel %vm1363, %v1568, 0.0
  %1572 = vadd.xlane.f32.xlu0 %v1571
  %v1573 = vpop.xlane.xlu0 %1572
  %v1574 = vsel %vm1363, %v1570, 0.0
  %1575 = vadd.xlane.f32.xlu0 %v1574
  %v1576 = vpop.xlane.xlu0 %1575
  %v1577 = vpack.c.bf16 %v1570, %v1568
  %v1579 = vsel %vm1363, %v1577, 0
  %1581 = vmatprep.subr.bf16.mxu0 0
  %1582 = vmatpush1.bf16.msra.mxu0 %v465
  %1583 = vmatprep.subr.bf16.mxu0 0
  %1584 = vmatpush1.bf16.msra.mxu0 0
  %1585 = vmatprep.subr.bf16.mxu0 0
  %1586 = vmatpush1.bf16.msra.mxu0 0
  %1587 = vmatprep.subr.bf16.mxu0 0
  %1588 = vmatpush1.bf16.msra.mxu0 0
  %1589 = vmatprep.subr.bf16.mxu0 0
  %1590 = vmatpush1.bf16.msra.mxu0 0
  %1591 = vmatprep.subr.bf16.mxu0 0
  %1592 = vmatpush1.bf16.msra.mxu0 0
  %1593 = vmatprep.subr.bf16.mxu0 0
  %1594 = vmatpush1.bf16.msra.mxu0 0
  %1595 = vmatprep.subr.bf16.mxu0 0
  %1596 = vmatpush1.bf16.msra.mxu0 0
  %1597 = vmatprep.subr.bf16.mxu0 0
  %1598 = vmatpush1.bf16.msra.mxu0 0
  %1599 = vmatprep.subr.bf16.mxu0 0
  %1600 = vmatpush1.bf16.msra.mxu0 0
  %1601 = vmatprep.subr.bf16.mxu0 0
  %1602 = vmatpush1.bf16.msra.mxu0 0
  %1603 = vmatprep.subr.bf16.mxu0 0
  %1604 = vmatpush1.bf16.msra.mxu0 0
  %1605 = vmatprep.subr.bf16.mxu0 0
  %1606 = vmatpush1.bf16.msra.mxu0 0
  %1607 = vmatprep.subr.bf16.mxu0 0
  %1608 = vmatpush1.bf16.msra.mxu0 0
  %1609 = vmatprep.subr.bf16.mxu0 0
  %1610 = vmatpush1.bf16.msra.mxu0 0
  %1611 = vmatprep.subr.bf16.mxu0 0
  %1612 = vmatpush1.bf16.msra.mxu0 0
  %1613 = vmatprep.mubr.bf16.mxu0 0
  %1614 = vmatmul.mubr.bf16.gmra.mrb[0].mxu0 %v1579
  %v1615 = vpop.f32.mrb[0].mxu0
  %v1616 = vadd.f32 0.0, %v1615
  %v1617 = vpop.f32.mrb[0].mxu0
  %v1618 = vpop.f32.mrb[0].mxu0
  %v1619 = vadd.f32 0.0, %v1618
  %v1620 = vpop.f32.mrb[0].mxu0
  %1621 = vdwg.mxu0
  %v1622 = vrcp.pop %v1573
  %v1623 = vrcp.pop %v1576
  %v1624 = vmul.f32 %v1616, %v1622
  %v1625 = vmul.f32 %v1619, %v1623
  %v1626 = vadd.f32 %v1624, 0.0
  %v1627 = vadd.f32 %v1625, 0.0
  %1628 = vset.pattern.permute.xlu0 3
  %1629 = vperm.xlu0 %1628, %v1333
  %v1630 = vpop.permute.xlu0 %1629
  %1632 = vset.pattern.permute.xlu0 3
  %1633 = vperm.xlu0 %1632, %v1336
  %v1634 = vpop.permute.xlu0 %1633
  %v1636 = vlaneseq
  %v1637 = vshrl.u32 %v1636, 7
  %v1638 = vsub.s32 3, %v1637
  %v1639 = vrot.slane %v658, %v1638
  %v1640 = vadd.f32 %v1630, %v1639
  %v1641 = vadd.f32 %v1634, %v1639
  %vm1642 = vcmp.gt.f32.partialorder %v1640, 0.0
  %vm1643 = vcmp.gt.f32.partialorder %v1641, 0.0
  %v1644 = vmul.f32 %v1640, 0.2
  %v1645 = vmul.f32 %v1641, 0.2
  %v1646 = vsel %vm1642, %v1640, %v1644
  %v1647 = vsel %vm1643, %v1641, %v1645
  %v1648 = vsel %vm90, %v1646, -1e+30
  %v1649 = vsel %vm91, %v1647, -1e+30
  %v1650 = vsel %vm1363, %v1648, -inf
  %1651 = vmax.xlane.f32.xlu0 %v1650
  %v1652 = vpop.xlane.xlu0 %1651
  %v1653 = vsel %vm1363, %v1649, -inf
  %1654 = vmax.xlane.f32.xlu0 %v1653
  %v1655 = vpop.xlane.xlu0 %1654
  %v1656 = vsub.f32 %v1648, %v1652
  %v1657 = vsub.f32 %v1649, %v1655
  %v1658 = vmul.f32 %v1656, 1.442695
  %v1659 = vpow.pop %v1658
  %v1660 = vmul.f32 %v1657, 1.442695
  %v1661 = vpow.pop %v1660
  %v1662 = vsel %vm1363, %v1659, 0.0
  %1663 = vadd.xlane.f32.xlu0 %v1662
  %v1664 = vpop.xlane.xlu0 %1663
  %v1665 = vsel %vm1363, %v1661, 0.0
  %1666 = vadd.xlane.f32.xlu0 %v1665
  %v1667 = vpop.xlane.xlu0 %1666
  %v1668 = vpack.c.bf16 %v1661, %v1659
  %v1670 = vsel %vm1363, %v1668, 0
  %1672 = vmatprep.subr.bf16.mxu0 0
  %1673 = vmatpush1.bf16.msra.mxu0 %v466
  %1674 = vmatprep.subr.bf16.mxu0 0
  %1675 = vmatpush1.bf16.msra.mxu0 0
  %1676 = vmatprep.subr.bf16.mxu0 0
  %1677 = vmatpush1.bf16.msra.mxu0 0
  %1678 = vmatprep.subr.bf16.mxu0 0
  %1679 = vmatpush1.bf16.msra.mxu0 0
  %1680 = vmatprep.subr.bf16.mxu0 0
  %1681 = vmatpush1.bf16.msra.mxu0 0
  %1682 = vmatprep.subr.bf16.mxu0 0
  %1683 = vmatpush1.bf16.msra.mxu0 0
  %1684 = vmatprep.subr.bf16.mxu0 0
  %1685 = vmatpush1.bf16.msra.mxu0 0
  %1686 = vmatprep.subr.bf16.mxu0 0
  %1687 = vmatpush1.bf16.msra.mxu0 0
  %1688 = vmatprep.subr.bf16.mxu0 0
  %1689 = vmatpush1.bf16.msra.mxu0 0
  %1690 = vmatprep.subr.bf16.mxu0 0
  %1691 = vmatpush1.bf16.msra.mxu0 0
  %1692 = vmatprep.subr.bf16.mxu0 0
  %1693 = vmatpush1.bf16.msra.mxu0 0
  %1694 = vmatprep.subr.bf16.mxu0 0
  %1695 = vmatpush1.bf16.msra.mxu0 0
  %1696 = vmatprep.subr.bf16.mxu0 0
  %1697 = vmatpush1.bf16.msra.mxu0 0
  %1698 = vmatprep.subr.bf16.mxu0 0
  %1699 = vmatpush1.bf16.msra.mxu0 0
  %1700 = vmatprep.subr.bf16.mxu0 0
  %1701 = vmatpush1.bf16.msra.mxu0 0
  %1702 = vmatprep.subr.bf16.mxu0 0
  %1703 = vmatpush1.bf16.msra.mxu0 0
  %1704 = vmatprep.mubr.bf16.mxu0 0
  %1705 = vmatmul.mubr.bf16.gmra.mrb[0].mxu0 %v1670
  %v1706 = vpop.f32.mrb[0].mxu0
  %v1707 = vadd.f32 0.0, %v1706
  %v1708 = vpop.f32.mrb[0].mxu0
  %v1709 = vpop.f32.mrb[0].mxu0
  %v1710 = vadd.f32 0.0, %v1709
  %v1711 = vpop.f32.mrb[0].mxu0
  %1712 = vdwg.mxu0
  %v1713 = vrcp.pop %v1664
  %v1714 = vrcp.pop %v1667
  %v1715 = vmul.f32 %v1707, %v1713
  %v1716 = vmul.f32 %v1710, %v1714
  %v1717 = vadd.f32 %v1626, %v1715
  %v1718 = vadd.f32 %v1627, %v1716
  %v1719 = vmul.f32 %v1717, 0.5
  %v1720 = vmul.f32 %v1718, 0.5
  %v1721 = vld [vmem:[%s5 + $0x1] sm:$0x1]
  %v1723 = vlaneseq
  %v1724 = vshrl.u32 %v1723, 7
  %v1725 = vsub.s32 0, %v1724
  %v1726 = vrot.slane %v1721, %v1725
  %v1728 = vadd.f32 %v1719, %v1726
  %v1729 = vadd.f32 %v1720, %v1726
  %v1730 = vmax.f32 %v1728, 0.0
  %v1731 = vmax.f32 %v1729, 0.0
  %1732 = vset.pattern.permute.xlu0 4
  %1733 = vperm.xlu0 %1732, %v1333
  %v1734 = vpop.permute.xlu0 %1733
  %1736 = vset.pattern.permute.xlu0 4
  %1737 = vperm.xlu0 %1736, %v1336
  %v1738 = vpop.permute.xlu0 %1737
  %v1740 = vlaneseq
  %v1741 = vshrl.u32 %v1740, 7
  %v1742 = vsub.s32 4, %v1741
  %v1743 = vrot.slane %v658, %v1742
  %v1744 = vadd.f32 %v1734, %v1743
  %v1745 = vadd.f32 %v1738, %v1743
  %vm1746 = vcmp.gt.f32.partialorder %v1744, 0.0
  %vm1747 = vcmp.gt.f32.partialorder %v1745, 0.0
  %v1748 = vmul.f32 %v1744, 0.2
  %v1749 = vmul.f32 %v1745, 0.2
  %v1750 = vsel %vm1746, %v1744, %v1748
  %v1751 = vsel %vm1747, %v1745, %v1749
  %v1752 = vsel %vm90, %v1750, -1e+30
  %v1753 = vsel %vm91, %v1751, -1e+30
  %v1754 = vsel %vm1363, %v1752, -inf
  %1755 = vmax.xlane.f32.xlu0 %v1754
  %v1756 = vpop.xlane.xlu0 %1755
  %v1757 = vsel %vm1363, %v1753, -inf
  %1758 = vmax.xlane.f32.xlu0 %v1757
  %v1759 = vpop.xlane.xlu0 %1758
  %v1760 = vsub.f32 %v1752, %v1756
  %v1761 = vsub.f32 %v1753, %v1759
  %v1762 = vmul.f32 %v1760, 1.442695
  %v1763 = vpow.pop %v1762
  %v1764 = vmul.f32 %v1761, 1.442695
  %v1765 = vpow.pop %v1764
  %v1766 = vsel %vm1363, %v1763, 0.0
  %1767 = vadd.xlane.f32.xlu0 %v1766
  %v1768 = vpop.xlane.xlu0 %1767
  %v1769 = vsel %vm1363, %v1765, 0.0
  %1770 = vadd.xlane.f32.xlu0 %v1769
  %v1771 = vpop.xlane.xlu0 %1770
  %v1772 = vpack.c.bf16 %v1765, %v1763
  %v1774 = vsel %vm1363, %v1772, 0
  %1776 = vmatprep.subr.bf16.mxu0 0
  %1777 = vmatpush1.bf16.msra.mxu0 %v467
  %1778 = vmatprep.subr.bf16.mxu0 0
  %1779 = vmatpush1.bf16.msra.mxu0 0
  %1780 = vmatprep.subr.bf16.mxu0 0
  %1781 = vmatpush1.bf16.msra.mxu0 0
  %1782 = vmatprep.subr.bf16.mxu0 0
  %1783 = vmatpush1.bf16.msra.mxu0 0
  %1784 = vmatprep.subr.bf16.mxu0 0
  %1785 = vmatpush1.bf16.msra.mxu0 0
  %1786 = vmatprep.subr.bf16.mxu0 0
  %1787 = vmatpush1.bf16.msra.mxu0 0
  %1788 = vmatprep.subr.bf16.mxu0 0
  %1789 = vmatpush1.bf16.msra.mxu0 0
  %1790 = vmatprep.subr.bf16.mxu0 0
  %1791 = vmatpush1.bf16.msra.mxu0 0
  %1792 = vmatprep.subr.bf16.mxu0 0
  %1793 = vmatpush1.bf16.msra.mxu0 0
  %1794 = vmatprep.subr.bf16.mxu0 0
  %1795 = vmatpush1.bf16.msra.mxu0 0
  %1796 = vmatprep.subr.bf16.mxu0 0
  %1797 = vmatpush1.bf16.msra.mxu0 0
  %1798 = vmatprep.subr.bf16.mxu0 0
  %1799 = vmatpush1.bf16.msra.mxu0 0
  %1800 = vmatprep.subr.bf16.mxu0 0
  %1801 = vmatpush1.bf16.msra.mxu0 0
  %1802 = vmatprep.subr.bf16.mxu0 0
  %1803 = vmatpush1.bf16.msra.mxu0 0
  %1804 = vmatprep.subr.bf16.mxu0 0
  %1805 = vmatpush1.bf16.msra.mxu0 0
  %1806 = vmatprep.subr.bf16.mxu0 0
  %1807 = vmatpush1.bf16.msra.mxu0 0
  %1808 = vmatprep.mubr.bf16.mxu0 0
  %1809 = vmatmul.mubr.bf16.gmra.mrb[0].mxu0 %v1774
  %v1810 = vpop.f32.mrb[0].mxu0
  %v1811 = vadd.f32 0.0, %v1810
  %v1812 = vpop.f32.mrb[0].mxu0
  %v1813 = vpop.f32.mrb[0].mxu0
  %v1814 = vadd.f32 0.0, %v1813
  %v1815 = vpop.f32.mrb[0].mxu0
  %1816 = vdwg.mxu0
  %v1817 = vrcp.pop %v1768
  %v1818 = vrcp.pop %v1771
  %v1819 = vmul.f32 %v1811, %v1817
  %v1820 = vmul.f32 %v1814, %v1818
  %v1821 = vadd.f32 %v1819, 0.0
  %v1822 = vadd.f32 %v1820, 0.0
  %1823 = vset.pattern.permute.xlu0 5
  %1824 = vperm.xlu0 %1823, %v1333
  %v1825 = vpop.permute.xlu0 %1824
  %1827 = vset.pattern.permute.xlu0 5
  %1828 = vperm.xlu0 %1827, %v1336
  %v1829 = vpop.permute.xlu0 %1828
  %v1831 = vlaneseq
  %v1832 = vshrl.u32 %v1831, 7
  %v1833 = vsub.s32 5, %v1832
  %v1834 = vrot.slane %v658, %v1833
  %v1835 = vadd.f32 %v1825, %v1834
  %v1836 = vadd.f32 %v1829, %v1834
  %vm1837 = vcmp.gt.f32.partialorder %v1835, 0.0
  %vm1838 = vcmp.gt.f32.partialorder %v1836, 0.0
  %v1839 = vmul.f32 %v1835, 0.2
  %v1840 = vmul.f32 %v1836, 0.2
  %v1841 = vsel %vm1837, %v1835, %v1839
  %v1842 = vsel %vm1838, %v1836, %v1840
  %v1843 = vsel %vm90, %v1841, -1e+30
  %v1844 = vsel %vm91, %v1842, -1e+30
  %v1845 = vsel %vm1363, %v1843, -inf
  %1846 = vmax.xlane.f32.xlu0 %v1845
  %v1847 = vpop.xlane.xlu0 %1846
  %v1848 = vsel %vm1363, %v1844, -inf
  %1849 = vmax.xlane.f32.xlu0 %v1848
  %v1850 = vpop.xlane.xlu0 %1849
  %v1851 = vsub.f32 %v1843, %v1847
  %v1852 = vsub.f32 %v1844, %v1850
  %v1853 = vmul.f32 %v1851, 1.442695
  %v1854 = vpow.pop %v1853
  %v1855 = vmul.f32 %v1852, 1.442695
  %v1856 = vpow.pop %v1855
  %v1857 = vsel %vm1363, %v1854, 0.0
  %1858 = vadd.xlane.f32.xlu0 %v1857
  %v1859 = vpop.xlane.xlu0 %1858
  %v1860 = vsel %vm1363, %v1856, 0.0
  %1861 = vadd.xlane.f32.xlu0 %v1860
  %v1862 = vpop.xlane.xlu0 %1861
  %v1863 = vpack.c.bf16 %v1856, %v1854
  %v1865 = vsel %vm1363, %v1863, 0
  %1867 = vmatprep.subr.bf16.mxu0 0
  %1868 = vmatpush1.bf16.msra.mxu0 %v468
  %1869 = vmatprep.subr.bf16.mxu0 0
  %1870 = vmatpush1.bf16.msra.mxu0 0
  %1871 = vmatprep.subr.bf16.mxu0 0
  %1872 = vmatpush1.bf16.msra.mxu0 0
  %1873 = vmatprep.subr.bf16.mxu0 0
  %1874 = vmatpush1.bf16.msra.mxu0 0
  %1875 = vmatprep.subr.bf16.mxu0 0
  %1876 = vmatpush1.bf16.msra.mxu0 0
  %1877 = vmatprep.subr.bf16.mxu0 0
  %1878 = vmatpush1.bf16.msra.mxu0 0
  %1879 = vmatprep.subr.bf16.mxu0 0
  %1880 = vmatpush1.bf16.msra.mxu0 0
  %1881 = vmatprep.subr.bf16.mxu0 0
  %1882 = vmatpush1.bf16.msra.mxu0 0
  %1883 = vmatprep.subr.bf16.mxu0 0
  %1884 = vmatpush1.bf16.msra.mxu0 0
  %1885 = vmatprep.subr.bf16.mxu0 0
  %1886 = vmatpush1.bf16.msra.mxu0 0
  %1887 = vmatprep.subr.bf16.mxu0 0
  %1888 = vmatpush1.bf16.msra.mxu0 0
  %1889 = vmatprep.subr.bf16.mxu0 0
  %1890 = vmatpush1.bf16.msra.mxu0 0
  %1891 = vmatprep.subr.bf16.mxu0 0
  %1892 = vmatpush1.bf16.msra.mxu0 0
  %1893 = vmatprep.subr.bf16.mxu0 0
  %1894 = vmatpush1.bf16.msra.mxu0 0
  %1895 = vmatprep.subr.bf16.mxu0 0
  %1896 = vmatpush1.bf16.msra.mxu0 0
  %1897 = vmatprep.subr.bf16.mxu0 0
  %1898 = vmatpush1.bf16.msra.mxu0 0
  %1899 = vmatprep.mubr.bf16.mxu0 0
  %1900 = vmatmul.mubr.bf16.gmra.mrb[0].mxu0 %v1865
  %v1901 = vpop.f32.mrb[0].mxu0
  %v1902 = vadd.f32 0.0, %v1901
  %v1903 = vpop.f32.mrb[0].mxu0
  %v1904 = vpop.f32.mrb[0].mxu0
  %v1905 = vadd.f32 0.0, %v1904
  %v1906 = vpop.f32.mrb[0].mxu0
  %1907 = vdwg.mxu0
  %v1908 = vrcp.pop %v1859
  %v1909 = vrcp.pop %v1862
  %v1910 = vmul.f32 %v1902, %v1908
  %v1911 = vmul.f32 %v1905, %v1909
  %v1912 = vadd.f32 %v1821, %v1910
  %v1913 = vadd.f32 %v1822, %v1911
  %v1914 = vmul.f32 %v1912, 0.5
  %v1915 = vmul.f32 %v1913, 0.5
  %v1916 = vld [vmem:[%s5 + $0x2] sm:$0x1]
  %v1918 = vlaneseq
  %v1919 = vshrl.u32 %v1918, 7
  %v1920 = vsub.s32 0, %v1919
  %v1921 = vrot.slane %v1916, %v1920
  %v1923 = vadd.f32 %v1914, %v1921
  %v1924 = vadd.f32 %v1915, %v1921
  %v1925 = vmax.f32 %v1923, 0.0
  %v1926 = vmax.f32 %v1924, 0.0
  %1927 = vset.pattern.permute.xlu0 6
  %1928 = vperm.xlu0 %1927, %v1333
  %v1929 = vpop.permute.xlu0 %1928
  %1931 = vset.pattern.permute.xlu0 6
  %1932 = vperm.xlu0 %1931, %v1336
  %v1933 = vpop.permute.xlu0 %1932
  %v1935 = vlaneseq
  %v1936 = vshrl.u32 %v1935, 7
  %v1937 = vsub.s32 6, %v1936
  %v1938 = vrot.slane %v658, %v1937
  %v1939 = vadd.f32 %v1929, %v1938
  %v1940 = vadd.f32 %v1933, %v1938
  %vm1941 = vcmp.gt.f32.partialorder %v1939, 0.0
  %vm1942 = vcmp.gt.f32.partialorder %v1940, 0.0
  %v1943 = vmul.f32 %v1939, 0.2
  %v1944 = vmul.f32 %v1940, 0.2
  %v1945 = vsel %vm1941, %v1939, %v1943
  %v1946 = vsel %vm1942, %v1940, %v1944
  %v1947 = vsel %vm90, %v1945, -1e+30
  %v1948 = vsel %vm91, %v1946, -1e+30
  %v1949 = vsel %vm1363, %v1947, -inf
  %1950 = vmax.xlane.f32.xlu0 %v1949
  %v1951 = vpop.xlane.xlu0 %1950
  %v1952 = vsel %vm1363, %v1948, -inf
  %1953 = vmax.xlane.f32.xlu0 %v1952
  %v1954 = vpop.xlane.xlu0 %1953
  %v1955 = vsub.f32 %v1947, %v1951
  %v1956 = vsub.f32 %v1948, %v1954
  %v1957 = vmul.f32 %v1955, 1.442695
  %v1958 = vpow.pop %v1957
  %v1959 = vmul.f32 %v1956, 1.442695
  %v1960 = vpow.pop %v1959
  %v1961 = vsel %vm1363, %v1958, 0.0
  %1962 = vadd.xlane.f32.xlu0 %v1961
  %v1963 = vpop.xlane.xlu0 %1962
  %v1964 = vsel %vm1363, %v1960, 0.0
  %1965 = vadd.xlane.f32.xlu0 %v1964
  %v1966 = vpop.xlane.xlu0 %1965
  %v1967 = vpack.c.bf16 %v1960, %v1958
  %v1969 = vsel %vm1363, %v1967, 0
  %1971 = vmatprep.subr.bf16.mxu0 0
  %1972 = vmatpush1.bf16.msra.mxu0 %v469
  %1973 = vmatprep.subr.bf16.mxu0 0
  %1974 = vmatpush1.bf16.msra.mxu0 0
  %1975 = vmatprep.subr.bf16.mxu0 0
  %1976 = vmatpush1.bf16.msra.mxu0 0
  %1977 = vmatprep.subr.bf16.mxu0 0
  %1978 = vmatpush1.bf16.msra.mxu0 0
  %1979 = vmatprep.subr.bf16.mxu0 0
  %1980 = vmatpush1.bf16.msra.mxu0 0
  %1981 = vmatprep.subr.bf16.mxu0 0
  %1982 = vmatpush1.bf16.msra.mxu0 0
  %1983 = vmatprep.subr.bf16.mxu0 0
  %1984 = vmatpush1.bf16.msra.mxu0 0
  %1985 = vmatprep.subr.bf16.mxu0 0
  %1986 = vmatpush1.bf16.msra.mxu0 0
  %1987 = vmatprep.subr.bf16.mxu0 0
  %1988 = vmatpush1.bf16.msra.mxu0 0
  %1989 = vmatprep.subr.bf16.mxu0 0
  %1990 = vmatpush1.bf16.msra.mxu0 0
  %1991 = vmatprep.subr.bf16.mxu0 0
  %1992 = vmatpush1.bf16.msra.mxu0 0
  %1993 = vmatprep.subr.bf16.mxu0 0
  %1994 = vmatpush1.bf16.msra.mxu0 0
  %1995 = vmatprep.subr.bf16.mxu0 0
  %1996 = vmatpush1.bf16.msra.mxu0 0
  %1997 = vmatprep.subr.bf16.mxu0 0
  %1998 = vmatpush1.bf16.msra.mxu0 0
  %1999 = vmatprep.subr.bf16.mxu0 0
  %2000 = vmatpush1.bf16.msra.mxu0 0
  %2001 = vmatprep.subr.bf16.mxu0 0
  %2002 = vmatpush1.bf16.msra.mxu0 0
  %2003 = vmatprep.mubr.bf16.mxu0 0
  %2004 = vmatmul.mubr.bf16.gmra.mrb[0].mxu0 %v1969
  %v2005 = vpop.f32.mrb[0].mxu0
  %v2006 = vadd.f32 0.0, %v2005
  %v2007 = vpop.f32.mrb[0].mxu0
  %v2008 = vpop.f32.mrb[0].mxu0
  %v2009 = vadd.f32 0.0, %v2008
  %v2010 = vpop.f32.mrb[0].mxu0
  %2011 = vdwg.mxu0
  %v2012 = vrcp.pop %v1963
  %v2013 = vrcp.pop %v1966
  %v2014 = vmul.f32 %v2006, %v2012
  %v2015 = vmul.f32 %v2009, %v2013
  %v2016 = vadd.f32 %v2014, 0.0
  %v2017 = vadd.f32 %v2015, 0.0
  %2018 = vset.pattern.permute.xlu0 7
  %2019 = vperm.xlu0 %2018, %v1333
  %v2020 = vpop.permute.xlu0 %2019
  %2022 = vset.pattern.permute.xlu0 7
  %2023 = vperm.xlu0 %2022, %v1336
  %v2024 = vpop.permute.xlu0 %2023
  %v2026 = vlaneseq
  %v2027 = vshrl.u32 %v2026, 7
  %v2028 = vsub.s32 7, %v2027
  %v2029 = vrot.slane %v658, %v2028
  %v2030 = vadd.f32 %v2020, %v2029
  %v2031 = vadd.f32 %v2024, %v2029
  %vm2032 = vcmp.gt.f32.partialorder %v2030, 0.0
  %vm2033 = vcmp.gt.f32.partialorder %v2031, 0.0
  %v2034 = vmul.f32 %v2030, 0.2
  %v2035 = vmul.f32 %v2031, 0.2
  %v2036 = vsel %vm2032, %v2030, %v2034
  %v2037 = vsel %vm2033, %v2031, %v2035
  %v2038 = vsel %vm90, %v2036, -1e+30
  %v2039 = vsel %vm91, %v2037, -1e+30
  %v2040 = vsel %vm1363, %v2038, -inf
  %2041 = vmax.xlane.f32.xlu0 %v2040
  %v2042 = vpop.xlane.xlu0 %2041
  %v2043 = vsel %vm1363, %v2039, -inf
  %2044 = vmax.xlane.f32.xlu0 %v2043
  %v2045 = vpop.xlane.xlu0 %2044
  %v2046 = vsub.f32 %v2038, %v2042
  %v2047 = vsub.f32 %v2039, %v2045
  %v2048 = vmul.f32 %v2046, 1.442695
  %v2049 = vpow.pop %v2048
  %v2050 = vmul.f32 %v2047, 1.442695
  %v2051 = vpow.pop %v2050
  %v2052 = vsel %vm1363, %v2049, 0.0
  %2053 = vadd.xlane.f32.xlu0 %v2052
  %v2054 = vpop.xlane.xlu0 %2053
  %v2055 = vsel %vm1363, %v2051, 0.0
  %2056 = vadd.xlane.f32.xlu0 %v2055
  %v2057 = vpop.xlane.xlu0 %2056
  %v2058 = vpack.c.bf16 %v2051, %v2049
  %v2060 = vsel %vm1363, %v2058, 0
  %2062 = vmatprep.subr.bf16.mxu0 0
  %2063 = vmatpush1.bf16.msra.mxu0 %v470
  %2064 = vmatprep.subr.bf16.mxu0 0
  %2065 = vmatpush1.bf16.msra.mxu0 0
  %2066 = vmatprep.subr.bf16.mxu0 0
  %2067 = vmatpush1.bf16.msra.mxu0 0
  %2068 = vmatprep.subr.bf16.mxu0 0
  %2069 = vmatpush1.bf16.msra.mxu0 0
  %2070 = vmatprep.subr.bf16.mxu0 0
  %2071 = vmatpush1.bf16.msra.mxu0 0
  %2072 = vmatprep.subr.bf16.mxu0 0
  %2073 = vmatpush1.bf16.msra.mxu0 0
  %2074 = vmatprep.subr.bf16.mxu0 0
  %2075 = vmatpush1.bf16.msra.mxu0 0
  %2076 = vmatprep.subr.bf16.mxu0 0
  %2077 = vmatpush1.bf16.msra.mxu0 0
  %2078 = vmatprep.subr.bf16.mxu0 0
  %2079 = vmatpush1.bf16.msra.mxu0 0
  %2080 = vmatprep.subr.bf16.mxu0 0
  %2081 = vmatpush1.bf16.msra.mxu0 0
  %2082 = vmatprep.subr.bf16.mxu0 0
  %2083 = vmatpush1.bf16.msra.mxu0 0
  %2084 = vmatprep.subr.bf16.mxu0 0
  %2085 = vmatpush1.bf16.msra.mxu0 0
  %2086 = vmatprep.subr.bf16.mxu0 0
  %2087 = vmatpush1.bf16.msra.mxu0 0
  %2088 = vmatprep.subr.bf16.mxu0 0
  %2089 = vmatpush1.bf16.msra.mxu0 0
  %2090 = vmatprep.subr.bf16.mxu0 0
  %2091 = vmatpush1.bf16.msra.mxu0 0
  %2092 = vmatprep.subr.bf16.mxu0 0
  %2093 = vmatpush1.bf16.msra.mxu0 0
  %2094 = vmatprep.mubr.bf16.mxu0 0
  %2095 = vmatmul.mubr.bf16.gmra.mrb[0].mxu0 %v2060
  %v2096 = vpop.f32.mrb[0].mxu0
  %v2097 = vadd.f32 0.0, %v2096
  %v2098 = vpop.f32.mrb[0].mxu0
  %v2099 = vpop.f32.mrb[0].mxu0
  %v2100 = vadd.f32 0.0, %v2099
  %v2101 = vpop.f32.mrb[0].mxu0
  %2102 = vdwg.mxu0
  %v2103 = vrcp.pop %v2054
  %v2104 = vrcp.pop %v2057
  %v2105 = vmul.f32 %v2097, %v2103
  %v2106 = vmul.f32 %v2100, %v2104
  %v2107 = vadd.f32 %v2016, %v2105
  %v2108 = vadd.f32 %v2017, %v2106
  %v2109 = vmul.f32 %v2107, 0.5
  %v2110 = vmul.f32 %v2108, 0.5
  %v2111 = vld [vmem:[%s5 + $0x3] sm:$0x1]
  %v2113 = vlaneseq
  %v2114 = vshrl.u32 %v2113, 7
  %v2115 = vsub.s32 0, %v2114
  %v2116 = vrot.slane %v2111, %v2115
  %v2118 = vadd.f32 %v2109, %v2116
  %v2119 = vadd.f32 %v2110, %v2116
  %v2120 = vmax.f32 %v2118, 0.0
  %v2121 = vmax.f32 %v2119, 0.0
  %v2122 = vpack.c.bf16 %v1536, %v1535
  %v2123 = vpack.c.bf16 %v1731, %v1730
  %v2124 = vpack.c.bf16 %v1926, %v1925
  %v2125 = vpack.c.bf16 %v2121, %v2120
  %v2126 = vld [vmem:[%s6] sm:$0xff]
  %v2127 = vld [vmem:[%s6 + $0x8] sm:$0xff]
  %v2128 = vld [vmem:[%s6 + $0x10] sm:$0xff]
  %v2129 = vld [vmem:[%s6 + $0x18] sm:$0xff]
  %v2130 = vld [vmem:[%s6 + $0x20] sm:$0xff]
  %v2131 = vld [vmem:[%s6 + $0x28] sm:$0xff]
  %v2132 = vld [vmem:[%s6 + $0x30] sm:$0xff]
  %v2133 = vld [vmem:[%s6 + $0x38] sm:$0xff]
  %v2134 = vld [vmem:[%s6 + $0x40] sm:$0xff]
  %v2135 = vld [vmem:[%s6 + $0x48] sm:$0xff]
  %v2136 = vld [vmem:[%s6 + $0x50] sm:$0xff]
  %v2137 = vld [vmem:[%s6 + $0x58] sm:$0xff]
  %v2138 = vld [vmem:[%s6 + $0x60] sm:$0xff]
  %v2139 = vld [vmem:[%s6 + $0x68] sm:$0xff]
  %v2140 = vld [vmem:[%s6 + $0x70] sm:$0xff]
  %v2141 = vld [vmem:[%s6 + $0x78] sm:$0xff]
  %v2142 = vld [vmem:[%s6 + $0x80] sm:$0xff]
  %v2143 = vld [vmem:[%s6 + $0x88] sm:$0xff]
  %v2144 = vld [vmem:[%s6 + $0x90] sm:$0xff]
  %v2145 = vld [vmem:[%s6 + $0x98] sm:$0xff]
  %v2146 = vld [vmem:[%s6 + $0xa0] sm:$0xff]
  %v2147 = vld [vmem:[%s6 + $0xa8] sm:$0xff]
  %v2148 = vld [vmem:[%s6 + $0xb0] sm:$0xff]
  %v2149 = vld [vmem:[%s6 + $0xb8] sm:$0xff]
  %v2150 = vld [vmem:[%s6 + $0xc0] sm:$0xff]
  %v2151 = vld [vmem:[%s6 + $0xc8] sm:$0xff]
  %v2152 = vld [vmem:[%s6 + $0xd0] sm:$0xff]
  %v2153 = vld [vmem:[%s6 + $0xd8] sm:$0xff]
  %v2154 = vld [vmem:[%s6 + $0xe0] sm:$0xff]
  %v2155 = vld [vmem:[%s6 + $0xe8] sm:$0xff]
  %v2156 = vld [vmem:[%s6 + $0xf0] sm:$0xff]
  %v2157 = vld [vmem:[%s6 + $0xf8] sm:$0xff]
  %v2158 = vld [vmem:[%s6 + $0x100] sm:$0xff]
  %v2159 = vld [vmem:[%s6 + $0x108] sm:$0xff]
  %v2160 = vld [vmem:[%s6 + $0x110] sm:$0xff]
  %v2161 = vld [vmem:[%s6 + $0x118] sm:$0xff]
  %v2162 = vld [vmem:[%s6 + $0x120] sm:$0xff]
  %v2163 = vld [vmem:[%s6 + $0x128] sm:$0xff]
  %v2164 = vld [vmem:[%s6 + $0x130] sm:$0xff]
  %v2165 = vld [vmem:[%s6 + $0x138] sm:$0xff]
  %v2166 = vld [vmem:[%s6 + $0x140] sm:$0xff]
  %v2167 = vld [vmem:[%s6 + $0x148] sm:$0xff]
  %v2168 = vld [vmem:[%s6 + $0x150] sm:$0xff]
  %v2169 = vld [vmem:[%s6 + $0x158] sm:$0xff]
  %v2170 = vld [vmem:[%s6 + $0x160] sm:$0xff]
  %v2171 = vld [vmem:[%s6 + $0x168] sm:$0xff]
  %v2172 = vld [vmem:[%s6 + $0x170] sm:$0xff]
  %v2173 = vld [vmem:[%s6 + $0x178] sm:$0xff]
  %v2174 = vld [vmem:[%s6 + $0x180] sm:$0xff]
  %v2175 = vld [vmem:[%s6 + $0x188] sm:$0xff]
  %v2176 = vld [vmem:[%s6 + $0x190] sm:$0xff]
  %v2177 = vld [vmem:[%s6 + $0x198] sm:$0xff]
  %v2178 = vld [vmem:[%s6 + $0x1a0] sm:$0xff]
  %v2179 = vld [vmem:[%s6 + $0x1a8] sm:$0xff]
  %v2180 = vld [vmem:[%s6 + $0x1b0] sm:$0xff]
  %v2181 = vld [vmem:[%s6 + $0x1b8] sm:$0xff]
  %v2182 = vld [vmem:[%s6 + $0x1c0] sm:$0xff]
  %v2183 = vld [vmem:[%s6 + $0x1c8] sm:$0xff]
  %v2184 = vld [vmem:[%s6 + $0x1d0] sm:$0xff]
  %v2185 = vld [vmem:[%s6 + $0x1d8] sm:$0xff]
  %v2186 = vld [vmem:[%s6 + $0x1e0] sm:$0xff]
  %v2187 = vld [vmem:[%s6 + $0x1e8] sm:$0xff]
  %v2188 = vld [vmem:[%s6 + $0x1f0] sm:$0xff]
  %v2189 = vld [vmem:[%s6 + $0x1f8] sm:$0xff]
  %v2190 = vld [vmem:[%s6 + $0x200] sm:$0xff]
  %v2191 = vld [vmem:[%s6 + $0x208] sm:$0xff]
  %v2192 = vld [vmem:[%s6 + $0x210] sm:$0xff]
  %v2193 = vld [vmem:[%s6 + $0x218] sm:$0xff]
  %v2194 = vld [vmem:[%s6 + $0x220] sm:$0xff]
  %v2195 = vld [vmem:[%s6 + $0x228] sm:$0xff]
  %v2196 = vld [vmem:[%s6 + $0x230] sm:$0xff]
  %v2197 = vld [vmem:[%s6 + $0x238] sm:$0xff]
  %v2198 = vld [vmem:[%s6 + $0x240] sm:$0xff]
  %v2199 = vld [vmem:[%s6 + $0x248] sm:$0xff]
  %v2200 = vld [vmem:[%s6 + $0x250] sm:$0xff]
  %v2201 = vld [vmem:[%s6 + $0x258] sm:$0xff]
  %v2202 = vld [vmem:[%s6 + $0x260] sm:$0xff]
  %v2203 = vld [vmem:[%s6 + $0x268] sm:$0xff]
  %v2204 = vld [vmem:[%s6 + $0x270] sm:$0xff]
  %v2205 = vld [vmem:[%s6 + $0x278] sm:$0xff]
  %v2206 = vld [vmem:[%s6 + $0x280] sm:$0xff]
  %v2207 = vld [vmem:[%s6 + $0x288] sm:$0xff]
  %v2208 = vld [vmem:[%s6 + $0x290] sm:$0xff]
  %v2209 = vld [vmem:[%s6 + $0x298] sm:$0xff]
  %v2210 = vld [vmem:[%s6 + $0x2a0] sm:$0xff]
  %v2211 = vld [vmem:[%s6 + $0x2a8] sm:$0xff]
  %v2212 = vld [vmem:[%s6 + $0x2b0] sm:$0xff]
  %v2213 = vld [vmem:[%s6 + $0x2b8] sm:$0xff]
  %v2214 = vld [vmem:[%s6 + $0x2c0] sm:$0xff]
  %v2215 = vld [vmem:[%s6 + $0x2c8] sm:$0xff]
  %v2216 = vld [vmem:[%s6 + $0x2d0] sm:$0xff]
  %v2217 = vld [vmem:[%s6 + $0x2d8] sm:$0xff]
  %v2218 = vld [vmem:[%s6 + $0x2e0] sm:$0xff]
  %v2219 = vld [vmem:[%s6 + $0x2e8] sm:$0xff]
  %v2220 = vld [vmem:[%s6 + $0x2f0] sm:$0xff]
  %v2221 = vld [vmem:[%s6 + $0x2f8] sm:$0xff]
  %v2222 = vld [vmem:[%s6 + $0x300] sm:$0xff]
  %v2223 = vld [vmem:[%s6 + $0x308] sm:$0xff]
  %v2224 = vld [vmem:[%s6 + $0x310] sm:$0xff]
  %v2225 = vld [vmem:[%s6 + $0x318] sm:$0xff]
  %v2226 = vld [vmem:[%s6 + $0x320] sm:$0xff]
  %v2227 = vld [vmem:[%s6 + $0x328] sm:$0xff]
  %v2228 = vld [vmem:[%s6 + $0x330] sm:$0xff]
  %v2229 = vld [vmem:[%s6 + $0x338] sm:$0xff]
  %v2230 = vld [vmem:[%s6 + $0x340] sm:$0xff]
  %v2231 = vld [vmem:[%s6 + $0x348] sm:$0xff]
  %v2232 = vld [vmem:[%s6 + $0x350] sm:$0xff]
  %v2233 = vld [vmem:[%s6 + $0x358] sm:$0xff]
  %v2234 = vld [vmem:[%s6 + $0x360] sm:$0xff]
  %v2235 = vld [vmem:[%s6 + $0x368] sm:$0xff]
  %v2236 = vld [vmem:[%s6 + $0x370] sm:$0xff]
  %v2237 = vld [vmem:[%s6 + $0x378] sm:$0xff]
  %v2238 = vld [vmem:[%s6 + $0x380] sm:$0xff]
  %v2239 = vld [vmem:[%s6 + $0x388] sm:$0xff]
  %v2240 = vld [vmem:[%s6 + $0x390] sm:$0xff]
  %v2241 = vld [vmem:[%s6 + $0x398] sm:$0xff]
  %v2242 = vld [vmem:[%s6 + $0x3a0] sm:$0xff]
  %v2243 = vld [vmem:[%s6 + $0x3a8] sm:$0xff]
  %v2244 = vld [vmem:[%s6 + $0x3b0] sm:$0xff]
  %v2245 = vld [vmem:[%s6 + $0x3b8] sm:$0xff]
  %v2246 = vld [vmem:[%s6 + $0x3c0] sm:$0xff]
  %v2247 = vld [vmem:[%s6 + $0x3c8] sm:$0xff]
  %v2248 = vld [vmem:[%s6 + $0x3d0] sm:$0xff]
  %v2249 = vld [vmem:[%s6 + $0x3d8] sm:$0xff]
  %v2250 = vld [vmem:[%s6 + $0x3e0] sm:$0xff]
  %v2251 = vld [vmem:[%s6 + $0x3e8] sm:$0xff]
  %v2252 = vld [vmem:[%s6 + $0x3f0] sm:$0xff]
  %v2253 = vld [vmem:[%s6 + $0x3f8] sm:$0xff]
  %v2382 = vunpack.c.l.b16 %v2126
  %v2383 = vunpack.c.h.b16 %v2126
  %v2384 = vunpack.c.l.b16 %v2127
  %v2385 = vunpack.c.h.b16 %v2127
  %v2386 = vunpack.c.l.b16 %v2128
  %v2387 = vunpack.c.h.b16 %v2128
  %v2388 = vunpack.c.l.b16 %v2129
  %v2389 = vunpack.c.h.b16 %v2129
  %v2390 = vunpack.c.l.b16 %v2130
  %v2391 = vunpack.c.h.b16 %v2130
  %v2392 = vunpack.c.l.b16 %v2131
  %v2393 = vunpack.c.h.b16 %v2131
  %v2394 = vunpack.c.l.b16 %v2132
  %v2395 = vunpack.c.h.b16 %v2132
  %v2396 = vunpack.c.l.b16 %v2133
  %v2397 = vunpack.c.h.b16 %v2133
  %v2398 = vunpack.c.l.b16 %v2134
  %v2399 = vunpack.c.h.b16 %v2134
  %v2400 = vunpack.c.l.b16 %v2135
  %v2401 = vunpack.c.h.b16 %v2135
  %v2402 = vunpack.c.l.b16 %v2136
  %v2403 = vunpack.c.h.b16 %v2136
  %v2404 = vunpack.c.l.b16 %v2137
  %v2405 = vunpack.c.h.b16 %v2137
  %v2406 = vunpack.c.l.b16 %v2138
  %v2407 = vunpack.c.h.b16 %v2138
  %v2408 = vunpack.c.l.b16 %v2139
  %v2409 = vunpack.c.h.b16 %v2139
  %v2410 = vunpack.c.l.b16 %v2140
  %v2411 = vunpack.c.h.b16 %v2140
  %v2412 = vunpack.c.l.b16 %v2141
  %v2413 = vunpack.c.h.b16 %v2141
  %v2414 = vunpack.c.l.b16 %v2142
  %v2415 = vunpack.c.h.b16 %v2142
  %v2416 = vunpack.c.l.b16 %v2143
  %v2417 = vunpack.c.h.b16 %v2143
  %v2418 = vunpack.c.l.b16 %v2144
  %v2419 = vunpack.c.h.b16 %v2144
  %v2420 = vunpack.c.l.b16 %v2145
  %v2421 = vunpack.c.h.b16 %v2145
  %v2422 = vunpack.c.l.b16 %v2146
  %v2423 = vunpack.c.h.b16 %v2146
  %v2424 = vunpack.c.l.b16 %v2147
  %v2425 = vunpack.c.h.b16 %v2147
  %v2426 = vunpack.c.l.b16 %v2148
  %v2427 = vunpack.c.h.b16 %v2148
  %v2428 = vunpack.c.l.b16 %v2149
  %v2429 = vunpack.c.h.b16 %v2149
  %v2430 = vunpack.c.l.b16 %v2150
  %v2431 = vunpack.c.h.b16 %v2150
  %v2432 = vunpack.c.l.b16 %v2151
  %v2433 = vunpack.c.h.b16 %v2151
  %v2434 = vunpack.c.l.b16 %v2152
  %v2435 = vunpack.c.h.b16 %v2152
  %v2436 = vunpack.c.l.b16 %v2153
  %v2437 = vunpack.c.h.b16 %v2153
  %v2438 = vunpack.c.l.b16 %v2154
  %v2439 = vunpack.c.h.b16 %v2154
  %v2440 = vunpack.c.l.b16 %v2155
  %v2441 = vunpack.c.h.b16 %v2155
  %v2442 = vunpack.c.l.b16 %v2156
  %v2443 = vunpack.c.h.b16 %v2156
  %v2444 = vunpack.c.l.b16 %v2157
  %v2445 = vunpack.c.h.b16 %v2157
  %v2446 = vunpack.c.l.b16 %v2158
  %v2447 = vunpack.c.h.b16 %v2158
  %v2448 = vunpack.c.l.b16 %v2159
  %v2449 = vunpack.c.h.b16 %v2159
  %v2450 = vunpack.c.l.b16 %v2160
  %v2451 = vunpack.c.h.b16 %v2160
  %v2452 = vunpack.c.l.b16 %v2161
  %v2453 = vunpack.c.h.b16 %v2161
  %v2454 = vunpack.c.l.b16 %v2162
  %v2455 = vunpack.c.h.b16 %v2162
  %v2456 = vunpack.c.l.b16 %v2163
  %v2457 = vunpack.c.h.b16 %v2163
  %v2458 = vunpack.c.l.b16 %v2164
  %v2459 = vunpack.c.h.b16 %v2164
  %v2460 = vunpack.c.l.b16 %v2165
  %v2461 = vunpack.c.h.b16 %v2165
  %v2462 = vunpack.c.l.b16 %v2166
  %v2463 = vunpack.c.h.b16 %v2166
  %v2464 = vunpack.c.l.b16 %v2167
  %v2465 = vunpack.c.h.b16 %v2167
  %v2466 = vunpack.c.l.b16 %v2168
  %v2467 = vunpack.c.h.b16 %v2168
  %v2468 = vunpack.c.l.b16 %v2169
  %v2469 = vunpack.c.h.b16 %v2169
  %v2470 = vunpack.c.l.b16 %v2170
  %v2471 = vunpack.c.h.b16 %v2170
  %v2472 = vunpack.c.l.b16 %v2171
  %v2473 = vunpack.c.h.b16 %v2171
  %v2474 = vunpack.c.l.b16 %v2172
  %v2475 = vunpack.c.h.b16 %v2172
  %v2476 = vunpack.c.l.b16 %v2173
  %v2477 = vunpack.c.h.b16 %v2173
  %v2478 = vunpack.c.l.b16 %v2174
  %v2479 = vunpack.c.h.b16 %v2174
  %v2480 = vunpack.c.l.b16 %v2175
  %v2481 = vunpack.c.h.b16 %v2175
  %v2482 = vunpack.c.l.b16 %v2176
  %v2483 = vunpack.c.h.b16 %v2176
  %v2484 = vunpack.c.l.b16 %v2177
  %v2485 = vunpack.c.h.b16 %v2177
  %v2486 = vunpack.c.l.b16 %v2178
  %v2487 = vunpack.c.h.b16 %v2178
  %v2488 = vunpack.c.l.b16 %v2179
  %v2489 = vunpack.c.h.b16 %v2179
  %v2490 = vunpack.c.l.b16 %v2180
  %v2491 = vunpack.c.h.b16 %v2180
  %v2492 = vunpack.c.l.b16 %v2181
  %v2493 = vunpack.c.h.b16 %v2181
  %v2494 = vunpack.c.l.b16 %v2182
  %v2495 = vunpack.c.h.b16 %v2182
  %v2496 = vunpack.c.l.b16 %v2183
  %v2497 = vunpack.c.h.b16 %v2183
  %v2498 = vunpack.c.l.b16 %v2184
  %v2499 = vunpack.c.h.b16 %v2184
  %v2500 = vunpack.c.l.b16 %v2185
  %v2501 = vunpack.c.h.b16 %v2185
  %v2502 = vunpack.c.l.b16 %v2186
  %v2503 = vunpack.c.h.b16 %v2186
  %v2504 = vunpack.c.l.b16 %v2187
  %v2505 = vunpack.c.h.b16 %v2187
  %v2506 = vunpack.c.l.b16 %v2188
  %v2507 = vunpack.c.h.b16 %v2188
  %v2508 = vunpack.c.l.b16 %v2189
  %v2509 = vunpack.c.h.b16 %v2189
  %v2510 = vunpack.c.l.b16 %v2190
  %v2511 = vunpack.c.h.b16 %v2190
  %v2512 = vunpack.c.l.b16 %v2191
  %v2513 = vunpack.c.h.b16 %v2191
  %v2514 = vunpack.c.l.b16 %v2192
  %v2515 = vunpack.c.h.b16 %v2192
  %v2516 = vunpack.c.l.b16 %v2193
  %v2517 = vunpack.c.h.b16 %v2193
  %v2518 = vunpack.c.l.b16 %v2194
  %v2519 = vunpack.c.h.b16 %v2194
  %v2520 = vunpack.c.l.b16 %v2195
  %v2521 = vunpack.c.h.b16 %v2195
  %v2522 = vunpack.c.l.b16 %v2196
  %v2523 = vunpack.c.h.b16 %v2196
  %v2524 = vunpack.c.l.b16 %v2197
  %v2525 = vunpack.c.h.b16 %v2197
  %v2526 = vunpack.c.l.b16 %v2198
  %v2527 = vunpack.c.h.b16 %v2198
  %v2528 = vunpack.c.l.b16 %v2199
  %v2529 = vunpack.c.h.b16 %v2199
  %v2530 = vunpack.c.l.b16 %v2200
  %v2531 = vunpack.c.h.b16 %v2200
  %v2532 = vunpack.c.l.b16 %v2201
  %v2533 = vunpack.c.h.b16 %v2201
  %v2534 = vunpack.c.l.b16 %v2202
  %v2535 = vunpack.c.h.b16 %v2202
  %v2536 = vunpack.c.l.b16 %v2203
  %v2537 = vunpack.c.h.b16 %v2203
  %v2538 = vunpack.c.l.b16 %v2204
  %v2539 = vunpack.c.h.b16 %v2204
  %v2540 = vunpack.c.l.b16 %v2205
  %v2541 = vunpack.c.h.b16 %v2205
  %v2542 = vunpack.c.l.b16 %v2206
  %v2543 = vunpack.c.h.b16 %v2206
  %v2544 = vunpack.c.l.b16 %v2207
  %v2545 = vunpack.c.h.b16 %v2207
  %v2546 = vunpack.c.l.b16 %v2208
  %v2547 = vunpack.c.h.b16 %v2208
  %v2548 = vunpack.c.l.b16 %v2209
  %v2549 = vunpack.c.h.b16 %v2209
  %v2550 = vunpack.c.l.b16 %v2210
  %v2551 = vunpack.c.h.b16 %v2210
  %v2552 = vunpack.c.l.b16 %v2211
  %v2553 = vunpack.c.h.b16 %v2211
  %v2554 = vunpack.c.l.b16 %v2212
  %v2555 = vunpack.c.h.b16 %v2212
  %v2556 = vunpack.c.l.b16 %v2213
  %v2557 = vunpack.c.h.b16 %v2213
  %v2558 = vunpack.c.l.b16 %v2214
  %v2559 = vunpack.c.h.b16 %v2214
  %v2560 = vunpack.c.l.b16 %v2215
  %v2561 = vunpack.c.h.b16 %v2215
  %v2562 = vunpack.c.l.b16 %v2216
  %v2563 = vunpack.c.h.b16 %v2216
  %v2564 = vunpack.c.l.b16 %v2217
  %v2565 = vunpack.c.h.b16 %v2217
  %v2566 = vunpack.c.l.b16 %v2218
  %v2567 = vunpack.c.h.b16 %v2218
  %v2568 = vunpack.c.l.b16 %v2219
  %v2569 = vunpack.c.h.b16 %v2219
  %v2570 = vunpack.c.l.b16 %v2220
  %v2571 = vunpack.c.h.b16 %v2220
  %v2572 = vunpack.c.l.b16 %v2221
  %v2573 = vunpack.c.h.b16 %v2221
  %v2574 = vunpack.c.l.b16 %v2222
  %v2575 = vunpack.c.h.b16 %v2222
  %v2576 = vunpack.c.l.b16 %v2223
  %v2577 = vunpack.c.h.b16 %v2223
  %v2578 = vunpack.c.l.b16 %v2224
  %v2579 = vunpack.c.h.b16 %v2224
  %v2580 = vunpack.c.l.b16 %v2225
  %v2581 = vunpack.c.h.b16 %v2225
  %v2582 = vunpack.c.l.b16 %v2226
  %v2583 = vunpack.c.h.b16 %v2226
  %v2584 = vunpack.c.l.b16 %v2227
  %v2585 = vunpack.c.h.b16 %v2227
  %v2586 = vunpack.c.l.b16 %v2228
  %v2587 = vunpack.c.h.b16 %v2228
  %v2588 = vunpack.c.l.b16 %v2229
  %v2589 = vunpack.c.h.b16 %v2229
  %v2590 = vunpack.c.l.b16 %v2230
  %v2591 = vunpack.c.h.b16 %v2230
  %v2592 = vunpack.c.l.b16 %v2231
  %v2593 = vunpack.c.h.b16 %v2231
  %v2594 = vunpack.c.l.b16 %v2232
  %v2595 = vunpack.c.h.b16 %v2232
  %v2596 = vunpack.c.l.b16 %v2233
  %v2597 = vunpack.c.h.b16 %v2233
  %v2598 = vunpack.c.l.b16 %v2234
  %v2599 = vunpack.c.h.b16 %v2234
  %v2600 = vunpack.c.l.b16 %v2235
  %v2601 = vunpack.c.h.b16 %v2235
  %v2602 = vunpack.c.l.b16 %v2236
  %v2603 = vunpack.c.h.b16 %v2236
  %v2604 = vunpack.c.l.b16 %v2237
  %v2605 = vunpack.c.h.b16 %v2237
  %v2606 = vunpack.c.l.b16 %v2238
  %v2607 = vunpack.c.h.b16 %v2238
  %v2608 = vunpack.c.l.b16 %v2239
  %v2609 = vunpack.c.h.b16 %v2239
  %v2610 = vunpack.c.l.b16 %v2240
  %v2611 = vunpack.c.h.b16 %v2240
  %v2612 = vunpack.c.l.b16 %v2241
  %v2613 = vunpack.c.h.b16 %v2241
  %v2614 = vunpack.c.l.b16 %v2242
  %v2615 = vunpack.c.h.b16 %v2242
  %v2616 = vunpack.c.l.b16 %v2243
  %v2617 = vunpack.c.h.b16 %v2243
  %v2618 = vunpack.c.l.b16 %v2244
  %v2619 = vunpack.c.h.b16 %v2244
  %v2620 = vunpack.c.l.b16 %v2245
  %v2621 = vunpack.c.h.b16 %v2245
  %v2622 = vunpack.c.l.b16 %v2246
  %v2623 = vunpack.c.h.b16 %v2246
  %v2624 = vunpack.c.l.b16 %v2247
  %v2625 = vunpack.c.h.b16 %v2247
  %v2626 = vunpack.c.l.b16 %v2248
  %v2627 = vunpack.c.h.b16 %v2248
  %v2628 = vunpack.c.l.b16 %v2249
  %v2629 = vunpack.c.h.b16 %v2249
  %v2630 = vunpack.c.l.b16 %v2250
  %v2631 = vunpack.c.h.b16 %v2250
  %v2632 = vunpack.c.l.b16 %v2251
  %v2633 = vunpack.c.h.b16 %v2251
  %v2634 = vunpack.c.l.b16 %v2252
  %v2635 = vunpack.c.h.b16 %v2252
  %v2636 = vunpack.c.l.b16 %v2253
  %v2637 = vunpack.c.h.b16 %v2253
  %v2638 = vpack.c.b16 %v2386, %v2382
  %v2639 = vpack.c.b16 %v2387, %v2383
  %v2640 = vpack.c.b16 %v2388, %v2384
  %v2641 = vpack.c.b16 %v2389, %v2385
  %v2642 = vpack.c.b16 %v2394, %v2390
  %v2643 = vpack.c.b16 %v2395, %v2391
  %v2644 = vpack.c.b16 %v2396, %v2392
  %v2645 = vpack.c.b16 %v2397, %v2393
  %v2646 = vpack.c.b16 %v2402, %v2398
  %v2647 = vpack.c.b16 %v2403, %v2399
  %v2648 = vpack.c.b16 %v2404, %v2400
  %v2649 = vpack.c.b16 %v2405, %v2401
  %v2650 = vpack.c.b16 %v2410, %v2406
  %v2651 = vpack.c.b16 %v2411, %v2407
  %v2652 = vpack.c.b16 %v2412, %v2408
  %v2653 = vpack.c.b16 %v2413, %v2409
  %v2654 = vpack.c.b16 %v2418, %v2414
  %v2655 = vpack.c.b16 %v2419, %v2415
  %v2656 = vpack.c.b16 %v2420, %v2416
  %v2657 = vpack.c.b16 %v2421, %v2417
  %v2658 = vpack.c.b16 %v2426, %v2422
  %v2659 = vpack.c.b16 %v2427, %v2423
  %v2660 = vpack.c.b16 %v2428, %v2424
  %v2661 = vpack.c.b16 %v2429, %v2425
  %v2662 = vpack.c.b16 %v2434, %v2430
  %v2663 = vpack.c.b16 %v2435, %v2431
  %v2664 = vpack.c.b16 %v2436, %v2432
  %v2665 = vpack.c.b16 %v2437, %v2433
  %v2666 = vpack.c.b16 %v2442, %v2438
  %v2667 = vpack.c.b16 %v2443, %v2439
  %v2668 = vpack.c.b16 %v2444, %v2440
  %v2669 = vpack.c.b16 %v2445, %v2441
  %v2670 = vpack.c.b16 %v2450, %v2446
  %v2671 = vpack.c.b16 %v2451, %v2447
  %v2672 = vpack.c.b16 %v2452, %v2448
  %v2673 = vpack.c.b16 %v2453, %v2449
  %v2674 = vpack.c.b16 %v2458, %v2454
  %v2675 = vpack.c.b16 %v2459, %v2455
  %v2676 = vpack.c.b16 %v2460, %v2456
  %v2677 = vpack.c.b16 %v2461, %v2457
  %v2678 = vpack.c.b16 %v2466, %v2462
  %v2679 = vpack.c.b16 %v2467, %v2463
  %v2680 = vpack.c.b16 %v2468, %v2464
  %v2681 = vpack.c.b16 %v2469, %v2465
  %v2682 = vpack.c.b16 %v2474, %v2470
  %v2683 = vpack.c.b16 %v2475, %v2471
  %v2684 = vpack.c.b16 %v2476, %v2472
  %v2685 = vpack.c.b16 %v2477, %v2473
  %v2686 = vpack.c.b16 %v2482, %v2478
  %v2687 = vpack.c.b16 %v2483, %v2479
  %v2688 = vpack.c.b16 %v2484, %v2480
  %v2689 = vpack.c.b16 %v2485, %v2481
  %v2690 = vpack.c.b16 %v2490, %v2486
  %v2691 = vpack.c.b16 %v2491, %v2487
  %v2692 = vpack.c.b16 %v2492, %v2488
  %v2693 = vpack.c.b16 %v2493, %v2489
  %v2694 = vpack.c.b16 %v2498, %v2494
  %v2695 = vpack.c.b16 %v2499, %v2495
  %v2696 = vpack.c.b16 %v2500, %v2496
  %v2697 = vpack.c.b16 %v2501, %v2497
  %v2698 = vpack.c.b16 %v2506, %v2502
  %v2699 = vpack.c.b16 %v2507, %v2503
  %v2700 = vpack.c.b16 %v2508, %v2504
  %v2701 = vpack.c.b16 %v2509, %v2505
  %v2702 = vpack.c.b16 %v2514, %v2510
  %v2703 = vpack.c.b16 %v2515, %v2511
  %v2704 = vpack.c.b16 %v2516, %v2512
  %v2705 = vpack.c.b16 %v2517, %v2513
  %v2706 = vpack.c.b16 %v2522, %v2518
  %v2707 = vpack.c.b16 %v2523, %v2519
  %v2708 = vpack.c.b16 %v2524, %v2520
  %v2709 = vpack.c.b16 %v2525, %v2521
  %v2710 = vpack.c.b16 %v2530, %v2526
  %v2711 = vpack.c.b16 %v2531, %v2527
  %v2712 = vpack.c.b16 %v2532, %v2528
  %v2713 = vpack.c.b16 %v2533, %v2529
  %v2714 = vpack.c.b16 %v2538, %v2534
  %v2715 = vpack.c.b16 %v2539, %v2535
  %v2716 = vpack.c.b16 %v2540, %v2536
  %v2717 = vpack.c.b16 %v2541, %v2537
  %v2718 = vpack.c.b16 %v2546, %v2542
  %v2719 = vpack.c.b16 %v2547, %v2543
  %v2720 = vpack.c.b16 %v2548, %v2544
  %v2721 = vpack.c.b16 %v2549, %v2545
  %v2722 = vpack.c.b16 %v2554, %v2550
  %v2723 = vpack.c.b16 %v2555, %v2551
  %v2724 = vpack.c.b16 %v2556, %v2552
  %v2725 = vpack.c.b16 %v2557, %v2553
  %v2726 = vpack.c.b16 %v2562, %v2558
  %v2727 = vpack.c.b16 %v2563, %v2559
  %v2728 = vpack.c.b16 %v2564, %v2560
  %v2729 = vpack.c.b16 %v2565, %v2561
  %v2730 = vpack.c.b16 %v2570, %v2566
  %v2731 = vpack.c.b16 %v2571, %v2567
  %v2732 = vpack.c.b16 %v2572, %v2568
  %v2733 = vpack.c.b16 %v2573, %v2569
  %v2734 = vpack.c.b16 %v2578, %v2574
  %v2735 = vpack.c.b16 %v2579, %v2575
  %v2736 = vpack.c.b16 %v2580, %v2576
  %v2737 = vpack.c.b16 %v2581, %v2577
  %v2738 = vpack.c.b16 %v2586, %v2582
  %v2739 = vpack.c.b16 %v2587, %v2583
  %v2740 = vpack.c.b16 %v2588, %v2584
  %v2741 = vpack.c.b16 %v2589, %v2585
  %v2742 = vpack.c.b16 %v2594, %v2590
  %v2743 = vpack.c.b16 %v2595, %v2591
  %v2744 = vpack.c.b16 %v2596, %v2592
  %v2745 = vpack.c.b16 %v2597, %v2593
  %v2746 = vpack.c.b16 %v2602, %v2598
  %v2747 = vpack.c.b16 %v2603, %v2599
  %v2748 = vpack.c.b16 %v2604, %v2600
  %v2749 = vpack.c.b16 %v2605, %v2601
  %v2750 = vpack.c.b16 %v2610, %v2606
  %v2751 = vpack.c.b16 %v2611, %v2607
  %v2752 = vpack.c.b16 %v2612, %v2608
  %v2753 = vpack.c.b16 %v2613, %v2609
  %v2754 = vpack.c.b16 %v2618, %v2614
  %v2755 = vpack.c.b16 %v2619, %v2615
  %v2756 = vpack.c.b16 %v2620, %v2616
  %v2757 = vpack.c.b16 %v2621, %v2617
  %v2758 = vpack.c.b16 %v2626, %v2622
  %v2759 = vpack.c.b16 %v2627, %v2623
  %v2760 = vpack.c.b16 %v2628, %v2624
  %v2761 = vpack.c.b16 %v2629, %v2625
  %v2762 = vpack.c.b16 %v2634, %v2630
  %v2763 = vpack.c.b16 %v2635, %v2631
  %v2764 = vpack.c.b16 %v2636, %v2632
  %v2765 = vpack.c.b16 %v2637, %v2633
  %2894 = vmatprep.subr.bf16.mxu0 %v2639
  %2895 = vmatpush1.bf16.msra.mxu0 %v2638
  %2896 = vmatprep.subr.bf16.mxu0 %v2643
  %2897 = vmatpush1.bf16.msra.mxu0 %v2642
  %2898 = vmatprep.subr.bf16.mxu0 %v2647
  %2899 = vmatpush1.bf16.msra.mxu0 %v2646
  %2900 = vmatprep.subr.bf16.mxu0 %v2651
  %2901 = vmatpush1.bf16.msra.mxu0 %v2650
  %2902 = vmatprep.subr.bf16.mxu0 %v2655
  %2903 = vmatpush1.bf16.msra.mxu0 %v2654
  %2904 = vmatprep.subr.bf16.mxu0 %v2659
  %2905 = vmatpush1.bf16.msra.mxu0 %v2658
  %2906 = vmatprep.subr.bf16.mxu0 %v2663
  %2907 = vmatpush1.bf16.msra.mxu0 %v2662
  %2908 = vmatprep.subr.bf16.mxu0 %v2667
  %2909 = vmatpush1.bf16.msra.mxu0 %v2666
  %2910 = vmatprep.subr.bf16.mxu0 %v2671
  %2911 = vmatpush1.bf16.msra.mxu0 %v2670
  %2912 = vmatprep.subr.bf16.mxu0 %v2675
  %2913 = vmatpush1.bf16.msra.mxu0 %v2674
  %2914 = vmatprep.subr.bf16.mxu0 %v2679
  %2915 = vmatpush1.bf16.msra.mxu0 %v2678
  %2916 = vmatprep.subr.bf16.mxu0 %v2683
  %2917 = vmatpush1.bf16.msra.mxu0 %v2682
  %2918 = vmatprep.subr.bf16.mxu0 %v2687
  %2919 = vmatpush1.bf16.msra.mxu0 %v2686
  %2920 = vmatprep.subr.bf16.mxu0 %v2691
  %2921 = vmatpush1.bf16.msra.mxu0 %v2690
  %2922 = vmatprep.subr.bf16.mxu0 %v2695
  %2923 = vmatpush1.bf16.msra.mxu0 %v2694
  %2924 = vmatprep.subr.bf16.mxu0 %v2699
  %2925 = vmatpush1.bf16.msra.mxu0 %v2698
  %2926 = vmatprep.mubr.bf16.mxu0 %v2123
  %2927 = vmatmul.mubr.bf16.gmra.mrb[0].mxu0 %v2122
  %v2928 = vpop.f32.mrb[0].mxu0
  %v2929 = vadd.f32 0.0, %v2928
  %v2930 = vpop.f32.mrb[0].mxu0
  %v2931 = vadd.f32 0.0, %v2930
  %v2932 = vpop.f32.mrb[0].mxu0
  %v2933 = vadd.f32 0.0, %v2932
  %v2934 = vpop.f32.mrb[0].mxu0
  %v2935 = vadd.f32 0.0, %v2934
  %2936 = vdwg.mxu0
  %2937 = vmatprep.subr.bf16.mxu0 %v2703
  %2938 = vmatpush1.bf16.msra.mxu0 %v2702
  %2939 = vmatprep.subr.bf16.mxu0 %v2707
  %2940 = vmatpush1.bf16.msra.mxu0 %v2706
  %2941 = vmatprep.subr.bf16.mxu0 %v2711
  %2942 = vmatpush1.bf16.msra.mxu0 %v2710
  %2943 = vmatprep.subr.bf16.mxu0 %v2715
  %2944 = vmatpush1.bf16.msra.mxu0 %v2714
  %2945 = vmatprep.subr.bf16.mxu0 %v2719
  %2946 = vmatpush1.bf16.msra.mxu0 %v2718
  %2947 = vmatprep.subr.bf16.mxu0 %v2723
  %2948 = vmatpush1.bf16.msra.mxu0 %v2722
  %2949 = vmatprep.subr.bf16.mxu0 %v2727
  %2950 = vmatpush1.bf16.msra.mxu0 %v2726
  %2951 = vmatprep.subr.bf16.mxu0 %v2731
  %2952 = vmatpush1.bf16.msra.mxu0 %v2730
  %2953 = vmatprep.subr.bf16.mxu0 %v2735
  %2954 = vmatpush1.bf16.msra.mxu0 %v2734
  %2955 = vmatprep.subr.bf16.mxu0 %v2739
  %2956 = vmatpush1.bf16.msra.mxu0 %v2738
  %2957 = vmatprep.subr.bf16.mxu0 %v2743
  %2958 = vmatpush1.bf16.msra.mxu0 %v2742
  %2959 = vmatprep.subr.bf16.mxu0 %v2747
  %2960 = vmatpush1.bf16.msra.mxu0 %v2746
  %2961 = vmatprep.subr.bf16.mxu0 %v2751
  %2962 = vmatpush1.bf16.msra.mxu0 %v2750
  %2963 = vmatprep.subr.bf16.mxu0 %v2755
  %2964 = vmatpush1.bf16.msra.mxu0 %v2754
  %2965 = vmatprep.subr.bf16.mxu0 %v2759
  %2966 = vmatpush1.bf16.msra.mxu0 %v2758
  %2967 = vmatprep.subr.bf16.mxu0 %v2763
  %2968 = vmatpush1.bf16.msra.mxu0 %v2762
  %2969 = vmatprep.mubr.bf16.mxu0 %v2125
  %2970 = vmatmul.mubr.bf16.gmra.mrb[0].mxu0 %v2124
  %v2971 = vpop.f32.mrb[0].mxu0
  %v2972 = vadd.f32 %v2929, %v2971
  %v2973 = vpop.f32.mrb[0].mxu0
  %v2974 = vadd.f32 %v2931, %v2973
  %v2975 = vpop.f32.mrb[0].mxu0
  %v2976 = vadd.f32 %v2933, %v2975
  %v2977 = vpop.f32.mrb[0].mxu0
  %v2978 = vadd.f32 %v2935, %v2977
  %2979 = vdwg.mxu0
  %2980 = vmatprep.subr.bf16.mxu0 %v2641
  %2981 = vmatpush1.bf16.msra.mxu0 %v2640
  %2982 = vmatprep.subr.bf16.mxu0 %v2645
  %2983 = vmatpush1.bf16.msra.mxu0 %v2644
  %2984 = vmatprep.subr.bf16.mxu0 %v2649
  %2985 = vmatpush1.bf16.msra.mxu0 %v2648
  %2986 = vmatprep.subr.bf16.mxu0 %v2653
  %2987 = vmatpush1.bf16.msra.mxu0 %v2652
  %2988 = vmatprep.subr.bf16.mxu0 %v2657
  %2989 = vmatpush1.bf16.msra.mxu0 %v2656
  %2990 = vmatprep.subr.bf16.mxu0 %v2661
  %2991 = vmatpush1.bf16.msra.mxu0 %v2660
  %2992 = vmatprep.subr.bf16.mxu0 %v2665
  %2993 = vmatpush1.bf16.msra.mxu0 %v2664
  %2994 = vmatprep.subr.bf16.mxu0 %v2669
  %2995 = vmatpush1.bf16.msra.mxu0 %v2668
  %2996 = vmatprep.subr.bf16.mxu0 %v2673
  %2997 = vmatpush1.bf16.msra.mxu0 %v2672
  %2998 = vmatprep.subr.bf16.mxu0 %v2677
  %2999 = vmatpush1.bf16.msra.mxu0 %v2676
  %3000 = vmatprep.subr.bf16.mxu0 %v2681
  %3001 = vmatpush1.bf16.msra.mxu0 %v2680
  %3002 = vmatprep.subr.bf16.mxu0 %v2685
  %3003 = vmatpush1.bf16.msra.mxu0 %v2684
  %3004 = vmatprep.subr.bf16.mxu0 %v2689
  %3005 = vmatpush1.bf16.msra.mxu0 %v2688
  %3006 = vmatprep.subr.bf16.mxu0 %v2693
  %3007 = vmatpush1.bf16.msra.mxu0 %v2692
  %3008 = vmatprep.subr.bf16.mxu0 %v2697
  %3009 = vmatpush1.bf16.msra.mxu0 %v2696
  %3010 = vmatprep.subr.bf16.mxu0 %v2701
  %3011 = vmatpush1.bf16.msra.mxu0 %v2700
  %3012 = vmatprep.mubr.bf16.mxu0 %v2123
  %3013 = vmatmul.mubr.bf16.gmra.mrb[0].mxu0 %v2122
  %v3014 = vpop.f32.mrb[0].mxu0
  %v3015 = vadd.f32 0.0, %v3014
  %v3016 = vpop.f32.mrb[0].mxu0
  %v3017 = vadd.f32 0.0, %v3016
  %v3018 = vpop.f32.mrb[0].mxu0
  %v3019 = vadd.f32 0.0, %v3018
  %v3020 = vpop.f32.mrb[0].mxu0
  %v3021 = vadd.f32 0.0, %v3020
  %3022 = vdwg.mxu0
  %3023 = vmatprep.subr.bf16.mxu0 %v2705
  %3024 = vmatpush1.bf16.msra.mxu0 %v2704
  %3025 = vmatprep.subr.bf16.mxu0 %v2709
  %3026 = vmatpush1.bf16.msra.mxu0 %v2708
  %3027 = vmatprep.subr.bf16.mxu0 %v2713
  %3028 = vmatpush1.bf16.msra.mxu0 %v2712
  %3029 = vmatprep.subr.bf16.mxu0 %v2717
  %3030 = vmatpush1.bf16.msra.mxu0 %v2716
  %3031 = vmatprep.subr.bf16.mxu0 %v2721
  %3032 = vmatpush1.bf16.msra.mxu0 %v2720
  %3033 = vmatprep.subr.bf16.mxu0 %v2725
  %3034 = vmatpush1.bf16.msra.mxu0 %v2724
  %3035 = vmatprep.subr.bf16.mxu0 %v2729
  %3036 = vmatpush1.bf16.msra.mxu0 %v2728
  %3037 = vmatprep.subr.bf16.mxu0 %v2733
  %3038 = vmatpush1.bf16.msra.mxu0 %v2732
  %3039 = vmatprep.subr.bf16.mxu0 %v2737
  %3040 = vmatpush1.bf16.msra.mxu0 %v2736
  %3041 = vmatprep.subr.bf16.mxu0 %v2741
  %3042 = vmatpush1.bf16.msra.mxu0 %v2740
  %3043 = vmatprep.subr.bf16.mxu0 %v2745
  %3044 = vmatpush1.bf16.msra.mxu0 %v2744
  %3045 = vmatprep.subr.bf16.mxu0 %v2749
  %3046 = vmatpush1.bf16.msra.mxu0 %v2748
  %3047 = vmatprep.subr.bf16.mxu0 %v2753
  %3048 = vmatpush1.bf16.msra.mxu0 %v2752
  %3049 = vmatprep.subr.bf16.mxu0 %v2757
  %3050 = vmatpush1.bf16.msra.mxu0 %v2756
  %3051 = vmatprep.subr.bf16.mxu0 %v2761
  %3052 = vmatpush1.bf16.msra.mxu0 %v2760
  %3053 = vmatprep.subr.bf16.mxu0 %v2765
  %3054 = vmatpush1.bf16.msra.mxu0 %v2764
  %3055 = vmatprep.mubr.bf16.mxu0 %v2125
  %3056 = vmatmul.mubr.bf16.gmra.mrb[0].mxu0 %v2124
  %v3057 = vpop.f32.mrb[0].mxu0
  %v3058 = vadd.f32 %v3015, %v3057
  %v3059 = vpop.f32.mrb[0].mxu0
  %v3060 = vadd.f32 %v3017, %v3059
  %v3061 = vpop.f32.mrb[0].mxu0
  %v3062 = vadd.f32 %v3019, %v3061
  %v3063 = vpop.f32.mrb[0].mxu0
  %v3064 = vadd.f32 %v3021, %v3063
  %3065 = vdwg.mxu0
  %v3066 = vpack.c.bf16 %v2976, %v2972
  %v3067 = vpack.c.bf16 %v2978, %v2974
  %v3068 = vpack.c.bf16 %v3062, %v3058
  %v3069 = vpack.c.bf16 %v3064, %v3060
  %v3070 = vld [vmem:[%s7] sm:$0xf]
  %v3073 = vunpack.c.l.s4 1966171168
  %v3074 = vunpack.c.0.s8 %v3073
  %v3075 = vlaneseq
  %v3076 = vshrl.u32 %v3075, 7
  %v3077 = vsub.s32 %v3074, %v3076
  %v3078 = vrot.slane %v3070, %v3077
  %v3079 = vcombine.high %v3078, %v3078
  %v3081 = vunpack.c.l.s4 1966171168
  %v3082 = vunpack.c.0.s8 %v3081
  %v3083 = vlaneseq
  %v3084 = vshrl.u32 %v3083, 7
  %v3085 = vsub.s32 %v3082, %v3084
  %v3086 = vrot.slane %v3078, %v3085
  %v3088 = vunpack.c.l.s4 1966171168
  %v3089 = vunpack.c.0.s8 %v3088
  %v3090 = vlaneseq
  %v3091 = vshrl.u32 %v3090, 7
  %v3092 = vsub.s32 %v3089, %v3091
  %v3093 = vrot.slane %v3079, %v3092
  %v3094 = vcombine.high %v3086, %v3086
  %v3095 = vcombine.high %v3093, %v3093
  %3100 = vmatprep.subr.bf16.mxu0 %v3067
  %3101 = vmatpush1.bf16.xpose.msra.mxu0 %v3066
  %3102 = vmatprep.subr.bf16.mxu0 0
  %3103 = vmatpush1.bf16.xpose.msra.mxu0 0
  %3104 = vmatprep.subr.bf16.mxu0 0
  %3105 = vmatpush1.bf16.xpose.msra.mxu0 0
  %3106 = vmatprep.subr.bf16.mxu0 0
  %3107 = vmatpush1.bf16.xpose.msra.mxu0 0
  %3108 = vmatprep.subr.bf16.mxu0 0
  %3109 = vmatpush1.bf16.xpose.msra.mxu0 0
  %3110 = vmatprep.subr.bf16.mxu0 0
  %3111 = vmatpush1.bf16.xpose.msra.mxu0 0
  %3112 = vmatprep.subr.bf16.mxu0 0
  %3113 = vmatpush1.bf16.xpose.msra.mxu0 0
  %3114 = vmatprep.subr.bf16.mxu0 0
  %3115 = vmatpush1.bf16.xpose.msra.mxu0 0
  %3116 = vmatprep.subr.bf16.mxu0 0
  %3117 = vmatpush1.bf16.xpose.msra.mxu0 0
  %3118 = vmatprep.subr.bf16.mxu0 0
  %3119 = vmatpush1.bf16.xpose.msra.mxu0 0
  %3120 = vmatprep.subr.bf16.mxu0 0
  %3121 = vmatpush1.bf16.xpose.msra.mxu0 0
  %3122 = vmatprep.subr.bf16.mxu0 0
  %3123 = vmatpush1.bf16.xpose.msra.mxu0 0
  %3124 = vmatprep.subr.bf16.mxu0 0
  %3125 = vmatpush1.bf16.xpose.msra.mxu0 0
  %3126 = vmatprep.subr.bf16.mxu0 0
  %3127 = vmatpush1.bf16.xpose.msra.mxu0 0
  %3128 = vmatprep.subr.bf16.mxu0 0
  %3129 = vmatpush1.bf16.xpose.msra.mxu0 0
  %3130 = vmatprep.subr.bf16.mxu0 0
  %3131 = vmatpush1.bf16.xpose.msra.mxu0 0
  %3132 = vmatprep.mubr.bf16.mxu0 %v3093
  %3133 = vmatmul.mubr.bf16.gmra.mrb[0].mxu0 %v3086
  %v3134 = vpop.f32.mrb[0].mxu0
  %v3135 = vadd.f32 0.0, %v3134
  %v3136 = vpop.f32.mrb[0].mxu0
  %v3137 = vpop.f32.mrb[0].mxu0
  %v3138 = vpop.f32.mrb[0].mxu0
  %3139 = vdwg.mxu0
  %3140 = vmatprep.subr.bf16.mxu0 %v3069
  %3141 = vmatpush1.bf16.xpose.msra.mxu0 %v3068
  %3142 = vmatprep.subr.bf16.mxu0 0
  %3143 = vmatpush1.bf16.xpose.msra.mxu0 0
  %3144 = vmatprep.subr.bf16.mxu0 0
  %3145 = vmatpush1.bf16.xpose.msra.mxu0 0
  %3146 = vmatprep.subr.bf16.mxu0 0
  %3147 = vmatpush1.bf16.xpose.msra.mxu0 0
  %3148 = vmatprep.subr.bf16.mxu0 0
  %3149 = vmatpush1.bf16.xpose.msra.mxu0 0
  %3150 = vmatprep.subr.bf16.mxu0 0
  %3151 = vmatpush1.bf16.xpose.msra.mxu0 0
  %3152 = vmatprep.subr.bf16.mxu0 0
  %3153 = vmatpush1.bf16.xpose.msra.mxu0 0
  %3154 = vmatprep.subr.bf16.mxu0 0
  %3155 = vmatpush1.bf16.xpose.msra.mxu0 0
  %3156 = vmatprep.subr.bf16.mxu0 0
  %3157 = vmatpush1.bf16.xpose.msra.mxu0 0
  %3158 = vmatprep.subr.bf16.mxu0 0
  %3159 = vmatpush1.bf16.xpose.msra.mxu0 0
  %3160 = vmatprep.subr.bf16.mxu0 0
  %3161 = vmatpush1.bf16.xpose.msra.mxu0 0
  %3162 = vmatprep.subr.bf16.mxu0 0
  %3163 = vmatpush1.bf16.xpose.msra.mxu0 0
  %3164 = vmatprep.subr.bf16.mxu0 0
  %3165 = vmatpush1.bf16.xpose.msra.mxu0 0
  %3166 = vmatprep.subr.bf16.mxu0 0
  %3167 = vmatpush1.bf16.xpose.msra.mxu0 0
  %3168 = vmatprep.subr.bf16.mxu0 0
  %3169 = vmatpush1.bf16.xpose.msra.mxu0 0
  %3170 = vmatprep.subr.bf16.mxu0 0
  %3171 = vmatpush1.bf16.xpose.msra.mxu0 0
  %3172 = vmatprep.mubr.bf16.mxu0 %v3095
  %3173 = vmatmul.mubr.bf16.gmra.mrb[0].mxu0 %v3094
  %v3174 = vpop.f32.mrb[0].mxu0
  %v3175 = vadd.f32 %v3135, %v3174
  %v3176 = vpop.f32.mrb[0].mxu0
  %v3177 = vpop.f32.mrb[0].mxu0
  %v3178 = vpop.f32.mrb[0].mxu0
  %3179 = vdwg.mxu0
  %v3180 = vld [vmem:[%s8] sm:$0xf]
  %v3181 = vld [vmem:[%s8 + $0x4] sm:$0xf]
  %v3182 = vld [vmem:[%s8 + $0x8] sm:$0xf]
  %v3183 = vld [vmem:[%s8 + $0xc] sm:$0xf]
  %v3184 = vld [vmem:[%s8 + $0x10] sm:$0xf]
  %v3185 = vld [vmem:[%s8 + $0x14] sm:$0xf]
  %v3186 = vld [vmem:[%s8 + $0x18] sm:$0xf]
  %v3187 = vld [vmem:[%s8 + $0x1c] sm:$0xf]
  %v3188 = vld [vmem:[%s8 + $0x20] sm:$0xf]
  %v3189 = vld [vmem:[%s8 + $0x24] sm:$0xf]
  %v3190 = vld [vmem:[%s8 + $0x28] sm:$0xf]
  %v3191 = vld [vmem:[%s8 + $0x2c] sm:$0xf]
  %v3192 = vld [vmem:[%s8 + $0x30] sm:$0xf]
  %v3193 = vld [vmem:[%s8 + $0x34] sm:$0xf]
  %v3194 = vld [vmem:[%s8 + $0x38] sm:$0xf]
  %v3195 = vld [vmem:[%s8 + $0x3c] sm:$0xf]
  %v3196 = vld [vmem:[%s8 + $0x40] sm:$0xf]
  %v3197 = vld [vmem:[%s8 + $0x44] sm:$0xf]
  %v3198 = vld [vmem:[%s8 + $0x48] sm:$0xf]
  %v3199 = vld [vmem:[%s8 + $0x4c] sm:$0xf]
  %v3200 = vld [vmem:[%s8 + $0x50] sm:$0xf]
  %v3201 = vld [vmem:[%s8 + $0x54] sm:$0xf]
  %v3202 = vld [vmem:[%s8 + $0x58] sm:$0xf]
  %v3203 = vld [vmem:[%s8 + $0x5c] sm:$0xf]
  %v3204 = vld [vmem:[%s8 + $0x60] sm:$0xf]
  %v3205 = vld [vmem:[%s8 + $0x64] sm:$0xf]
  %v3206 = vld [vmem:[%s8 + $0x68] sm:$0xf]
  %v3207 = vld [vmem:[%s8 + $0x6c] sm:$0xf]
  %v3208 = vld [vmem:[%s8 + $0x70] sm:$0xf]
  %v3209 = vld [vmem:[%s8 + $0x74] sm:$0xf]
  %v3210 = vld [vmem:[%s8 + $0x78] sm:$0xf]
  %v3211 = vld [vmem:[%s8 + $0x7c] sm:$0xf]
  %v3212 = vld [vmem:[%s8 + $0x80] sm:$0xf]
  %v3213 = vld [vmem:[%s8 + $0x84] sm:$0xf]
  %v3214 = vld [vmem:[%s8 + $0x88] sm:$0xf]
  %v3215 = vld [vmem:[%s8 + $0x8c] sm:$0xf]
  %v3216 = vld [vmem:[%s8 + $0x90] sm:$0xf]
  %v3217 = vld [vmem:[%s8 + $0x94] sm:$0xf]
  %v3218 = vld [vmem:[%s8 + $0x98] sm:$0xf]
  %v3219 = vld [vmem:[%s8 + $0x9c] sm:$0xf]
  %v3220 = vld [vmem:[%s8 + $0xa0] sm:$0xf]
  %v3221 = vld [vmem:[%s8 + $0xa4] sm:$0xf]
  %v3222 = vld [vmem:[%s8 + $0xa8] sm:$0xf]
  %v3223 = vld [vmem:[%s8 + $0xac] sm:$0xf]
  %v3224 = vld [vmem:[%s8 + $0xb0] sm:$0xf]
  %v3225 = vld [vmem:[%s8 + $0xb4] sm:$0xf]
  %v3226 = vld [vmem:[%s8 + $0xb8] sm:$0xf]
  %v3227 = vld [vmem:[%s8 + $0xbc] sm:$0xf]
  %v3228 = vld [vmem:[%s8 + $0xc0] sm:$0xf]
  %v3229 = vld [vmem:[%s8 + $0xc4] sm:$0xf]
  %v3230 = vld [vmem:[%s8 + $0xc8] sm:$0xf]
  %v3231 = vld [vmem:[%s8 + $0xcc] sm:$0xf]
  %v3232 = vld [vmem:[%s8 + $0xd0] sm:$0xf]
  %v3233 = vld [vmem:[%s8 + $0xd4] sm:$0xf]
  %v3234 = vld [vmem:[%s8 + $0xd8] sm:$0xf]
  %v3235 = vld [vmem:[%s8 + $0xdc] sm:$0xf]
  %v3236 = vld [vmem:[%s8 + $0xe0] sm:$0xf]
  %v3237 = vld [vmem:[%s8 + $0xe4] sm:$0xf]
  %v3238 = vld [vmem:[%s8 + $0xe8] sm:$0xf]
  %v3239 = vld [vmem:[%s8 + $0xec] sm:$0xf]
  %v3240 = vld [vmem:[%s8 + $0xf0] sm:$0xf]
  %v3241 = vld [vmem:[%s8 + $0xf4] sm:$0xf]
  %v3242 = vld [vmem:[%s8 + $0xf8] sm:$0xf]
  %v3243 = vld [vmem:[%s8 + $0xfc] sm:$0xf]
  %v3308 = vunpack.c.l.b16 %v3180
  %v3309 = vunpack.c.l.b16 %v3181
  %v3310 = vunpack.c.l.b16 %v3182
  %v3311 = vunpack.c.l.b16 %v3183
  %v3312 = vunpack.c.l.b16 %v3184
  %v3313 = vunpack.c.l.b16 %v3185
  %v3314 = vunpack.c.l.b16 %v3186
  %v3315 = vunpack.c.l.b16 %v3187
  %v3316 = vunpack.c.l.b16 %v3188
  %v3317 = vunpack.c.l.b16 %v3189
  %v3318 = vunpack.c.l.b16 %v3190
  %v3319 = vunpack.c.l.b16 %v3191
  %v3320 = vunpack.c.l.b16 %v3192
  %v3321 = vunpack.c.l.b16 %v3193
  %v3322 = vunpack.c.l.b16 %v3194
  %v3323 = vunpack.c.l.b16 %v3195
  %v3324 = vunpack.c.l.b16 %v3196
  %v3325 = vunpack.c.l.b16 %v3197
  %v3326 = vunpack.c.l.b16 %v3198
  %v3327 = vunpack.c.l.b16 %v3199
  %v3328 = vunpack.c.l.b16 %v3200
  %v3329 = vunpack.c.l.b16 %v3201
  %v3330 = vunpack.c.l.b16 %v3202
  %v3331 = vunpack.c.l.b16 %v3203
  %v3332 = vunpack.c.l.b16 %v3204
  %v3333 = vunpack.c.l.b16 %v3205
  %v3334 = vunpack.c.l.b16 %v3206
  %v3335 = vunpack.c.l.b16 %v3207
  %v3336 = vunpack.c.l.b16 %v3208
  %v3337 = vunpack.c.l.b16 %v3209
  %v3338 = vunpack.c.l.b16 %v3210
  %v3339 = vunpack.c.l.b16 %v3211
  %v3340 = vunpack.c.l.b16 %v3212
  %v3341 = vunpack.c.l.b16 %v3213
  %v3342 = vunpack.c.l.b16 %v3214
  %v3343 = vunpack.c.l.b16 %v3215
  %v3344 = vunpack.c.l.b16 %v3216
  %v3345 = vunpack.c.l.b16 %v3217
  %v3346 = vunpack.c.l.b16 %v3218
  %v3347 = vunpack.c.l.b16 %v3219
  %v3348 = vunpack.c.l.b16 %v3220
  %v3349 = vunpack.c.l.b16 %v3221
  %v3350 = vunpack.c.l.b16 %v3222
  %v3351 = vunpack.c.l.b16 %v3223
  %v3352 = vunpack.c.l.b16 %v3224
  %v3353 = vunpack.c.l.b16 %v3225
  %v3354 = vunpack.c.l.b16 %v3226
  %v3355 = vunpack.c.l.b16 %v3227
  %v3356 = vunpack.c.l.b16 %v3228
  %v3357 = vunpack.c.l.b16 %v3229
  %v3358 = vunpack.c.l.b16 %v3230
  %v3359 = vunpack.c.l.b16 %v3231
  %v3360 = vunpack.c.l.b16 %v3232
  %v3361 = vunpack.c.l.b16 %v3233
  %v3362 = vunpack.c.l.b16 %v3234
  %v3363 = vunpack.c.l.b16 %v3235
  %v3364 = vunpack.c.l.b16 %v3236
  %v3365 = vunpack.c.l.b16 %v3237
  %v3366 = vunpack.c.l.b16 %v3238
  %v3367 = vunpack.c.l.b16 %v3239
  %v3368 = vunpack.c.l.b16 %v3240
  %v3369 = vunpack.c.l.b16 %v3241
  %v3370 = vunpack.c.l.b16 %v3242
  %v3371 = vunpack.c.l.b16 %v3243
  %v3372 = vpack.c.b16 %v3309, %v3308
  %v3373 = vpack.c.b16 %v3311, %v3310
  %v3374 = vpack.c.b16 %v3313, %v3312
  %v3375 = vpack.c.b16 %v3315, %v3314
  %v3376 = vpack.c.b16 %v3317, %v3316
  %v3377 = vpack.c.b16 %v3319, %v3318
  %v3378 = vpack.c.b16 %v3321, %v3320
  %v3379 = vpack.c.b16 %v3323, %v3322
  %v3380 = vpack.c.b16 %v3325, %v3324
  %v3381 = vpack.c.b16 %v3327, %v3326
  %v3382 = vpack.c.b16 %v3329, %v3328
  %v3383 = vpack.c.b16 %v3331, %v3330
  %v3384 = vpack.c.b16 %v3333, %v3332
  %v3385 = vpack.c.b16 %v3335, %v3334
  %v3386 = vpack.c.b16 %v3337, %v3336
  %v3387 = vpack.c.b16 %v3339, %v3338
  %v3388 = vpack.c.b16 %v3341, %v3340
  %v3389 = vpack.c.b16 %v3343, %v3342
  %v3390 = vpack.c.b16 %v3345, %v3344
  %v3391 = vpack.c.b16 %v3347, %v3346
  %v3392 = vpack.c.b16 %v3349, %v3348
  %v3393 = vpack.c.b16 %v3351, %v3350
  %v3394 = vpack.c.b16 %v3353, %v3352
  %v3395 = vpack.c.b16 %v3355, %v3354
  %v3396 = vpack.c.b16 %v3357, %v3356
  %v3397 = vpack.c.b16 %v3359, %v3358
  %v3398 = vpack.c.b16 %v3361, %v3360
  %v3399 = vpack.c.b16 %v3363, %v3362
  %v3400 = vpack.c.b16 %v3365, %v3364
  %v3401 = vpack.c.b16 %v3367, %v3366
  %v3402 = vpack.c.b16 %v3369, %v3368
  %v3403 = vpack.c.b16 %v3371, %v3370
  %3436 = vmatprep.subr.bf16.mxu0 0
  %3437 = vmatpush1.bf16.msra.mxu0 %v3372
  %3438 = vmatprep.subr.bf16.mxu0 0
  %3439 = vmatpush1.bf16.msra.mxu0 %v3373
  %3440 = vmatprep.subr.bf16.mxu0 0
  %3441 = vmatpush1.bf16.msra.mxu0 %v3374
  %3442 = vmatprep.subr.bf16.mxu0 0
  %3443 = vmatpush1.bf16.msra.mxu0 %v3375
  %3444 = vmatprep.subr.bf16.mxu0 0
  %3445 = vmatpush1.bf16.msra.mxu0 %v3376
  %3446 = vmatprep.subr.bf16.mxu0 0
  %3447 = vmatpush1.bf16.msra.mxu0 %v3377
  %3448 = vmatprep.subr.bf16.mxu0 0
  %3449 = vmatpush1.bf16.msra.mxu0 %v3378
  %3450 = vmatprep.subr.bf16.mxu0 0
  %3451 = vmatpush1.bf16.msra.mxu0 %v3379
  %3452 = vmatprep.subr.bf16.mxu0 0
  %3453 = vmatpush1.bf16.msra.mxu0 %v3380
  %3454 = vmatprep.subr.bf16.mxu0 0
  %3455 = vmatpush1.bf16.msra.mxu0 %v3381
  %3456 = vmatprep.subr.bf16.mxu0 0
  %3457 = vmatpush1.bf16.msra.mxu0 %v3382
  %3458 = vmatprep.subr.bf16.mxu0 0
  %3459 = vmatpush1.bf16.msra.mxu0 %v3383
  %3460 = vmatprep.subr.bf16.mxu0 0
  %3461 = vmatpush1.bf16.msra.mxu0 %v3384
  %3462 = vmatprep.subr.bf16.mxu0 0
  %3463 = vmatpush1.bf16.msra.mxu0 %v3385
  %3464 = vmatprep.subr.bf16.mxu0 0
  %3465 = vmatpush1.bf16.msra.mxu0 %v3386
  %3466 = vmatprep.subr.bf16.mxu0 0
  %3467 = vmatpush1.bf16.msra.mxu0 %v3387
  %3468 = vmatprep.mubr.bf16.mxu0 %v3067
  %3469 = vmatmul.mubr.bf16.gmra.mrb[0].mxu0 %v3066
  %v3470 = vpop.f32.mrb[0].mxu0
  %v3471 = vadd.f32 0.0, %v3470
  %v3472 = vpop.f32.mrb[0].mxu0
  %v3473 = vpop.f32.mrb[0].mxu0
  %v3474 = vadd.f32 0.0, %v3473
  %v3475 = vpop.f32.mrb[0].mxu0
  %3476 = vdwg.mxu0
  %3477 = vmatprep.subr.bf16.mxu0 0
  %3478 = vmatpush1.bf16.msra.mxu0 %v3388
  %3479 = vmatprep.subr.bf16.mxu0 0
  %3480 = vmatpush1.bf16.msra.mxu0 %v3389
  %3481 = vmatprep.subr.bf16.mxu0 0
  %3482 = vmatpush1.bf16.msra.mxu0 %v3390
  %3483 = vmatprep.subr.bf16.mxu0 0
  %3484 = vmatpush1.bf16.msra.mxu0 %v3391
  %3485 = vmatprep.subr.bf16.mxu0 0
  %3486 = vmatpush1.bf16.msra.mxu0 %v3392
  %3487 = vmatprep.subr.bf16.mxu0 0
  %3488 = vmatpush1.bf16.msra.mxu0 %v3393
  %3489 = vmatprep.subr.bf16.mxu0 0
  %3490 = vmatpush1.bf16.msra.mxu0 %v3394
  %3491 = vmatprep.subr.bf16.mxu0 0
  %3492 = vmatpush1.bf16.msra.mxu0 %v3395
  %3493 = vmatprep.subr.bf16.mxu0 0
  %3494 = vmatpush1.bf16.msra.mxu0 %v3396
  %3495 = vmatprep.subr.bf16.mxu0 0
  %3496 = vmatpush1.bf16.msra.mxu0 %v3397
  %3497 = vmatprep.subr.bf16.mxu0 0
  %3498 = vmatpush1.bf16.msra.mxu0 %v3398
  %3499 = vmatprep.subr.bf16.mxu0 0
  %3500 = vmatpush1.bf16.msra.mxu0 %v3399
  %3501 = vmatprep.subr.bf16.mxu0 0
  %3502 = vmatpush1.bf16.msra.mxu0 %v3400
  %3503 = vmatprep.subr.bf16.mxu0 0
  %3504 = vmatpush1.bf16.msra.mxu0 %v3401
  %3505 = vmatprep.subr.bf16.mxu0 0
  %3506 = vmatpush1.bf16.msra.mxu0 %v3402
  %3507 = vmatprep.subr.bf16.mxu0 0
  %3508 = vmatpush1.bf16.msra.mxu0 %v3403
  %3509 = vmatprep.mubr.bf16.mxu0 %v3069
  %3510 = vmatmul.mubr.bf16.gmra.mrb[0].mxu0 %v3068
  %v3511 = vpop.f32.mrb[0].mxu0
  %v3512 = vadd.f32 %v3471, %v3511
  %v3513 = vpop.f32.mrb[0].mxu0
  %v3514 = vpop.f32.mrb[0].mxu0
  %v3515 = vadd.f32 %v3474, %v3514
  %v3516 = vpop.f32.mrb[0].mxu0
  %3517 = vdwg.mxu0
  %3519 = vset.pattern.permute.xlu0 0
  %3520 = vperm.xlu0 %3519, %v3512
  %v3521 = vpop.permute.xlu0 %3520
  %3524 = vset.pattern.permute.xlu0 0
  %3525 = vperm.xlu0 %3524, %v3515
  %v3526 = vpop.permute.xlu0 %3525
  %v3528 = vlaneseq
  %v3529 = vshrl.u32 %v3528, 7
  %v3530 = vsub.s32 0, %v3529
  %v3531 = vrot.slane %v3175, %v3530
  %v3532 = vadd.f32 %v3521, %v3531
  %v3533 = vadd.f32 %v3526, %v3531
  %vm3534 = vcmp.gt.f32.partialorder %v3532, 0.0
  %vm3535 = vcmp.gt.f32.partialorder %v3533, 0.0
  %v3536 = vmul.f32 %v3532, 0.2
  %v3537 = vmul.f32 %v3533, 0.2
  %v3538 = vsel %vm3534, %v3532, %v3536
  %v3539 = vsel %vm3535, %v3533, %v3537
  %v3540 = vsel %vm90, %v3538, -1e+30
  %v3541 = vsel %vm91, %v3539, -1e+30
  %v3542 = vsel %vm1363, %v3540, -inf
  %3543 = vmax.xlane.f32.xlu0 %v3542
  %v3544 = vpop.xlane.xlu0 %3543
  %v3545 = vsel %vm1363, %v3541, -inf
  %3546 = vmax.xlane.f32.xlu0 %v3545
  %v3547 = vpop.xlane.xlu0 %3546
  %v3548 = vsub.f32 %v3540, %v3544
  %v3549 = vsub.f32 %v3541, %v3547
  %v3550 = vmul.f32 %v3548, 1.442695
  %v3551 = vpow.pop %v3550
  %v3552 = vmul.f32 %v3549, 1.442695
  %v3553 = vpow.pop %v3552
  %v3554 = vsel %vm1363, %v3551, 0.0
  %3555 = vadd.xlane.f32.xlu0 %v3554
  %v3556 = vpop.xlane.xlu0 %3555
  %v3557 = vsel %vm1363, %v3553, 0.0
  %3558 = vadd.xlane.f32.xlu0 %v3557
  %v3559 = vpop.xlane.xlu0 %3558
  %v3560 = vpack.c.bf16 %v3553, %v3551
  %v3562 = vsel %vm1363, %v3560, 0
  %3564 = vmatprep.subr.bf16.mxu0 %v3067
  %3565 = vmatpush1.bf16.msra.mxu0 %v3066
  %3566 = vmatprep.subr.bf16.mxu0 0
  %3567 = vmatpush1.bf16.msra.mxu0 0
  %3568 = vmatprep.subr.bf16.mxu0 0
  %3569 = vmatpush1.bf16.msra.mxu0 0
  %3570 = vmatprep.subr.bf16.mxu0 0
  %3571 = vmatpush1.bf16.msra.mxu0 0
  %3572 = vmatprep.subr.bf16.mxu0 0
  %3573 = vmatpush1.bf16.msra.mxu0 0
  %3574 = vmatprep.subr.bf16.mxu0 0
  %3575 = vmatpush1.bf16.msra.mxu0 0
  %3576 = vmatprep.subr.bf16.mxu0 0
  %3577 = vmatpush1.bf16.msra.mxu0 0
  %3578 = vmatprep.subr.bf16.mxu0 0
  %3579 = vmatpush1.bf16.msra.mxu0 0
  %3580 = vmatprep.subr.bf16.mxu0 0
  %3581 = vmatpush1.bf16.msra.mxu0 0
  %3582 = vmatprep.subr.bf16.mxu0 0
  %3583 = vmatpush1.bf16.msra.mxu0 0
  %3584 = vmatprep.subr.bf16.mxu0 0
  %3585 = vmatpush1.bf16.msra.mxu0 0
  %3586 = vmatprep.subr.bf16.mxu0 0
  %3587 = vmatpush1.bf16.msra.mxu0 0
  %3588 = vmatprep.subr.bf16.mxu0 0
  %3589 = vmatpush1.bf16.msra.mxu0 0
  %3590 = vmatprep.subr.bf16.mxu0 0
  %3591 = vmatpush1.bf16.msra.mxu0 0
  %3592 = vmatprep.subr.bf16.mxu0 0
  %3593 = vmatpush1.bf16.msra.mxu0 0
  %3594 = vmatprep.subr.bf16.mxu0 0
  %3595 = vmatpush1.bf16.msra.mxu0 0
  %3596 = vmatprep.mubr.bf16.mxu0 0
  %3597 = vmatmul.mubr.bf16.gmra.mrb[0].mxu0 %v3562
  %v3598 = vpop.f32.mrb[0].mxu0
  %v3599 = vadd.f32 0.0, %v3598
  %v3600 = vpop.f32.mrb[0].mxu0
  %v3601 = vadd.f32 0.0, %v3600
  %v3602 = vpop.f32.mrb[0].mxu0
  %v3603 = vadd.f32 0.0, %v3602
  %v3604 = vpop.f32.mrb[0].mxu0
  %v3605 = vadd.f32 0.0, %v3604
  %3606 = vdwg.mxu0
  %v3607 = vrcp.pop %v3556
  %v3608 = vrcp.pop %v3559
  %v3609 = vmul.f32 %v3599, %v3607
  %v3610 = vmul.f32 %v3601, %v3607
  %v3611 = vmul.f32 %v3603, %v3608
  %v3612 = vmul.f32 %v3605, %v3608
  %v3613 = vadd.f32 %v3609, 0.0
  %v3614 = vadd.f32 %v3610, 0.0
  %v3615 = vadd.f32 %v3611, 0.0
  %v3616 = vadd.f32 %v3612, 0.0
  %3617 = vset.pattern.permute.xlu0 1
  %3618 = vperm.xlu0 %3617, %v3512
  %v3619 = vpop.permute.xlu0 %3618
  %3621 = vset.pattern.permute.xlu0 1
  %3622 = vperm.xlu0 %3621, %v3515
  %v3623 = vpop.permute.xlu0 %3622
  %v3625 = vlaneseq
  %v3626 = vshrl.u32 %v3625, 7
  %v3627 = vsub.s32 1, %v3626
  %v3628 = vrot.slane %v3175, %v3627
  %v3629 = vadd.f32 %v3619, %v3628
  %v3630 = vadd.f32 %v3623, %v3628
  %vm3631 = vcmp.gt.f32.partialorder %v3629, 0.0
  %vm3632 = vcmp.gt.f32.partialorder %v3630, 0.0
  %v3633 = vmul.f32 %v3629, 0.2
  %v3634 = vmul.f32 %v3630, 0.2
  %v3635 = vsel %vm3631, %v3629, %v3633
  %v3636 = vsel %vm3632, %v3630, %v3634
  %v3637 = vsel %vm90, %v3635, -1e+30
  %v3638 = vsel %vm91, %v3636, -1e+30
  %v3639 = vsel %vm1363, %v3637, -inf
  %3640 = vmax.xlane.f32.xlu0 %v3639
  %v3641 = vpop.xlane.xlu0 %3640
  %v3642 = vsel %vm1363, %v3638, -inf
  %3643 = vmax.xlane.f32.xlu0 %v3642
  %v3644 = vpop.xlane.xlu0 %3643
  %v3645 = vsub.f32 %v3637, %v3641
  %v3646 = vsub.f32 %v3638, %v3644
  %v3647 = vmul.f32 %v3645, 1.442695
  %v3648 = vpow.pop %v3647
  %v3649 = vmul.f32 %v3646, 1.442695
  %v3650 = vpow.pop %v3649
  %v3651 = vsel %vm1363, %v3648, 0.0
  %3652 = vadd.xlane.f32.xlu0 %v3651
  %v3653 = vpop.xlane.xlu0 %3652
  %v3654 = vsel %vm1363, %v3650, 0.0
  %3655 = vadd.xlane.f32.xlu0 %v3654
  %v3656 = vpop.xlane.xlu0 %3655
  %v3657 = vpack.c.bf16 %v3650, %v3648
  %v3659 = vsel %vm1363, %v3657, 0
  %3661 = vmatprep.subr.bf16.mxu0 %v3069
  %3662 = vmatpush1.bf16.msra.mxu0 %v3068
  %3663 = vmatprep.subr.bf16.mxu0 0
  %3664 = vmatpush1.bf16.msra.mxu0 0
  %3665 = vmatprep.subr.bf16.mxu0 0
  %3666 = vmatpush1.bf16.msra.mxu0 0
  %3667 = vmatprep.subr.bf16.mxu0 0
  %3668 = vmatpush1.bf16.msra.mxu0 0
  %3669 = vmatprep.subr.bf16.mxu0 0
  %3670 = vmatpush1.bf16.msra.mxu0 0
  %3671 = vmatprep.subr.bf16.mxu0 0
  %3672 = vmatpush1.bf16.msra.mxu0 0
  %3673 = vmatprep.subr.bf16.mxu0 0
  %3674 = vmatpush1.bf16.msra.mxu0 0
  %3675 = vmatprep.subr.bf16.mxu0 0
  %3676 = vmatpush1.bf16.msra.mxu0 0
  %3677 = vmatprep.subr.bf16.mxu0 0
  %3678 = vmatpush1.bf16.msra.mxu0 0
  %3679 = vmatprep.subr.bf16.mxu0 0
  %3680 = vmatpush1.bf16.msra.mxu0 0
  %3681 = vmatprep.subr.bf16.mxu0 0
  %3682 = vmatpush1.bf16.msra.mxu0 0
  %3683 = vmatprep.subr.bf16.mxu0 0
  %3684 = vmatpush1.bf16.msra.mxu0 0
  %3685 = vmatprep.subr.bf16.mxu0 0
  %3686 = vmatpush1.bf16.msra.mxu0 0
  %3687 = vmatprep.subr.bf16.mxu0 0
  %3688 = vmatpush1.bf16.msra.mxu0 0
  %3689 = vmatprep.subr.bf16.mxu0 0
  %3690 = vmatpush1.bf16.msra.mxu0 0
  %3691 = vmatprep.subr.bf16.mxu0 0
  %3692 = vmatpush1.bf16.msra.mxu0 0
  %3693 = vmatprep.mubr.bf16.mxu0 0
  %3694 = vmatmul.mubr.bf16.gmra.mrb[0].mxu0 %v3659
  %v3695 = vpop.f32.mrb[0].mxu0
  %v3696 = vadd.f32 0.0, %v3695
  %v3697 = vpop.f32.mrb[0].mxu0
  %v3698 = vadd.f32 0.0, %v3697
  %v3699 = vpop.f32.mrb[0].mxu0
  %v3700 = vadd.f32 0.0, %v3699
  %v3701 = vpop.f32.mrb[0].mxu0
  %v3702 = vadd.f32 0.0, %v3701
  %3703 = vdwg.mxu0
  %v3704 = vrcp.pop %v3653
  %v3705 = vrcp.pop %v3656
  %v3706 = vmul.f32 %v3696, %v3704
  %v3707 = vmul.f32 %v3698, %v3704
  %v3708 = vmul.f32 %v3700, %v3705
  %v3709 = vmul.f32 %v3702, %v3705
  %v3710 = vadd.f32 %v3613, %v3706
  %v3711 = vadd.f32 %v3614, %v3707
  %v3712 = vadd.f32 %v3615, %v3708
  %v3713 = vadd.f32 %v3616, %v3709
  %v3714 = vmul.f32 %v3710, 0.5
  %v3715 = vmul.f32 %v3711, 0.5
  %v3716 = vmul.f32 %v3712, 0.5
  %v3717 = vmul.f32 %v3713, 0.5
  %v3718 = vld [vmem:[%s9] sm:$0x3]
  %v3720 = vlaneseq
  %v3721 = vshrl.u32 %v3720, 7
  %v3722 = vsub.s32 0, %v3721
  %v3723 = vrot.slane %v3718, %v3722
  %v3724 = vlaneseq
  %v3725 = vshrl.u32 %v3724, 7
  %v3726 = vsub.s32 1, %v3725
  %v3727 = vrot.slane %v3718, %v3726
  %v3730 = vadd.f32 %v3714, %v3723
  %v3731 = vadd.f32 %v3715, %v3727
  %v3732 = vadd.f32 %v3716, %v3723
  %v3733 = vadd.f32 %v3717, %v3727
  %v3734 = vpack.c.bf16 %v3732, %v3730
  %v3735 = vpack.c.bf16 %v3733, %v3731
  %v3736 = vld [vmem:[%s10] sm:$0xff]
  %v3737 = vld [vmem:[%s10 + $0x8] sm:$0xff]
  %v3738 = vld [vmem:[%s10 + $0x10] sm:$0xff]
  %v3739 = vld [vmem:[%s10 + $0x18] sm:$0xff]
  %v3740 = vld [vmem:[%s10 + $0x20] sm:$0xff]
  %v3741 = vld [vmem:[%s10 + $0x28] sm:$0xff]
  %v3742 = vld [vmem:[%s10 + $0x30] sm:$0xff]
  %v3743 = vld [vmem:[%s10 + $0x38] sm:$0xff]
  %v3744 = vld [vmem:[%s10 + $0x40] sm:$0xff]
  %v3745 = vld [vmem:[%s10 + $0x48] sm:$0xff]
  %v3746 = vld [vmem:[%s10 + $0x50] sm:$0xff]
  %v3747 = vld [vmem:[%s10 + $0x58] sm:$0xff]
  %v3748 = vld [vmem:[%s10 + $0x60] sm:$0xff]
  %v3749 = vld [vmem:[%s10 + $0x68] sm:$0xff]
  %v3750 = vld [vmem:[%s10 + $0x70] sm:$0xff]
  %v3751 = vld [vmem:[%s10 + $0x78] sm:$0xff]
  %v3752 = vld [vmem:[%s10 + $0x80] sm:$0xff]
  %v3753 = vld [vmem:[%s10 + $0x88] sm:$0xff]
  %v3754 = vld [vmem:[%s10 + $0x90] sm:$0xff]
  %v3755 = vld [vmem:[%s10 + $0x98] sm:$0xff]
  %v3756 = vld [vmem:[%s10 + $0xa0] sm:$0xff]
  %v3757 = vld [vmem:[%s10 + $0xa8] sm:$0xff]
  %v3758 = vld [vmem:[%s10 + $0xb0] sm:$0xff]
  %v3759 = vld [vmem:[%s10 + $0xb8] sm:$0xff]
  %v3760 = vld [vmem:[%s10 + $0xc0] sm:$0xff]
  %v3761 = vld [vmem:[%s10 + $0xc8] sm:$0xff]
  %v3762 = vld [vmem:[%s10 + $0xd0] sm:$0xff]
  %v3763 = vld [vmem:[%s10 + $0xd8] sm:$0xff]
  %v3764 = vld [vmem:[%s10 + $0xe0] sm:$0xff]
  %v3765 = vld [vmem:[%s10 + $0xe8] sm:$0xff]
  %v3766 = vld [vmem:[%s10 + $0xf0] sm:$0xff]
  %v3767 = vld [vmem:[%s10 + $0xf8] sm:$0xff]
  %v3800 = vunpack.c.l.b16 %v3736
  %v3801 = vunpack.c.h.b16 %v3736
  %v3802 = vunpack.c.l.b16 %v3737
  %v3803 = vunpack.c.h.b16 %v3737
  %v3804 = vunpack.c.l.b16 %v3738
  %v3805 = vunpack.c.h.b16 %v3738
  %v3806 = vunpack.c.l.b16 %v3739
  %v3807 = vunpack.c.h.b16 %v3739
  %v3808 = vunpack.c.l.b16 %v3740
  %v3809 = vunpack.c.h.b16 %v3740
  %v3810 = vunpack.c.l.b16 %v3741
  %v3811 = vunpack.c.h.b16 %v3741
  %v3812 = vunpack.c.l.b16 %v3742
  %v3813 = vunpack.c.h.b16 %v3742
  %v3814 = vunpack.c.l.b16 %v3743
  %v3815 = vunpack.c.h.b16 %v3743
  %v3816 = vunpack.c.l.b16 %v3744
  %v3817 = vunpack.c.h.b16 %v3744
  %v3818 = vunpack.c.l.b16 %v3745
  %v3819 = vunpack.c.h.b16 %v3745
  %v3820 = vunpack.c.l.b16 %v3746
  %v3821 = vunpack.c.h.b16 %v3746
  %v3822 = vunpack.c.l.b16 %v3747
  %v3823 = vunpack.c.h.b16 %v3747
  %v3824 = vunpack.c.l.b16 %v3748
  %v3825 = vunpack.c.h.b16 %v3748
  %v3826 = vunpack.c.l.b16 %v3749
  %v3827 = vunpack.c.h.b16 %v3749
  %v3828 = vunpack.c.l.b16 %v3750
  %v3829 = vunpack.c.h.b16 %v3750
  %v3830 = vunpack.c.l.b16 %v3751
  %v3831 = vunpack.c.h.b16 %v3751
  %v3832 = vunpack.c.l.b16 %v3752
  %v3833 = vunpack.c.h.b16 %v3752
  %v3834 = vunpack.c.l.b16 %v3753
  %v3835 = vunpack.c.h.b16 %v3753
  %v3836 = vunpack.c.l.b16 %v3754
  %v3837 = vunpack.c.h.b16 %v3754
  %v3838 = vunpack.c.l.b16 %v3755
  %v3839 = vunpack.c.h.b16 %v3755
  %v3840 = vunpack.c.l.b16 %v3756
  %v3841 = vunpack.c.h.b16 %v3756
  %v3842 = vunpack.c.l.b16 %v3757
  %v3843 = vunpack.c.h.b16 %v3757
  %v3844 = vunpack.c.l.b16 %v3758
  %v3845 = vunpack.c.h.b16 %v3758
  %v3846 = vunpack.c.l.b16 %v3759
  %v3847 = vunpack.c.h.b16 %v3759
  %v3848 = vunpack.c.l.b16 %v3760
  %v3849 = vunpack.c.h.b16 %v3760
  %v3850 = vunpack.c.l.b16 %v3761
  %v3851 = vunpack.c.h.b16 %v3761
  %v3852 = vunpack.c.l.b16 %v3762
  %v3853 = vunpack.c.h.b16 %v3762
  %v3854 = vunpack.c.l.b16 %v3763
  %v3855 = vunpack.c.h.b16 %v3763
  %v3856 = vunpack.c.l.b16 %v3764
  %v3857 = vunpack.c.h.b16 %v3764
  %v3858 = vunpack.c.l.b16 %v3765
  %v3859 = vunpack.c.h.b16 %v3765
  %v3860 = vunpack.c.l.b16 %v3766
  %v3861 = vunpack.c.h.b16 %v3766
  %v3862 = vunpack.c.l.b16 %v3767
  %v3863 = vunpack.c.h.b16 %v3767
  %v3864 = vpack.c.b16 %v3802, %v3800
  %v3865 = vpack.c.b16 %v3803, %v3801
  %v3866 = vpack.c.b16 %v3806, %v3804
  %v3867 = vpack.c.b16 %v3807, %v3805
  %v3868 = vpack.c.b16 %v3810, %v3808
  %v3869 = vpack.c.b16 %v3811, %v3809
  %v3870 = vpack.c.b16 %v3814, %v3812
  %v3871 = vpack.c.b16 %v3815, %v3813
  %v3872 = vpack.c.b16 %v3818, %v3816
  %v3873 = vpack.c.b16 %v3819, %v3817
  %v3874 = vpack.c.b16 %v3822, %v3820
  %v3875 = vpack.c.b16 %v3823, %v3821
  %v3876 = vpack.c.b16 %v3826, %v3824
  %v3877 = vpack.c.b16 %v3827, %v3825
  %v3878 = vpack.c.b16 %v3830, %v3828
  %v3879 = vpack.c.b16 %v3831, %v3829
  %v3880 = vpack.c.b16 %v3834, %v3832
  %v3881 = vpack.c.b16 %v3835, %v3833
  %v3882 = vpack.c.b16 %v3838, %v3836
  %v3883 = vpack.c.b16 %v3839, %v3837
  %v3884 = vpack.c.b16 %v3842, %v3840
  %v3885 = vpack.c.b16 %v3843, %v3841
  %v3886 = vpack.c.b16 %v3846, %v3844
  %v3887 = vpack.c.b16 %v3847, %v3845
  %v3888 = vpack.c.b16 %v3850, %v3848
  %v3889 = vpack.c.b16 %v3851, %v3849
  %v3890 = vpack.c.b16 %v3854, %v3852
  %v3891 = vpack.c.b16 %v3855, %v3853
  %v3892 = vpack.c.b16 %v3858, %v3856
  %v3893 = vpack.c.b16 %v3859, %v3857
  %v3894 = vpack.c.b16 %v3862, %v3860
  %v3895 = vpack.c.b16 %v3863, %v3861
  %3928 = vmatprep.subr.bf16.mxu0 %v3865
  %3929 = vmatpush1.bf16.msra.mxu0 %v3864
  %3930 = vmatprep.subr.bf16.mxu0 %v3867
  %3931 = vmatpush1.bf16.msra.mxu0 %v3866
  %3932 = vmatprep.subr.bf16.mxu0 %v3869
  %3933 = vmatpush1.bf16.msra.mxu0 %v3868
  %3934 = vmatprep.subr.bf16.mxu0 %v3871
  %3935 = vmatpush1.bf16.msra.mxu0 %v3870
  %3936 = vmatprep.subr.bf16.mxu0 %v3873
  %3937 = vmatpush1.bf16.msra.mxu0 %v3872
  %3938 = vmatprep.subr.bf16.mxu0 %v3875
  %3939 = vmatpush1.bf16.msra.mxu0 %v3874
  %3940 = vmatprep.subr.bf16.mxu0 %v3877
  %3941 = vmatpush1.bf16.msra.mxu0 %v3876
  %3942 = vmatprep.subr.bf16.mxu0 %v3879
  %3943 = vmatpush1.bf16.msra.mxu0 %v3878
  %3944 = vmatprep.subr.bf16.mxu0 %v3881
  %3945 = vmatpush1.bf16.msra.mxu0 %v3880
  %3946 = vmatprep.subr.bf16.mxu0 %v3883
  %3947 = vmatpush1.bf16.msra.mxu0 %v3882
  %3948 = vmatprep.subr.bf16.mxu0 %v3885
  %3949 = vmatpush1.bf16.msra.mxu0 %v3884
  %3950 = vmatprep.subr.bf16.mxu0 %v3887
  %3951 = vmatpush1.bf16.msra.mxu0 %v3886
  %3952 = vmatprep.subr.bf16.mxu0 %v3889
  %3953 = vmatpush1.bf16.msra.mxu0 %v3888
  %3954 = vmatprep.subr.bf16.mxu0 %v3891
  %3955 = vmatpush1.bf16.msra.mxu0 %v3890
  %3956 = vmatprep.subr.bf16.mxu0 %v3893
  %3957 = vmatpush1.bf16.msra.mxu0 %v3892
  %3958 = vmatprep.subr.bf16.mxu0 %v3895
  %3959 = vmatpush1.bf16.msra.mxu0 %v3894
  %3960 = vmatprep.mubr.bf16.mxu0 %v3735
  %3961 = vmatmul.mubr.bf16.gmra.mrb[0].mxu0 %v3734
  %v3962 = vpop.f32.mrb[0].mxu0
  %v3963 = vadd.f32 0.0, %v3962
  %v3964 = vpop.f32.mrb[0].mxu0
  %v3965 = vadd.f32 0.0, %v3964
  %v3966 = vpop.f32.mrb[0].mxu0
  %v3967 = vadd.f32 0.0, %v3966
  %v3968 = vpop.f32.mrb[0].mxu0
  %v3969 = vadd.f32 0.0, %v3968
  %3970 = vdwg.mxu0
  %v3971 = vpack.c.bf16 %v3967, %v3963
  %v3972 = vpack.c.bf16 %v3969, %v3965
  %v3973 = vld [vmem:[%s11] sm:$0x3]
  %v3976 = vunpack.c.l.s4 1966171168
  %v3977 = vunpack.c.0.s8 %v3976
  %v3978 = vlaneseq
  %v3979 = vshrl.u32 %v3978, 7
  %v3980 = vsub.s32 %v3977, %v3979
  %v3981 = vrot.slane %v3973, %v3980
  %v3982 = vcombine.high %v3981, %v3981
  %v3984 = vunpack.c.l.s4 1966171168
  %v3985 = vunpack.c.0.s8 %v3984
  %v3986 = vlaneseq
  %v3987 = vshrl.u32 %v3986, 7
  %v3988 = vsub.s32 %v3985, %v3987
  %v3989 = vrot.slane %v3981, %v3988
  %v3991 = vunpack.c.l.s4 1966171168
  %v3992 = vunpack.c.0.s8 %v3991
  %v3993 = vlaneseq
  %v3994 = vshrl.u32 %v3993, 7
  %v3995 = vsub.s32 %v3992, %v3994
  %v3996 = vrot.slane %v3982, %v3995
  %3999 = vmatprep.subr.bf16.mxu0 %v3972
  %4000 = vmatpush1.bf16.xpose.msra.mxu0 %v3971
  %4001 = vmatprep.subr.bf16.mxu0 0
  %4002 = vmatpush1.bf16.xpose.msra.mxu0 0
  %4003 = vmatprep.subr.bf16.mxu0 0
  %4004 = vmatpush1.bf16.xpose.msra.mxu0 0
  %4005 = vmatprep.subr.bf16.mxu0 0
  %4006 = vmatpush1.bf16.xpose.msra.mxu0 0
  %4007 = vmatprep.subr.bf16.mxu0 0
  %4008 = vmatpush1.bf16.xpose.msra.mxu0 0
  %4009 = vmatprep.subr.bf16.mxu0 0
  %4010 = vmatpush1.bf16.xpose.msra.mxu0 0
  %4011 = vmatprep.subr.bf16.mxu0 0
  %4012 = vmatpush1.bf16.xpose.msra.mxu0 0
  %4013 = vmatprep.subr.bf16.mxu0 0
  %4014 = vmatpush1.bf16.xpose.msra.mxu0 0
  %4015 = vmatprep.subr.bf16.mxu0 0
  %4016 = vmatpush1.bf16.xpose.msra.mxu0 0
  %4017 = vmatprep.subr.bf16.mxu0 0
  %4018 = vmatpush1.bf16.xpose.msra.mxu0 0
  %4019 = vmatprep.subr.bf16.mxu0 0
  %4020 = vmatpush1.bf16.xpose.msra.mxu0 0
  %4021 = vmatprep.subr.bf16.mxu0 0
  %4022 = vmatpush1.bf16.xpose.msra.mxu0 0
  %4023 = vmatprep.subr.bf16.mxu0 0
  %4024 = vmatpush1.bf16.xpose.msra.mxu0 0
  %4025 = vmatprep.subr.bf16.mxu0 0
  %4026 = vmatpush1.bf16.xpose.msra.mxu0 0
  %4027 = vmatprep.subr.bf16.mxu0 0
  %4028 = vmatpush1.bf16.xpose.msra.mxu0 0
  %4029 = vmatprep.subr.bf16.mxu0 0
  %4030 = vmatpush1.bf16.xpose.msra.mxu0 0
  %4031 = vmatprep.mubr.bf16.mxu0 %v3996
  %4032 = vmatmul.mubr.bf16.gmra.mrb[0].mxu0 %v3989
  %v4033 = vpop.f32.mrb[0].mxu0
  %v4034 = vadd.f32 0.0, %v4033
  %v4035 = vpop.f32.mrb[0].mxu0
  %v4036 = vpop.f32.mrb[0].mxu0
  %v4037 = vpop.f32.mrb[0].mxu0
  %4038 = vdwg.mxu0
  %v4039 = vld [vmem:[%s12] sm:$0xf]
  %v4040 = vld [vmem:[%s12 + $0x4] sm:$0xf]
  %v4041 = vld [vmem:[%s12 + $0x8] sm:$0xf]
  %v4042 = vld [vmem:[%s12 + $0xc] sm:$0xf]
  %v4043 = vld [vmem:[%s12 + $0x10] sm:$0xf]
  %v4044 = vld [vmem:[%s12 + $0x14] sm:$0xf]
  %v4045 = vld [vmem:[%s12 + $0x18] sm:$0xf]
  %v4046 = vld [vmem:[%s12 + $0x1c] sm:$0xf]
  %v4047 = vld [vmem:[%s12 + $0x20] sm:$0xf]
  %v4048 = vld [vmem:[%s12 + $0x24] sm:$0xf]
  %v4049 = vld [vmem:[%s12 + $0x28] sm:$0xf]
  %v4050 = vld [vmem:[%s12 + $0x2c] sm:$0xf]
  %v4051 = vld [vmem:[%s12 + $0x30] sm:$0xf]
  %v4052 = vld [vmem:[%s12 + $0x34] sm:$0xf]
  %v4053 = vld [vmem:[%s12 + $0x38] sm:$0xf]
  %v4054 = vld [vmem:[%s12 + $0x3c] sm:$0xf]
  %v4055 = vld [vmem:[%s12 + $0x40] sm:$0xf]
  %v4056 = vld [vmem:[%s12 + $0x44] sm:$0xf]
  %v4057 = vld [vmem:[%s12 + $0x48] sm:$0xf]
  %v4058 = vld [vmem:[%s12 + $0x4c] sm:$0xf]
  %v4059 = vld [vmem:[%s12 + $0x50] sm:$0xf]
  %v4060 = vld [vmem:[%s12 + $0x54] sm:$0xf]
  %v4061 = vld [vmem:[%s12 + $0x58] sm:$0xf]
  %v4062 = vld [vmem:[%s12 + $0x5c] sm:$0xf]
  %v4063 = vld [vmem:[%s12 + $0x60] sm:$0xf]
  %v4064 = vld [vmem:[%s12 + $0x64] sm:$0xf]
  %v4065 = vld [vmem:[%s12 + $0x68] sm:$0xf]
  %v4066 = vld [vmem:[%s12 + $0x6c] sm:$0xf]
  %v4067 = vld [vmem:[%s12 + $0x70] sm:$0xf]
  %v4068 = vld [vmem:[%s12 + $0x74] sm:$0xf]
  %v4069 = vld [vmem:[%s12 + $0x78] sm:$0xf]
  %v4070 = vld [vmem:[%s12 + $0x7c] sm:$0xf]
  %v4103 = vunpack.c.l.b16 %v4039
  %v4104 = vunpack.c.l.b16 %v4040
  %v4105 = vunpack.c.l.b16 %v4041
  %v4106 = vunpack.c.l.b16 %v4042
  %v4107 = vunpack.c.l.b16 %v4043
  %v4108 = vunpack.c.l.b16 %v4044
  %v4109 = vunpack.c.l.b16 %v4045
  %v4110 = vunpack.c.l.b16 %v4046
  %v4111 = vunpack.c.l.b16 %v4047
  %v4112 = vunpack.c.l.b16 %v4048
  %v4113 = vunpack.c.l.b16 %v4049
  %v4114 = vunpack.c.l.b16 %v4050
  %v4115 = vunpack.c.l.b16 %v4051
  %v4116 = vunpack.c.l.b16 %v4052
  %v4117 = vunpack.c.l.b16 %v4053
  %v4118 = vunpack.c.l.b16 %v4054
  %v4119 = vunpack.c.l.b16 %v4055
  %v4120 = vunpack.c.l.b16 %v4056
  %v4121 = vunpack.c.l.b16 %v4057
  %v4122 = vunpack.c.l.b16 %v4058
  %v4123 = vunpack.c.l.b16 %v4059
  %v4124 = vunpack.c.l.b16 %v4060
  %v4125 = vunpack.c.l.b16 %v4061
  %v4126 = vunpack.c.l.b16 %v4062
  %v4127 = vunpack.c.l.b16 %v4063
  %v4128 = vunpack.c.l.b16 %v4064
  %v4129 = vunpack.c.l.b16 %v4065
  %v4130 = vunpack.c.l.b16 %v4066
  %v4131 = vunpack.c.l.b16 %v4067
  %v4132 = vunpack.c.l.b16 %v4068
  %v4133 = vunpack.c.l.b16 %v4069
  %v4134 = vunpack.c.l.b16 %v4070
  %v4135 = vpack.c.b16 %v4104, %v4103
  %v4136 = vpack.c.b16 %v4106, %v4105
  %v4137 = vpack.c.b16 %v4108, %v4107
  %v4138 = vpack.c.b16 %v4110, %v4109
  %v4139 = vpack.c.b16 %v4112, %v4111
  %v4140 = vpack.c.b16 %v4114, %v4113
  %v4141 = vpack.c.b16 %v4116, %v4115
  %v4142 = vpack.c.b16 %v4118, %v4117
  %v4143 = vpack.c.b16 %v4120, %v4119
  %v4144 = vpack.c.b16 %v4122, %v4121
  %v4145 = vpack.c.b16 %v4124, %v4123
  %v4146 = vpack.c.b16 %v4126, %v4125
  %v4147 = vpack.c.b16 %v4128, %v4127
  %v4148 = vpack.c.b16 %v4130, %v4129
  %v4149 = vpack.c.b16 %v4132, %v4131
  %v4150 = vpack.c.b16 %v4134, %v4133
  %4167 = vmatprep.subr.bf16.mxu0 0
  %4168 = vmatpush1.bf16.msra.mxu0 %v4135
  %4169 = vmatprep.subr.bf16.mxu0 0
  %4170 = vmatpush1.bf16.msra.mxu0 %v4136
  %4171 = vmatprep.subr.bf16.mxu0 0
  %4172 = vmatpush1.bf16.msra.mxu0 %v4137
  %4173 = vmatprep.subr.bf16.mxu0 0
  %4174 = vmatpush1.bf16.msra.mxu0 %v4138
  %4175 = vmatprep.subr.bf16.mxu0 0
  %4176 = vmatpush1.bf16.msra.mxu0 %v4139
  %4177 = vmatprep.subr.bf16.mxu0 0
  %4178 = vmatpush1.bf16.msra.mxu0 %v4140
  %4179 = vmatprep.subr.bf16.mxu0 0
  %4180 = vmatpush1.bf16.msra.mxu0 %v4141
  %4181 = vmatprep.subr.bf16.mxu0 0
  %4182 = vmatpush1.bf16.msra.mxu0 %v4142
  %4183 = vmatprep.subr.bf16.mxu0 0
  %4184 = vmatpush1.bf16.msra.mxu0 %v4143
  %4185 = vmatprep.subr.bf16.mxu0 0
  %4186 = vmatpush1.bf16.msra.mxu0 %v4144
  %4187 = vmatprep.subr.bf16.mxu0 0
  %4188 = vmatpush1.bf16.msra.mxu0 %v4145
  %4189 = vmatprep.subr.bf16.mxu0 0
  %4190 = vmatpush1.bf16.msra.mxu0 %v4146
  %4191 = vmatprep.subr.bf16.mxu0 0
  %4192 = vmatpush1.bf16.msra.mxu0 %v4147
  %4193 = vmatprep.subr.bf16.mxu0 0
  %4194 = vmatpush1.bf16.msra.mxu0 %v4148
  %4195 = vmatprep.subr.bf16.mxu0 0
  %4196 = vmatpush1.bf16.msra.mxu0 %v4149
  %4197 = vmatprep.subr.bf16.mxu0 0
  %4198 = vmatpush1.bf16.msra.mxu0 %v4150
  %4199 = vmatprep.mubr.bf16.mxu0 %v3972
  %4200 = vmatmul.mubr.bf16.gmra.mrb[0].mxu0 %v3971
  %v4201 = vpop.f32.mrb[0].mxu0
  %v4202 = vadd.f32 0.0, %v4201
  %v4203 = vpop.f32.mrb[0].mxu0
  %v4204 = vpop.f32.mrb[0].mxu0
  %v4205 = vadd.f32 0.0, %v4204
  %v4206 = vpop.f32.mrb[0].mxu0
  %4207 = vdwg.mxu0
  %4209 = vset.pattern.permute.xlu0 0
  %4210 = vperm.xlu0 %4209, %v4202
  %v4211 = vpop.permute.xlu0 %4210
  %4214 = vset.pattern.permute.xlu0 0
  %4215 = vperm.xlu0 %4214, %v4205
  %v4216 = vpop.permute.xlu0 %4215
  %v4218 = vlaneseq
  %v4219 = vshrl.u32 %v4218, 7
  %v4220 = vsub.s32 0, %v4219
  %v4221 = vrot.slane %v4034, %v4220
  %v4222 = vadd.f32 %v4211, %v4221
  %v4223 = vadd.f32 %v4216, %v4221
  %vm4224 = vcmp.gt.f32.partialorder %v4222, 0.0
  %vm4225 = vcmp.gt.f32.partialorder %v4223, 0.0
  %v4226 = vmul.f32 %v4222, 0.2
  %v4227 = vmul.f32 %v4223, 0.2
  %v4228 = vsel %vm4224, %v4222, %v4226
  %v4229 = vsel %vm4225, %v4223, %v4227
  %v4230 = vsel %vm90, %v4228, -1e+30
  %v4231 = vsel %vm91, %v4229, -1e+30
  %v4232 = vsel %vm1363, %v4230, -inf
  %4233 = vmax.xlane.f32.xlu0 %v4232
  %v4234 = vpop.xlane.xlu0 %4233
  %v4235 = vsel %vm1363, %v4231, -inf
  %4236 = vmax.xlane.f32.xlu0 %v4235
  %v4237 = vpop.xlane.xlu0 %4236
  %v4238 = vsub.f32 %v4230, %v4234
  %v4239 = vsub.f32 %v4231, %v4237
  %v4240 = vmul.f32 %v4238, 1.442695
  %v4241 = vpow.pop %v4240
  %v4242 = vmul.f32 %v4239, 1.442695
  %v4243 = vpow.pop %v4242
  %v4244 = vsel %vm1363, %v4241, 0.0
  %4245 = vadd.xlane.f32.xlu0 %v4244
  %v4246 = vpop.xlane.xlu0 %4245
  %v4247 = vsel %vm1363, %v4243, 0.0
  %4248 = vadd.xlane.f32.xlu0 %v4247
  %v4249 = vpop.xlane.xlu0 %4248
  %v4250 = vpack.c.bf16 %v4243, %v4241
  %v4252 = vsel %vm1363, %v4250, 0
  %4254 = vmatprep.subr.bf16.mxu0 0
  %4255 = vmatpush1.bf16.msra.mxu0 %v3971
  %4256 = vmatprep.subr.bf16.mxu0 0
  %4257 = vmatpush1.bf16.msra.mxu0 0
  %4258 = vmatprep.subr.bf16.mxu0 0
  %4259 = vmatpush1.bf16.msra.mxu0 0
  %4260 = vmatprep.subr.bf16.mxu0 0
  %4261 = vmatpush1.bf16.msra.mxu0 0
  %4262 = vmatprep.subr.bf16.mxu0 0
  %4263 = vmatpush1.bf16.msra.mxu0 0
  %4264 = vmatprep.subr.bf16.mxu0 0
  %4265 = vmatpush1.bf16.msra.mxu0 0
  %4266 = vmatprep.subr.bf16.mxu0 0
  %4267 = vmatpush1.bf16.msra.mxu0 0
  %4268 = vmatprep.subr.bf16.mxu0 0
  %4269 = vmatpush1.bf16.msra.mxu0 0
  %4270 = vmatprep.subr.bf16.mxu0 0
  %4271 = vmatpush1.bf16.msra.mxu0 0
  %4272 = vmatprep.subr.bf16.mxu0 0
  %4273 = vmatpush1.bf16.msra.mxu0 0
  %4274 = vmatprep.subr.bf16.mxu0 0
  %4275 = vmatpush1.bf16.msra.mxu0 0
  %4276 = vmatprep.subr.bf16.mxu0 0
  %4277 = vmatpush1.bf16.msra.mxu0 0
  %4278 = vmatprep.subr.bf16.mxu0 0
  %4279 = vmatpush1.bf16.msra.mxu0 0
  %4280 = vmatprep.subr.bf16.mxu0 0
  %4281 = vmatpush1.bf16.msra.mxu0 0
  %4282 = vmatprep.subr.bf16.mxu0 0
  %4283 = vmatpush1.bf16.msra.mxu0 0
  %4284 = vmatprep.subr.bf16.mxu0 0
  %4285 = vmatpush1.bf16.msra.mxu0 0
  %4286 = vmatprep.mubr.bf16.mxu0 0
  %4287 = vmatmul.mubr.bf16.gmra.mrb[0].mxu0 %v4252
  %v4288 = vpop.f32.mrb[0].mxu0
  %v4289 = vadd.f32 0.0, %v4288
  %v4290 = vpop.f32.mrb[0].mxu0
  %v4291 = vpop.f32.mrb[0].mxu0
  %v4292 = vadd.f32 0.0, %v4291
  %v4293 = vpop.f32.mrb[0].mxu0
  %4294 = vdwg.mxu0
  %v4295 = vrcp.pop %v4246
  %v4296 = vrcp.pop %v4249
  %v4297 = vmul.f32 %v4289, %v4295
  %v4298 = vmul.f32 %v4292, %v4296
  %v4299 = vadd.f32 %v4297, 0.0
  %v4300 = vadd.f32 %v4298, 0.0
  %4301 = vset.pattern.permute.xlu0 1
  %4302 = vperm.xlu0 %4301, %v4202
  %v4303 = vpop.permute.xlu0 %4302
  %4305 = vset.pattern.permute.xlu0 1
  %4306 = vperm.xlu0 %4305, %v4205
  %v4307 = vpop.permute.xlu0 %4306
  %v4309 = vlaneseq
  %v4310 = vshrl.u32 %v4309, 7
  %v4311 = vsub.s32 1, %v4310
  %v4312 = vrot.slane %v4034, %v4311
  %v4313 = vadd.f32 %v4303, %v4312
  %v4314 = vadd.f32 %v4307, %v4312
  %vm4315 = vcmp.gt.f32.partialorder %v4313, 0.0
  %vm4316 = vcmp.gt.f32.partialorder %v4314, 0.0
  %v4317 = vmul.f32 %v4313, 0.2
  %v4318 = vmul.f32 %v4314, 0.2
  %v4319 = vsel %vm4315, %v4313, %v4317
  %v4320 = vsel %vm4316, %v4314, %v4318
  %v4321 = vsel %vm90, %v4319, -1e+30
  %v4322 = vsel %vm91, %v4320, -1e+30
  %v4323 = vsel %vm1363, %v4321, -inf
  %4324 = vmax.xlane.f32.xlu0 %v4323
  %v4325 = vpop.xlane.xlu0 %4324
  %v4326 = vsel %vm1363, %v4322, -inf
  %4327 = vmax.xlane.f32.xlu0 %v4326
  %v4328 = vpop.xlane.xlu0 %4327
  %v4329 = vsub.f32 %v4321, %v4325
  %v4330 = vsub.f32 %v4322, %v4328
  %v4331 = vmul.f32 %v4329, 1.442695
  %v4332 = vpow.pop %v4331
  %v4333 = vmul.f32 %v4330, 1.442695
  %v4334 = vpow.pop %v4333
  %v4335 = vsel %vm1363, %v4332, 0.0
  %4336 = vadd.xlane.f32.xlu0 %v4335
  %v4337 = vpop.xlane.xlu0 %4336
  %v4338 = vsel %vm1363, %v4334, 0.0
  %4339 = vadd.xlane.f32.xlu0 %v4338
  %v4340 = vpop.xlane.xlu0 %4339
  %v4341 = vpack.c.bf16 %v4334, %v4332
  %v4343 = vsel %vm1363, %v4341, 0
  %4345 = vmatprep.subr.bf16.mxu0 0
  %4346 = vmatpush1.bf16.msra.mxu0 %v3972
  %4347 = vmatprep.subr.bf16.mxu0 0
  %4348 = vmatpush1.bf16.msra.mxu0 0
  %4349 = vmatprep.subr.bf16.mxu0 0
  %4350 = vmatpush1.bf16.msra.mxu0 0
  %4351 = vmatprep.subr.bf16.mxu0 0
  %4352 = vmatpush1.bf16.msra.mxu0 0
  %4353 = vmatprep.subr.bf16.mxu0 0
  %4354 = vmatpush1.bf16.msra.mxu0 0
  %4355 = vmatprep.subr.bf16.mxu0 0
  %4356 = vmatpush1.bf16.msra.mxu0 0
  %4357 = vmatprep.subr.bf16.mxu0 0
  %4358 = vmatpush1.bf16.msra.mxu0 0
  %4359 = vmatprep.subr.bf16.mxu0 0
  %4360 = vmatpush1.bf16.msra.mxu0 0
  %4361 = vmatprep.subr.bf16.mxu0 0
  %4362 = vmatpush1.bf16.msra.mxu0 0
  %4363 = vmatprep.subr.bf16.mxu0 0
  %4364 = vmatpush1.bf16.msra.mxu0 0
  %4365 = vmatprep.subr.bf16.mxu0 0
  %4366 = vmatpush1.bf16.msra.mxu0 0
  %4367 = vmatprep.subr.bf16.mxu0 0
  %4368 = vmatpush1.bf16.msra.mxu0 0
  %4369 = vmatprep.subr.bf16.mxu0 0
  %4370 = vmatpush1.bf16.msra.mxu0 0
  %4371 = vmatprep.subr.bf16.mxu0 0
  %4372 = vmatpush1.bf16.msra.mxu0 0
  %4373 = vmatprep.subr.bf16.mxu0 0
  %4374 = vmatpush1.bf16.msra.mxu0 0
  %4375 = vmatprep.subr.bf16.mxu0 0
  %4376 = vmatpush1.bf16.msra.mxu0 0
  %4377 = vmatprep.mubr.bf16.mxu0 0
  %4378 = vmatmul.mubr.bf16.gmra.mrb[0].mxu0 %v4343
  %v4379 = vpop.f32.mrb[0].mxu0
  %v4380 = vadd.f32 0.0, %v4379
  %v4381 = vpop.f32.mrb[0].mxu0
  %v4382 = vpop.f32.mrb[0].mxu0
  %v4383 = vadd.f32 0.0, %v4382
  %v4384 = vpop.f32.mrb[0].mxu0
  %4385 = vdwg.mxu0
  %v4386 = vrcp.pop %v4337
  %v4387 = vrcp.pop %v4340
  %v4388 = vmul.f32 %v4380, %v4386
  %v4389 = vmul.f32 %v4383, %v4387
  %v4390 = vadd.f32 %v4299, %v4388
  %v4391 = vadd.f32 %v4300, %v4389
  %v4392 = vmul.f32 %v4390, 0.5
  %v4393 = vmul.f32 %v4391, 0.5
  %v4394 = vld [vmem:[%s13] sm:$0x1]
  %v4396 = vlaneseq
  %v4397 = vshrl.u32 %v4396, 7
  %v4398 = vsub.s32 0, %v4397
  %v4399 = vrot.slane %v4394, %v4398
  %v4401 = vadd.f32 %v4392, %v4399
  %v4402 = vadd.f32 %v4393, %v4399
  %v4403 = vld [vmem:[%s14] sm:$0x3]
  %v4404 = vld [vmem:[%s15] sm:$0x3]
  %v4405 = vpack.c.bf16 %v4402, %v4401
  %v4406 = vpack.c.bf16 %v4403, %v4403
  %v4408 = vsel %vm1363, %v4406, 0
  %4410 = vmatprep.subr.bf16.mxu0 0
  %4411 = vmatpush1.bf16.msra.mxu0 %v4405
  %4412 = vmatprep.subr.bf16.mxu0 0
  %4413 = vmatpush1.bf16.msra.mxu0 0
  %4414 = vmatprep.subr.bf16.mxu0 0
  %4415 = vmatpush1.bf16.msra.mxu0 0
  %4416 = vmatprep.subr.bf16.mxu0 0
  %4417 = vmatpush1.bf16.msra.mxu0 0
  %4418 = vmatprep.subr.bf16.mxu0 0
  %4419 = vmatpush1.bf16.msra.mxu0 0
  %4420 = vmatprep.subr.bf16.mxu0 0
  %4421 = vmatpush1.bf16.msra.mxu0 0
  %4422 = vmatprep.subr.bf16.mxu0 0
  %4423 = vmatpush1.bf16.msra.mxu0 0
  %4424 = vmatprep.subr.bf16.mxu0 0
  %4425 = vmatpush1.bf16.msra.mxu0 0
  %4426 = vmatprep.subr.bf16.mxu0 0
  %4427 = vmatpush1.bf16.msra.mxu0 0
  %4428 = vmatprep.subr.bf16.mxu0 0
  %4429 = vmatpush1.bf16.msra.mxu0 0
  %4430 = vmatprep.subr.bf16.mxu0 0
  %4431 = vmatpush1.bf16.msra.mxu0 0
  %4432 = vmatprep.subr.bf16.mxu0 0
  %4433 = vmatpush1.bf16.msra.mxu0 0
  %4434 = vmatprep.subr.bf16.mxu0 0
  %4435 = vmatpush1.bf16.msra.mxu0 0
  %4436 = vmatprep.subr.bf16.mxu0 0
  %4437 = vmatpush1.bf16.msra.mxu0 0
  %4438 = vmatprep.subr.bf16.mxu0 0
  %4439 = vmatpush1.bf16.msra.mxu0 0
  %4440 = vmatprep.subr.bf16.mxu0 0
  %4441 = vmatpush1.bf16.msra.mxu0 0
  %4442 = vmatprep.mubr.bf16.mxu0 0
  %4443 = vmatmul.mubr.bf16.gmra.mrb[0].mxu0 %v4408
  %v4444 = vpop.f32.mrb[0].mxu0
  %v4445 = vadd.f32 0.0, %v4444
  %v4446 = vpop.f32.mrb[0].mxu0
  %v4447 = vpop.f32.mrb[0].mxu0
  %v4448 = vpop.f32.mrb[0].mxu0
  %4449 = vdwg.mxu0
  %4451 = vset.pattern.permute.xlu0 0
  %4452 = vperm.xlu0 %4451, %v4404
  %v4453 = vpop.permute.xlu0 %4452
  %v4455 = vrcp.pop %v4453
  %v4456 = vmul.f32 %v4445, %v4455
  %v4457 = vlaneseq
  %v4458 = vshrl.u32 %v4457, 7
  %v4459 = vsub.s32 0, %v4458
  %v4460 = vrot.slane %v4403, %v4459
  %4462 = vbcast.lane.b32.xlu0 %v4460, 256
  %v4463 = vpop.permute.xlu0 %4462
  %s4465 = sor.u32 256, 8
  %4466 = vbcast.lane.b32.xlu0 %v4460, %s4465
  %v4467 = vpop.permute.xlu0 %4466
  %v4468 = vlaneseq
  %v4469 = vshrl.u32 %v4468, 7
  %v4470 = vsub.s32 1, %v4469
  %v4471 = vrot.slane %v4403, %v4470
  %4473 = vbcast.lane.b32.xlu0 %v4471, 256
  %v4474 = vpop.permute.xlu0 %4473
  %s4476 = sor.u32 256, 8
  %4477 = vbcast.lane.b32.xlu0 %v4471, %s4476
  %v4478 = vpop.permute.xlu0 %4477
  %vm4479 = vcmp.gt.f32.partialorder %v4463, 0.0
  %vm4480 = vcmp.gt.f32.partialorder %v4467, 0.0
  %vm4481 = vcmp.gt.f32.partialorder %v4474, 0.0
  %vm4482 = vcmp.gt.f32.partialorder %v4478, 0.0
  %v4483 = vsel %vm4479, 1, 0
  %v4484 = vsel %vm4480, 1, 0
  %v4485 = vsel %vm4481, 1, 0
  %v4486 = vsel %vm4482, 1, 0
  %vm4487 = vcmp.eq.s32.totalorder %v4483, 1
  %vm4488 = vcmp.eq.s32.totalorder %v4484, 1
  %vm4489 = vcmp.eq.s32.totalorder %v4485, 1
  %vm4490 = vcmp.eq.s32.totalorder %v4486, 1
  %v4491 = vsel %vm4487, %v4401, -1e+30
  %v4492 = vsel %vm4488, %v4402, -1e+30
  %v4493 = vsel %vm4489, %v4401, -1e+30
  %v4494 = vsel %vm4490, %v4402, -1e+30
  %v4495 = vmax.f32 %v4491, %v4492
  %v4496 = vrot.slane %v4495, 4
  %v4497 = vmax.f32 %v4495, %v4496
  %v4498 = vrot.slane %v4497, 2
  %v4499 = vmax.f32 %v4497, %v4498
  %v4500 = vrot.slane %v4499, 1
  %v4501 = vmax.f32 %v4499, %v4500
  %v4502 = vmax.f32 %v4493, %v4494
  %v4503 = vrot.slane %v4502, 4
  %v4504 = vmax.f32 %v4502, %v4503
  %v4505 = vrot.slane %v4504, 2
  %v4506 = vmax.f32 %v4504, %v4505
  %v4507 = vrot.slane %v4506, 1
  %v4508 = vmax.f32 %v4506, %v4507
  %v4509 = vld [vmem:[%s16] sm:$0xf]
  %v4510 = vld [vmem:[%s16 + $0x4] sm:$0xf]
  %v4511 = vld [vmem:[%s16 + $0x8] sm:$0xf]
  %v4512 = vld [vmem:[%s16 + $0xc] sm:$0xf]
  %v4513 = vld [vmem:[%s16 + $0x10] sm:$0xf]
  %v4514 = vld [vmem:[%s16 + $0x14] sm:$0xf]
  %v4515 = vld [vmem:[%s16 + $0x18] sm:$0xf]
  %v4516 = vld [vmem:[%s16 + $0x1c] sm:$0xf]
  %v4517 = vld [vmem:[%s16 + $0x20] sm:$0xf]
  %v4518 = vld [vmem:[%s16 + $0x24] sm:$0xf]
  %v4519 = vld [vmem:[%s16 + $0x28] sm:$0xf]
  %v4520 = vld [vmem:[%s16 + $0x2c] sm:$0xf]
  %v4521 = vld [vmem:[%s16 + $0x30] sm:$0xf]
  %v4522 = vld [vmem:[%s16 + $0x34] sm:$0xf]
  %v4523 = vld [vmem:[%s16 + $0x38] sm:$0xf]
  %v4524 = vld [vmem:[%s16 + $0x3c] sm:$0xf]
  %v4525 = vld [vmem:[%s16 + $0x40] sm:$0xf]
  %v4526 = vld [vmem:[%s16 + $0x44] sm:$0xf]
  %v4527 = vld [vmem:[%s16 + $0x48] sm:$0xf]
  %v4528 = vld [vmem:[%s16 + $0x4c] sm:$0xf]
  %v4529 = vld [vmem:[%s16 + $0x50] sm:$0xf]
  %v4530 = vld [vmem:[%s16 + $0x54] sm:$0xf]
  %v4531 = vld [vmem:[%s16 + $0x58] sm:$0xf]
  %v4532 = vld [vmem:[%s16 + $0x5c] sm:$0xf]
  %v4533 = vld [vmem:[%s16 + $0x60] sm:$0xf]
  %v4534 = vld [vmem:[%s16 + $0x64] sm:$0xf]
  %v4535 = vld [vmem:[%s16 + $0x68] sm:$0xf]
  %v4536 = vld [vmem:[%s16 + $0x6c] sm:$0xf]
  %v4537 = vld [vmem:[%s16 + $0x70] sm:$0xf]
  %v4538 = vld [vmem:[%s16 + $0x74] sm:$0xf]
  %v4539 = vld [vmem:[%s16 + $0x78] sm:$0xf]
  %v4540 = vld [vmem:[%s16 + $0x7c] sm:$0xf]
  %v4541 = vpack.c.bf16 %v4456, %v4456
  %v4542 = vpack.c.bf16 %v4501, %v4501
  %v4543 = vpack.c.bf16 %v4508, %v4508
  %v4546 = vunpack.c.l.b16 %v4542
  %v4547 = vunpack.c.l.b16 %v4543
  %vm4548 = vcmask 1041409
  %v4549 = vsel %vm4548, %v4547, %v4546
  %v4550 = vpack.c.b16 %v4549, %v4549
  %v4568 = vunpack.c.l.b16 %v4525
  %v4569 = vunpack.c.l.b16 %v4526
  %v4570 = vunpack.c.l.b16 %v4527
  %v4571 = vunpack.c.l.b16 %v4528
  %v4572 = vunpack.c.l.b16 %v4529
  %v4573 = vunpack.c.l.b16 %v4530
  %v4574 = vunpack.c.l.b16 %v4531
  %v4575 = vunpack.c.l.b16 %v4532
  %v4576 = vunpack.c.l.b16 %v4533
  %v4577 = vunpack.c.l.b16 %v4534
  %v4578 = vunpack.c.l.b16 %v4535
  %v4579 = vunpack.c.l.b16 %v4536
  %v4580 = vunpack.c.l.b16 %v4537
  %v4581 = vunpack.c.l.b16 %v4538
  %v4582 = vunpack.c.l.b16 %v4539
  %v4583 = vunpack.c.l.b16 %v4540
  %v4584 = vpack.c.b16 %v4569, %v4568
  %v4585 = vpack.c.b16 %v4571, %v4570
  %v4586 = vpack.c.b16 %v4573, %v4572
  %v4587 = vpack.c.b16 %v4575, %v4574
  %v4588 = vpack.c.b16 %v4577, %v4576
  %v4589 = vpack.c.b16 %v4579, %v4578
  %v4590 = vpack.c.b16 %v4581, %v4580
  %v4591 = vpack.c.b16 %v4583, %v4582
  %4600 = vmatprep.subr.bf16.mxu0 0
  %4601 = vmatpush1.bf16.msra.mxu0 %v4584
  %4602 = vmatprep.subr.bf16.mxu0 0
  %4603 = vmatpush1.bf16.msra.mxu0 %v4585
  %4604 = vmatprep.subr.bf16.mxu0 0
  %4605 = vmatpush1.bf16.msra.mxu0 %v4586
  %4606 = vmatprep.subr.bf16.mxu0 0
  %4607 = vmatpush1.bf16.msra.mxu0 %v4587
  %4608 = vmatprep.subr.bf16.mxu0 0
  %4609 = vmatpush1.bf16.msra.mxu0 %v4588
  %4610 = vmatprep.subr.bf16.mxu0 0
  %4611 = vmatpush1.bf16.msra.mxu0 %v4589
  %4612 = vmatprep.subr.bf16.mxu0 0
  %4613 = vmatpush1.bf16.msra.mxu0 %v4590
  %4614 = vmatprep.subr.bf16.mxu0 0
  %4615 = vmatpush1.bf16.msra.mxu0 %v4591
  %4616 = vmatprep.subr.bf16.mxu0 0
  %4617 = vmatpush1.bf16.msra.mxu0 0
  %4618 = vmatprep.subr.bf16.mxu0 0
  %4619 = vmatpush1.bf16.msra.mxu0 0
  %4620 = vmatprep.subr.bf16.mxu0 0
  %4621 = vmatpush1.bf16.msra.mxu0 0
  %4622 = vmatprep.subr.bf16.mxu0 0
  %4623 = vmatpush1.bf16.msra.mxu0 0
  %4624 = vmatprep.subr.bf16.mxu0 0
  %4625 = vmatpush1.bf16.msra.mxu0 0
  %4626 = vmatprep.subr.bf16.mxu0 0
  %4627 = vmatpush1.bf16.msra.mxu0 0
  %4628 = vmatprep.subr.bf16.mxu0 0
  %4629 = vmatpush1.bf16.msra.mxu0 0
  %4630 = vmatprep.subr.bf16.mxu0 0
  %4631 = vmatpush1.bf16.msra.mxu0 0
  %4632 = vmatprep.mubr.bf16.mxu0 0
  %4633 = vmatmul.mubr.bf16.gmra.mrb[0].mxu0 %v4550
  %v4634 = vpop.f32.mrb[0].mxu0
  %v4635 = vadd.f32 0.0, %v4634
  %v4636 = vpop.f32.mrb[0].mxu0
  %v4637 = vpop.f32.mrb[0].mxu0
  %v4638 = vpop.f32.mrb[0].mxu0
  %4639 = vdwg.mxu0
  %v4656 = vunpack.c.l.b16 %v4509
  %v4657 = vunpack.c.l.b16 %v4510
  %v4658 = vunpack.c.l.b16 %v4511
  %v4659 = vunpack.c.l.b16 %v4512
  %v4660 = vunpack.c.l.b16 %v4513
  %v4661 = vunpack.c.l.b16 %v4514
  %v4662 = vunpack.c.l.b16 %v4515
  %v4663 = vunpack.c.l.b16 %v4516
  %v4664 = vunpack.c.l.b16 %v4517
  %v4665 = vunpack.c.l.b16 %v4518
  %v4666 = vunpack.c.l.b16 %v4519
  %v4667 = vunpack.c.l.b16 %v4520
  %v4668 = vunpack.c.l.b16 %v4521
  %v4669 = vunpack.c.l.b16 %v4522
  %v4670 = vunpack.c.l.b16 %v4523
  %v4671 = vunpack.c.l.b16 %v4524
  %v4672 = vpack.c.b16 %v4657, %v4656
  %v4673 = vpack.c.b16 %v4659, %v4658
  %v4674 = vpack.c.b16 %v4661, %v4660
  %v4675 = vpack.c.b16 %v4663, %v4662
  %v4676 = vpack.c.b16 %v4665, %v4664
  %v4677 = vpack.c.b16 %v4667, %v4666
  %v4678 = vpack.c.b16 %v4669, %v4668
  %v4679 = vpack.c.b16 %v4671, %v4670
  %4688 = vmatprep.subr.bf16.mxu0 0
  %4689 = vmatpush1.bf16.msra.mxu0 %v4672
  %4690 = vmatprep.subr.bf16.mxu0 0
  %4691 = vmatpush1.bf16.msra.mxu0 %v4673
  %4692 = vmatprep.subr.bf16.mxu0 0
  %4693 = vmatpush1.bf16.msra.mxu0 %v4674
  %4694 = vmatprep.subr.bf16.mxu0 0
  %4695 = vmatpush1.bf16.msra.mxu0 %v4675
  %4696 = vmatprep.subr.bf16.mxu0 0
  %4697 = vmatpush1.bf16.msra.mxu0 %v4676
  %4698 = vmatprep.subr.bf16.mxu0 0
  %4699 = vmatpush1.bf16.msra.mxu0 %v4677
  %4700 = vmatprep.subr.bf16.mxu0 0
  %4701 = vmatpush1.bf16.msra.mxu0 %v4678
  %4702 = vmatprep.subr.bf16.mxu0 0
  %4703 = vmatpush1.bf16.msra.mxu0 %v4679
  %4704 = vmatprep.subr.bf16.mxu0 0
  %4705 = vmatpush1.bf16.msra.mxu0 0
  %4706 = vmatprep.subr.bf16.mxu0 0
  %4707 = vmatpush1.bf16.msra.mxu0 0
  %4708 = vmatprep.subr.bf16.mxu0 0
  %4709 = vmatpush1.bf16.msra.mxu0 0
  %4710 = vmatprep.subr.bf16.mxu0 0
  %4711 = vmatpush1.bf16.msra.mxu0 0
  %4712 = vmatprep.subr.bf16.mxu0 0
  %4713 = vmatpush1.bf16.msra.mxu0 0
  %4714 = vmatprep.subr.bf16.mxu0 0
  %4715 = vmatpush1.bf16.msra.mxu0 0
  %4716 = vmatprep.subr.bf16.mxu0 0
  %4717 = vmatpush1.bf16.msra.mxu0 0
  %4718 = vmatprep.subr.bf16.mxu0 0
  %4719 = vmatpush1.bf16.msra.mxu0 0
  %4720 = vmatprep.mubr.bf16.mxu0 0
  %4721 = vmatmul.mubr.bf16.gmra.mrb[0].mxu0 %v4541
  %v4722 = vpop.f32.mrb[0].mxu0
  %v4723 = vadd.f32 %v4635, %v4722
  %v4724 = vpop.f32.mrb[0].mxu0
  %v4725 = vpop.f32.mrb[0].mxu0
  %v4726 = vpop.f32.mrb[0].mxu0
  %4727 = vdwg.mxu0
  %v4728 = vld [vmem:[%s17] sm:$0x1]
  %v4730 = vlaneseq
  %v4731 = vshrl.u32 %v4730, 7
  %v4732 = vsub.s32 0, %v4731
  %v4733 = vrot.slane %v4728, %v4732
  %v4735 = vadd.f32 %v4723, %v4733
  %v4736 = vmax.f32 %v4735, 0.0
  %v4737 = vpack.c.bf16 %v4736, %v4736
  %v4738 = vld [vmem:[%s18] sm:$0xf]
  %v4739 = vld [vmem:[#allocation2] sm:$0x1]
  %v4741 = vlaneseq
  %v4742 = vshrl.u32 %v4741, 7
  %v4743 = vsub.s32 0, %v4742
  %v4744 = vrot.slane %v4739, %v4743
  %vm4746 = vcmask 64512
  %v4748 = vsel %vm4746, %v4737, 0
  %vm4750 = vcmask 1043456
  %v4752 = vsel %vm4750, %v4738, 0
  %4754 = vmatprep.subr.bf16.mxu0 0
  %4755 = vmatpush1.bf16.msra.mxu0 %v4752
  %4756 = vmatprep.subr.bf16.mxu0 0
  %4757 = vmatpush1.bf16.msra.mxu0 0
  %4758 = vmatprep.subr.bf16.mxu0 0
  %4759 = vmatpush1.bf16.msra.mxu0 0
  %4760 = vmatprep.subr.bf16.mxu0 0
  %4761 = vmatpush1.bf16.msra.mxu0 0
  %4762 = vmatprep.subr.bf16.mxu0 0
  %4763 = vmatpush1.bf16.msra.mxu0 0
  %4764 = vmatprep.subr.bf16.mxu0 0
  %4765 = vmatpush1.bf16.msra.mxu0 0
  %4766 = vmatprep.subr.bf16.mxu0 0
  %4767 = vmatpush1.bf16.msra.mxu0 0
  %4768 = vmatprep.subr.bf16.mxu0 0
  %4769 = vmatpush1.bf16.msra.mxu0 0
  %4770 = vmatprep.subr.bf16.mxu0 0
  %4771 = vmatpush1.bf16.msra.mxu0 0
  %4772 = vmatprep.subr.bf16.mxu0 0
  %4773 = vmatpush1.bf16.msra.mxu0 0
  %4774 = vmatprep.subr.bf16.mxu0 0
  %4775 = vmatpush1.bf16.msra.mxu0 0
  %4776 = vmatprep.subr.bf16.mxu0 0
  %4777 = vmatpush1.bf16.msra.mxu0 0
  %4778 = vmatprep.subr.bf16.mxu0 0
  %4779 = vmatpush1.bf16.msra.mxu0 0
  %4780 = vmatprep.subr.bf16.mxu0 0
  %4781 = vmatpush1.bf16.msra.mxu0 0
  %4782 = vmatprep.subr.bf16.mxu0 0
  %4783 = vmatpush1.bf16.msra.mxu0 0
  %4784 = vmatprep.subr.bf16.mxu0 0
  %4785 = vmatpush1.bf16.msra.mxu0 0
  %4786 = vmatprep.mubr.bf16.mxu0 0
  %4787 = vmatmul.mubr.bf16.gmra.mrb[0].mxu0 %v4748
  %v4788 = vpop.f32.mrb[0].mxu0
  %v4789 = vadd.f32 %v4744, %v4788
  %v4790 = vpop.f32.mrb[0].mxu0
  %v4791 = vpop.f32.mrb[0].mxu0
  %v4792 = vpop.f32.mrb[0].mxu0
  %4793 = vdwg.mxu0
  %v4794 = vld [vmem:[%s20] sm:$0xff]
  %v4795 = vld [vmem:[%s20 + $0x8] sm:$0xff]
  %v4796 = vld [vmem:[%s20 + $0x10] sm:$0xff]
  %v4797 = vld [vmem:[%s20 + $0x18] sm:$0xff]
  %v4798 = vld [vmem:[%s20 + $0x20] sm:$0xff]
  %v4799 = vld [vmem:[%s20 + $0x28] sm:$0xff]
  %v4800 = vld [vmem:[%s20 + $0x30] sm:$0xff]
  %v4801 = vld [vmem:[%s20 + $0x38] sm:$0xff]
  %v4802 = vld [vmem:[%s20 + $0x40] sm:$0xff]
  %v4803 = vld [vmem:[%s20 + $0x48] sm:$0xff]
  %v4804 = vld [vmem:[%s20 + $0x50] sm:$0xff]
  %v4805 = vld [vmem:[%s20 + $0x58] sm:$0xff]
  %v4806 = vrot.slane %v4794, 4
  %v4807 = vadd.f32 %v4794, %v4806
  %v4808 = vrot.slane %v4807, 2
  %v4809 = vadd.f32 %v4807, %v4808
  %v4810 = vrot.slane %v4809, 1
  %v4811 = vadd.f32 %v4809, %v4810
  %v4812 = vrot.slane %v4795, 4
  %v4813 = vadd.f32 %v4795, %v4812
  %v4814 = vrot.slane %v4813, 2
  %v4815 = vadd.f32 %v4813, %v4814
  %v4816 = vrot.slane %v4815, 1
  %v4817 = vadd.f32 %v4815, %v4816
  %v4818 = vrot.slane %v4796, 4
  %v4819 = vadd.f32 %v4796, %v4818
  %v4820 = vrot.slane %v4819, 2
  %v4821 = vadd.f32 %v4819, %v4820
  %v4822 = vrot.slane %v4821, 1
  %v4823 = vadd.f32 %v4821, %v4822
  %v4824 = vrot.slane %v4797, 4
  %v4825 = vadd.f32 %v4797, %v4824
  %v4826 = vrot.slane %v4825, 2
  %v4827 = vadd.f32 %v4825, %v4826
  %v4828 = vrot.slane %v4827, 1
  %v4829 = vadd.f32 %v4827, %v4828
  %v4830 = vrot.slane %v4798, 4
  %v4831 = vadd.f32 %v4798, %v4830
  %v4832 = vrot.slane %v4831, 2
  %v4833 = vadd.f32 %v4831, %v4832
  %v4834 = vrot.slane %v4833, 1
  %v4835 = vadd.f32 %v4833, %v4834
  %v4836 = vrot.slane %v4799, 4
  %v4837 = vadd.f32 %v4799, %v4836
  %v4838 = vrot.slane %v4837, 2
  %v4839 = vadd.f32 %v4837, %v4838
  %v4840 = vrot.slane %v4839, 1
  %v4841 = vadd.f32 %v4839, %v4840
  %v4842 = vrot.slane %v4800, 4
  %v4843 = vadd.f32 %v4800, %v4842
  %v4844 = vrot.slane %v4843, 2
  %v4845 = vadd.f32 %v4843, %v4844
  %v4846 = vrot.slane %v4845, 1
  %v4847 = vadd.f32 %v4845, %v4846
  %v4848 = vrot.slane %v4801, 4
  %v4849 = vadd.f32 %v4801, %v4848
  %v4850 = vrot.slane %v4849, 2
  %v4851 = vadd.f32 %v4849, %v4850
  %v4852 = vrot.slane %v4851, 1
  %v4853 = vadd.f32 %v4851, %v4852
  %v4854 = vrot.slane %v4802, 4
  %v4855 = vadd.f32 %v4802, %v4854
  %v4856 = vrot.slane %v4855, 2
  %v4857 = vadd.f32 %v4855, %v4856
  %v4858 = vrot.slane %v4857, 1
  %v4859 = vadd.f32 %v4857, %v4858
  %v4860 = vrot.slane %v4803, 4
  %v4861 = vadd.f32 %v4803, %v4860
  %v4862 = vrot.slane %v4861, 2
  %v4863 = vadd.f32 %v4861, %v4862
  %v4864 = vrot.slane %v4863, 1
  %v4865 = vadd.f32 %v4863, %v4864
  %v4866 = vrot.slane %v4804, 4
  %v4867 = vadd.f32 %v4804, %v4866
  %v4868 = vrot.slane %v4867, 2
  %v4869 = vadd.f32 %v4867, %v4868
  %v4870 = vrot.slane %v4869, 1
  %v4871 = vadd.f32 %v4869, %v4870
  %v4872 = vrot.slane %v4805, 4
  %v4873 = vadd.f32 %v4805, %v4872
  %v4874 = vrot.slane %v4873, 2
  %v4875 = vadd.f32 %v4873, %v4874
  %v4876 = vrot.slane %v4875, 1
  %v4877 = vadd.f32 %v4875, %v4876
  %v4878 = vrcp.pop 8.0
  %v4879 = vmul.f32 %v4811, %v4878
  %v4880 = vmul.f32 %v4817, %v4878
  %v4881 = vmul.f32 %v4823, %v4878
  %v4882 = vmul.f32 %v4829, %v4878
  %v4883 = vmul.f32 %v4835, %v4878
  %v4884 = vmul.f32 %v4841, %v4878
  %v4885 = vmul.f32 %v4847, %v4878
  %v4886 = vmul.f32 %v4853, %v4878
  %v4887 = vmul.f32 %v4859, %v4878
  %v4888 = vmul.f32 %v4865, %v4878
  %v4889 = vmul.f32 %v4871, %v4878
  %v4890 = vmul.f32 %v4877, %v4878
  %v4891 = vpack.c.bf16 %v4879, %v4879
  %v4892 = vpack.c.bf16 %v4880, %v4880
  %v4893 = vpack.c.bf16 %v4881, %v4881
  %v4894 = vpack.c.bf16 %v4882, %v4882
  %v4895 = vpack.c.bf16 %v4883, %v4883
  %v4896 = vpack.c.bf16 %v4884, %v4884
  %v4897 = vpack.c.bf16 %v4885, %v4885
  %v4898 = vpack.c.bf16 %v4886, %v4886
  %v4899 = vpack.c.bf16 %v4887, %v4887
  %v4900 = vpack.c.bf16 %v4888, %v4888
  %v4901 = vpack.c.bf16 %v4889, %v4889
  %v4902 = vpack.c.bf16 %v4890, %v4890
  %v4903 = vld [vmem:[%s21] sm:$0xf]
  %v4904 = vld [vmem:[%s21 + $0x4] sm:$0xf]
  %v4905 = vld [vmem:[%s21 + $0x8] sm:$0xf]
  %v4906 = vld [vmem:[%s21 + $0xc] sm:$0xf]
  %v4907 = vld [vmem:[%s21 + $0x10] sm:$0xf]
  %v4908 = vld [vmem:[%s21 + $0x14] sm:$0xf]
  %v4909 = vld [vmem:[%s21 + $0x18] sm:$0xf]
  %v4910 = vld [vmem:[%s21 + $0x1c] sm:$0xf]
  %v4911 = vld [vmem:[%s21 + $0x20] sm:$0xf]
  %v4912 = vld [vmem:[%s21 + $0x24] sm:$0xf]
  %v4913 = vld [vmem:[%s21 + $0x28] sm:$0xf]
  %v4914 = vld [vmem:[%s21 + $0x2c] sm:$0xf]
  %v4915 = vld [vmem:[%s21 + $0x30] sm:$0xf]
  %v4916 = vld [vmem:[%s21 + $0x34] sm:$0xf]
  %v4917 = vld [vmem:[%s21 + $0x38] sm:$0xf]
  %v4918 = vld [vmem:[%s21 + $0x3c] sm:$0xf]
  %v4919 = vld [vmem:[%s21 + $0x40] sm:$0xf]
  %v4920 = vld [vmem:[%s21 + $0x44] sm:$0xf]
  %v4921 = vld [vmem:[%s21 + $0x48] sm:$0xf]
  %v4922 = vld [vmem:[%s21 + $0x4c] sm:$0xf]
  %v4923 = vld [vmem:[%s21 + $0x50] sm:$0xf]
  %v4924 = vld [vmem:[%s21 + $0x54] sm:$0xf]
  %v4925 = vld [vmem:[%s21 + $0x58] sm:$0xf]
  %v4926 = vld [vmem:[%s21 + $0x5c] sm:$0xf]
  %v4927 = vld [vmem:[%s21 + $0x60] sm:$0xf]
  %v4928 = vld [vmem:[%s21 + $0x64] sm:$0xf]
  %v4929 = vld [vmem:[%s21 + $0x68] sm:$0xf]
  %v4930 = vld [vmem:[%s21 + $0x6c] sm:$0xf]
  %v4931 = vld [vmem:[%s21 + $0x70] sm:$0xf]
  %v4932 = vld [vmem:[%s21 + $0x74] sm:$0xf]
  %v4933 = vld [vmem:[%s21 + $0x78] sm:$0xf]
  %v4934 = vld [vmem:[%s21 + $0x7c] sm:$0xf]
  %v4935 = vld [vmem:[%s21 + $0x80] sm:$0xf]
  %v4936 = vld [vmem:[%s21 + $0x84] sm:$0xf]
  %v4937 = vld [vmem:[%s21 + $0x88] sm:$0xf]
  %v4938 = vld [vmem:[%s21 + $0x8c] sm:$0xf]
  %v4939 = vld [vmem:[%s21 + $0x90] sm:$0xf]
  %v4940 = vld [vmem:[%s21 + $0x94] sm:$0xf]
  %v4941 = vld [vmem:[%s21 + $0x98] sm:$0xf]
  %v4942 = vld [vmem:[%s21 + $0x9c] sm:$0xf]
  %v4943 = vld [vmem:[%s21 + $0xa0] sm:$0xf]
  %v4944 = vld [vmem:[%s21 + $0xa4] sm:$0xf]
  %v4945 = vld [vmem:[%s21 + $0xa8] sm:$0xf]
  %v4946 = vld [vmem:[%s21 + $0xac] sm:$0xf]
  %v4947 = vld [vmem:[%s21 + $0xb0] sm:$0xf]
  %v4948 = vld [vmem:[%s21 + $0xb4] sm:$0xf]
  %v4949 = vld [vmem:[%s21 + $0xb8] sm:$0xf]
  %v4950 = vld [vmem:[%s21 + $0xbc] sm:$0xf]
  %v4951 = vld [vmem:[%s21 + $0xc0] sm:$0xf]
  %v4952 = vld [vmem:[%s21 + $0xc4] sm:$0xf]
  %v4953 = vld [vmem:[%s21 + $0xc8] sm:$0xf]
  %v4954 = vld [vmem:[%s21 + $0xcc] sm:$0xf]
  %v4955 = vld [vmem:[%s21 + $0xd0] sm:$0xf]
  %v4956 = vld [vmem:[%s21 + $0xd4] sm:$0xf]
  %v4957 = vld [vmem:[%s21 + $0xd8] sm:$0xf]
  %v4958 = vld [vmem:[%s21 + $0xdc] sm:$0xf]
  %v4959 = vld [vmem:[%s21 + $0xe0] sm:$0xf]
  %v4960 = vld [vmem:[%s21 + $0xe4] sm:$0xf]
  %v4961 = vld [vmem:[%s21 + $0xe8] sm:$0xf]
  %v4962 = vld [vmem:[%s21 + $0xec] sm:$0xf]
  %v4963 = vld [vmem:[%s21 + $0xf0] sm:$0xf]
  %v4964 = vld [vmem:[%s21 + $0xf4] sm:$0xf]
  %v4965 = vld [vmem:[%s21 + $0xf8] sm:$0xf]
  %v4966 = vld [vmem:[%s21 + $0xfc] sm:$0xf]
  %v4967 = vld [vmem:[%s21 + $0x100] sm:$0xf]
  %v4968 = vld [vmem:[%s21 + $0x104] sm:$0xf]
  %v4969 = vld [vmem:[%s21 + $0x108] sm:$0xf]
  %v4970 = vld [vmem:[%s21 + $0x10c] sm:$0xf]
  %v4971 = vld [vmem:[%s21 + $0x110] sm:$0xf]
  %v4972 = vld [vmem:[%s21 + $0x114] sm:$0xf]
  %v4973 = vld [vmem:[%s21 + $0x118] sm:$0xf]
  %v4974 = vld [vmem:[%s21 + $0x11c] sm:$0xf]
  %v4975 = vld [vmem:[%s21 + $0x120] sm:$0xf]
  %v4976 = vld [vmem:[%s21 + $0x124] sm:$0xf]
  %v4977 = vld [vmem:[%s21 + $0x128] sm:$0xf]
  %v4978 = vld [vmem:[%s21 + $0x12c] sm:$0xf]
  %v4979 = vld [vmem:[%s21 + $0x130] sm:$0xf]
  %v4980 = vld [vmem:[%s21 + $0x134] sm:$0xf]
  %v4981 = vld [vmem:[%s21 + $0x138] sm:$0xf]
  %v4982 = vld [vmem:[%s21 + $0x13c] sm:$0xf]
  %v4983 = vld [vmem:[%s21 + $0x140] sm:$0xf]
  %v4984 = vld [vmem:[%s21 + $0x144] sm:$0xf]
  %v4985 = vld [vmem:[%s21 + $0x148] sm:$0xf]
  %v4986 = vld [vmem:[%s21 + $0x14c] sm:$0xf]
  %v4987 = vld [vmem:[%s21 + $0x150] sm:$0xf]
  %v4988 = vld [vmem:[%s21 + $0x154] sm:$0xf]
  %v4989 = vld [vmem:[%s21 + $0x158] sm:$0xf]
  %v4990 = vld [vmem:[%s21 + $0x15c] sm:$0xf]
  %v4991 = vld [vmem:[%s21 + $0x160] sm:$0xf]
  %v4992 = vld [vmem:[%s21 + $0x164] sm:$0xf]
  %v4993 = vld [vmem:[%s21 + $0x168] sm:$0xf]
  %v4994 = vld [vmem:[%s21 + $0x16c] sm:$0xf]
  %v4995 = vld [vmem:[%s21 + $0x170] sm:$0xf]
  %v4996 = vld [vmem:[%s21 + $0x174] sm:$0xf]
  %v4997 = vld [vmem:[%s21 + $0x178] sm:$0xf]
  %v4998 = vld [vmem:[%s21 + $0x17c] sm:$0xf]
  %v4999 = vld [vmem:[%s22] sm:$0x1]
  %v5001 = vlaneseq
  %v5002 = vshrl.u32 %v5001, 7
  %v5003 = vsub.s32 0, %v5002
  %v5004 = vrot.slane %v4999, %v5003
  %v5018 = vunpack.c.l.b16 %v4891
  %v5019 = vunpack.c.l.b16 %v4892
  %v5020 = vunpack.c.l.b16 %v4893
  %v5021 = vunpack.c.l.b16 %v4894
  %v5022 = vunpack.c.l.b16 %v4895
  %v5023 = vunpack.c.l.b16 %v4896
  %v5024 = vunpack.c.l.b16 %v4897
  %v5025 = vunpack.c.l.b16 %v4898
  %v5026 = vunpack.c.l.b16 %v4899
  %v5027 = vunpack.c.l.b16 %v4900
  %v5028 = vunpack.c.l.b16 %v4901
  %v5029 = vunpack.c.l.b16 %v4902
  %v5030 = vsel %vm4548, %v5024, %v5018
  %v5031 = vsel %vm4548, %v5025, %v5019
  %v5032 = vsel %vm4548, %v5026, %v5020
  %v5033 = vsel %vm4548, %v5027, %v5021
  %v5034 = vsel %vm4548, %v5028, %v5022
  %v5035 = vsel %vm4548, %v5029, %v5023
  %v5036 = vpack.c.b16 %v5030, %v5030
  %v5037 = vpack.c.b16 %v5031, %v5031
  %v5038 = vpack.c.b16 %v5032, %v5032
  %v5039 = vpack.c.b16 %v5033, %v5033
  %v5040 = vpack.c.b16 %v5034, %v5034
  %v5041 = vpack.c.b16 %v5035, %v5035
  %v5144 = vunpack.c.l.b16 %v4903
  %v5145 = vunpack.c.l.b16 %v4904
  %v5146 = vunpack.c.l.b16 %v4905
  %v5147 = vunpack.c.l.b16 %v4906
  %v5148 = vunpack.c.l.b16 %v4907
  %v5149 = vunpack.c.l.b16 %v4908
  %v5150 = vunpack.c.l.b16 %v4909
  %v5151 = vunpack.c.l.b16 %v4910
  %v5152 = vunpack.c.l.b16 %v4911
  %v5153 = vunpack.c.l.b16 %v4912
  %v5154 = vunpack.c.l.b16 %v4913
  %v5155 = vunpack.c.l.b16 %v4914
  %v5156 = vunpack.c.l.b16 %v4915
  %v5157 = vunpack.c.l.b16 %v4916
  %v5158 = vunpack.c.l.b16 %v4917
  %v5159 = vunpack.c.l.b16 %v4918
  %v5160 = vunpack.c.l.b16 %v4919
  %v5161 = vunpack.c.l.b16 %v4920
  %v5162 = vunpack.c.l.b16 %v4921
  %v5163 = vunpack.c.l.b16 %v4922
  %v5164 = vunpack.c.l.b16 %v4923
  %v5165 = vunpack.c.l.b16 %v4924
  %v5166 = vunpack.c.l.b16 %v4925
  %v5167 = vunpack.c.l.b16 %v4926
  %v5168 = vunpack.c.l.b16 %v4927
  %v5169 = vunpack.c.l.b16 %v4928
  %v5170 = vunpack.c.l.b16 %v4929
  %v5171 = vunpack.c.l.b16 %v4930
  %v5172 = vunpack.c.l.b16 %v4931
  %v5173 = vunpack.c.l.b16 %v4932
  %v5174 = vunpack.c.l.b16 %v4933
  %v5175 = vunpack.c.l.b16 %v4934
  %v5176 = vunpack.c.l.b16 %v4935
  %v5177 = vunpack.c.l.b16 %v4936
  %v5178 = vunpack.c.l.b16 %v4937
  %v5179 = vunpack.c.l.b16 %v4938
  %v5180 = vunpack.c.l.b16 %v4939
  %v5181 = vunpack.c.l.b16 %v4940
  %v5182 = vunpack.c.l.b16 %v4941
  %v5183 = vunpack.c.l.b16 %v4942
  %v5184 = vunpack.c.l.b16 %v4943
  %v5185 = vunpack.c.l.b16 %v4944
  %v5186 = vunpack.c.l.b16 %v4945
  %v5187 = vunpack.c.l.b16 %v4946
  %v5188 = vunpack.c.l.b16 %v4947
  %v5189 = vunpack.c.l.b16 %v4948
  %v5190 = vunpack.c.l.b16 %v4949
  %v5191 = vunpack.c.l.b16 %v4950
  %v5192 = vunpack.c.l.b16 %v4951
  %v5193 = vunpack.c.l.b16 %v4952
  %v5194 = vunpack.c.l.b16 %v4953
  %v5195 = vunpack.c.l.b16 %v4954
  %v5196 = vunpack.c.l.b16 %v4955
  %v5197 = vunpack.c.l.b16 %v4956
  %v5198 = vunpack.c.l.b16 %v4957
  %v5199 = vunpack.c.l.b16 %v4958
  %v5200 = vunpack.c.l.b16 %v4959
  %v5201 = vunpack.c.l.b16 %v4960
  %v5202 = vunpack.c.l.b16 %v4961
  %v5203 = vunpack.c.l.b16 %v4962
  %v5204 = vunpack.c.l.b16 %v4963
  %v5205 = vunpack.c.l.b16 %v4964
  %v5206 = vunpack.c.l.b16 %v4965
  %v5207 = vunpack.c.l.b16 %v4966
  %v5208 = vunpack.c.l.b16 %v4967
  %v5209 = vunpack.c.l.b16 %v4968
  %v5210 = vunpack.c.l.b16 %v4969
  %v5211 = vunpack.c.l.b16 %v4970
  %v5212 = vunpack.c.l.b16 %v4971
  %v5213 = vunpack.c.l.b16 %v4972
  %v5214 = vunpack.c.l.b16 %v4973
  %v5215 = vunpack.c.l.b16 %v4974
  %v5216 = vunpack.c.l.b16 %v4975
  %v5217 = vunpack.c.l.b16 %v4976
  %v5218 = vunpack.c.l.b16 %v4977
  %v5219 = vunpack.c.l.b16 %v4978
  %v5220 = vunpack.c.l.b16 %v4979
  %v5221 = vunpack.c.l.b16 %v4980
  %v5222 = vunpack.c.l.b16 %v4981
  %v5223 = vunpack.c.l.b16 %v4982
  %v5224 = vunpack.c.l.b16 %v4983
  %v5225 = vunpack.c.l.b16 %v4984
  %v5226 = vunpack.c.l.b16 %v4985
  %v5227 = vunpack.c.l.b16 %v4986
  %v5228 = vunpack.c.l.b16 %v4987
  %v5229 = vunpack.c.l.b16 %v4988
  %v5230 = vunpack.c.l.b16 %v4989
  %v5231 = vunpack.c.l.b16 %v4990
  %v5232 = vunpack.c.l.b16 %v4991
  %v5233 = vunpack.c.l.b16 %v4992
  %v5234 = vunpack.c.l.b16 %v4993
  %v5235 = vunpack.c.l.b16 %v4994
  %v5236 = vunpack.c.l.b16 %v4995
  %v5237 = vunpack.c.l.b16 %v4996
  %v5238 = vunpack.c.l.b16 %v4997
  %v5239 = vunpack.c.l.b16 %v4998
  %v5240 = vpack.c.b16 %v5145, %v5144
  %v5241 = vpack.c.b16 %v5147, %v5146
  %v5242 = vpack.c.b16 %v5149, %v5148
  %v5243 = vpack.c.b16 %v5151, %v5150
  %v5244 = vpack.c.b16 %v5153, %v5152
  %v5245 = vpack.c.b16 %v5155, %v5154
  %v5246 = vpack.c.b16 %v5157, %v5156
  %v5247 = vpack.c.b16 %v5159, %v5158
  %v5248 = vpack.c.b16 %v5161, %v5160
  %v5249 = vpack.c.b16 %v5163, %v5162
  %v5250 = vpack.c.b16 %v5165, %v5164
  %v5251 = vpack.c.b16 %v5167, %v5166
  %v5252 = vpack.c.b16 %v5169, %v5168
  %v5253 = vpack.c.b16 %v5171, %v5170
  %v5254 = vpack.c.b16 %v5173, %v5172
  %v5255 = vpack.c.b16 %v5175, %v5174
  %v5256 = vpack.c.b16 %v5177, %v5176
  %v5257 = vpack.c.b16 %v5179, %v5178
  %v5258 = vpack.c.b16 %v5181, %v5180
  %v5259 = vpack.c.b16 %v5183, %v5182
  %v5260 = vpack.c.b16 %v5185, %v5184
  %v5261 = vpack.c.b16 %v5187, %v5186
  %v5262 = vpack.c.b16 %v5189, %v5188
  %v5263 = vpack.c.b16 %v5191, %v5190
  %v5264 = vpack.c.b16 %v5193, %v5192
  %v5265 = vpack.c.b16 %v5195, %v5194
  %v5266 = vpack.c.b16 %v5197, %v5196
  %v5267 = vpack.c.b16 %v5199, %v5198
  %v5268 = vpack.c.b16 %v5201, %v5200
  %v5269 = vpack.c.b16 %v5203, %v5202
  %v5270 = vpack.c.b16 %v5205, %v5204
  %v5271 = vpack.c.b16 %v5207, %v5206
  %v5272 = vpack.c.b16 %v5209, %v5208
  %v5273 = vpack.c.b16 %v5211, %v5210
  %v5274 = vpack.c.b16 %v5213, %v5212
  %v5275 = vpack.c.b16 %v5215, %v5214
  %v5276 = vpack.c.b16 %v5217, %v5216
  %v5277 = vpack.c.b16 %v5219, %v5218
  %v5278 = vpack.c.b16 %v5221, %v5220
  %v5279 = vpack.c.b16 %v5223, %v5222
  %v5280 = vpack.c.b16 %v5225, %v5224
  %v5281 = vpack.c.b16 %v5227, %v5226
  %v5282 = vpack.c.b16 %v5229, %v5228
  %v5283 = vpack.c.b16 %v5231, %v5230
  %v5284 = vpack.c.b16 %v5233, %v5232
  %v5285 = vpack.c.b16 %v5235, %v5234
  %v5286 = vpack.c.b16 %v5237, %v5236
  %v5287 = vpack.c.b16 %v5239, %v5238
  %5336 = vmatprep.subr.bf16.mxu0 0
  %5337 = vmatpush1.bf16.msra.mxu0 %v5240
  %5338 = vmatprep.subr.bf16.mxu0 0
  %5339 = vmatpush1.bf16.msra.mxu0 %v5241
  %5340 = vmatprep.subr.bf16.mxu0 0
  %5341 = vmatpush1.bf16.msra.mxu0 %v5242
  %5342 = vmatprep.subr.bf16.mxu0 0
  %5343 = vmatpush1.bf16.msra.mxu0 %v5243
  %5344 = vmatprep.subr.bf16.mxu0 0
  %5345 = vmatpush1.bf16.msra.mxu0 %v5244
  %5346 = vmatprep.subr.bf16.mxu0 0
  %5347 = vmatpush1.bf16.msra.mxu0 %v5245
  %5348 = vmatprep.subr.bf16.mxu0 0
  %5349 = vmatpush1.bf16.msra.mxu0 %v5246
  %5350 = vmatprep.subr.bf16.mxu0 0
  %5351 = vmatpush1.bf16.msra.mxu0 %v5247
  %5352 = vmatprep.subr.bf16.mxu0 0
  %5353 = vmatpush1.bf16.msra.mxu0 %v5248
  %5354 = vmatprep.subr.bf16.mxu0 0
  %5355 = vmatpush1.bf16.msra.mxu0 %v5249
  %5356 = vmatprep.subr.bf16.mxu0 0
  %5357 = vmatpush1.bf16.msra.mxu0 %v5250
  %5358 = vmatprep.subr.bf16.mxu0 0
  %5359 = vmatpush1.bf16.msra.mxu0 %v5251
  %5360 = vmatprep.subr.bf16.mxu0 0
  %5361 = vmatpush1.bf16.msra.mxu0 %v5252
  %5362 = vmatprep.subr.bf16.mxu0 0
  %5363 = vmatpush1.bf16.msra.mxu0 %v5253
  %5364 = vmatprep.subr.bf16.mxu0 0
  %5365 = vmatpush1.bf16.msra.mxu0 %v5254
  %5366 = vmatprep.subr.bf16.mxu0 0
  %5367 = vmatpush1.bf16.msra.mxu0 %v5255
  %5368 = vmatprep.mubr.bf16.mxu0 %v5037
  %5369 = vmatmul.mubr.bf16.gmra.mrb[0].mxu0 %v5036
  %v5370 = vpop.f32.mrb[0].mxu0
  %v5371 = vadd.f32 %v5004, %v5370
  %v5372 = vpop.f32.mrb[0].mxu0
  %v5373 = vpop.f32.mrb[0].mxu0
  %v5374 = vpop.f32.mrb[0].mxu0
  %5375 = vdwg.mxu0
  %5376 = vmatprep.subr.bf16.mxu0 0
  %5377 = vmatpush1.bf16.msra.mxu0 %v5256
  %5378 = vmatprep.subr.bf16.mxu0 0
  %5379 = vmatpush1.bf16.msra.mxu0 %v5257
  %5380 = vmatprep.subr.bf16.mxu0 0
  %5381 = vmatpush1.bf16.msra.mxu0 %v5258
  %5382 = vmatprep.subr.bf16.mxu0 0
  %5383 = vmatpush1.bf16.msra.mxu0 %v5259
  %5384 = vmatprep.subr.bf16.mxu0 0
  %5385 = vmatpush1.bf16.msra.mxu0 %v5260
  %5386 = vmatprep.subr.bf16.mxu0 0
  %5387 = vmatpush1.bf16.msra.mxu0 %v5261
  %5388 = vmatprep.subr.bf16.mxu0 0
  %5389 = vmatpush1.bf16.msra.mxu0 %v5262
  %5390 = vmatprep.subr.bf16.mxu0 0
  %5391 = vmatpush1.bf16.msra.mxu0 %v5263
  %5392 = vmatprep.subr.bf16.mxu0 0
  %5393 = vmatpush1.bf16.msra.mxu0 %v5264
  %5394 = vmatprep.subr.bf16.mxu0 0
  %5395 = vmatpush1.bf16.msra.mxu0 %v5265
  %5396 = vmatprep.subr.bf16.mxu0 0
  %5397 = vmatpush1.bf16.msra.mxu0 %v5266
  %5398 = vmatprep.subr.bf16.mxu0 0
  %5399 = vmatpush1.bf16.msra.mxu0 %v5267
  %5400 = vmatprep.subr.bf16.mxu0 0
  %5401 = vmatpush1.bf16.msra.mxu0 %v5268
  %5402 = vmatprep.subr.bf16.mxu0 0
  %5403 = vmatpush1.bf16.msra.mxu0 %v5269
  %5404 = vmatprep.subr.bf16.mxu0 0
  %5405 = vmatpush1.bf16.msra.mxu0 %v5270
  %5406 = vmatprep.subr.bf16.mxu0 0
  %5407 = vmatpush1.bf16.msra.mxu0 %v5271
  %5408 = vmatprep.mubr.bf16.mxu0 %v5039
  %5409 = vmatmul.mubr.bf16.gmra.mrb[0].mxu0 %v5038
  %v5410 = vpop.f32.mrb[0].mxu0
  %v5411 = vadd.f32 %v5371, %v5410
  %v5412 = vpop.f32.mrb[0].mxu0
  %v5413 = vpop.f32.mrb[0].mxu0
  %v5414 = vpop.f32.mrb[0].mxu0
  %5415 = vdwg.mxu0
  %5416 = vmatprep.subr.bf16.mxu0 0
  %5417 = vmatpush1.bf16.msra.mxu0 %v5272
  %5418 = vmatprep.subr.bf16.mxu0 0
  %5419 = vmatpush1.bf16.msra.mxu0 %v5273
  %5420 = vmatprep.subr.bf16.mxu0 0
  %5421 = vmatpush1.bf16.msra.mxu0 %v5274
  %5422 = vmatprep.subr.bf16.mxu0 0
  %5423 = vmatpush1.bf16.msra.mxu0 %v5275
  %5424 = vmatprep.subr.bf16.mxu0 0
  %5425 = vmatpush1.bf16.msra.mxu0 %v5276
  %5426 = vmatprep.subr.bf16.mxu0 0
  %5427 = vmatpush1.bf16.msra.mxu0 %v5277
  %5428 = vmatprep.subr.bf16.mxu0 0
  %5429 = vmatpush1.bf16.msra.mxu0 %v5278
  %5430 = vmatprep.subr.bf16.mxu0 0
  %5431 = vmatpush1.bf16.msra.mxu0 %v5279
  %5432 = vmatprep.subr.bf16.mxu0 0
  %5433 = vmatpush1.bf16.msra.mxu0 %v5280
  %5434 = vmatprep.subr.bf16.mxu0 0
  %5435 = vmatpush1.bf16.msra.mxu0 %v5281
  %5436 = vmatprep.subr.bf16.mxu0 0
  %5437 = vmatpush1.bf16.msra.mxu0 %v5282
  %5438 = vmatprep.subr.bf16.mxu0 0
  %5439 = vmatpush1.bf16.msra.mxu0 %v5283
  %5440 = vmatprep.subr.bf16.mxu0 0
  %5441 = vmatpush1.bf16.msra.mxu0 %v5284
  %5442 = vmatprep.subr.bf16.mxu0 0
  %5443 = vmatpush1.bf16.msra.mxu0 %v5285
  %5444 = vmatprep.subr.bf16.mxu0 0
  %5445 = vmatpush1.bf16.msra.mxu0 %v5286
  %5446 = vmatprep.subr.bf16.mxu0 0
  %5447 = vmatpush1.bf16.msra.mxu0 %v5287
  %5448 = vmatprep.mubr.bf16.mxu0 %v5041
  %5449 = vmatmul.mubr.bf16.gmra.mrb[0].mxu0 %v5040
  %v5450 = vpop.f32.mrb[0].mxu0
  %v5451 = vadd.f32 %v5411, %v5450
  %v5452 = vpop.f32.mrb[0].mxu0
  %v5453 = vpop.f32.mrb[0].mxu0
  %v5454 = vpop.f32.mrb[0].mxu0
  %5455 = vdwg.mxu0
  %v5456 = vmax.f32 %v5451, 0.0
  %v5457 = vpack.c.bf16 %v5456, %v5456
  %v5458 = vld [vmem:[%s23] sm:$0xf]
  %v5459 = vld [vmem:[#allocation3] sm:$0x1]
  %v5461 = vlaneseq
  %v5462 = vshrl.u32 %v5461, 7
  %v5463 = vsub.s32 0, %v5462
  %v5464 = vrot.slane %v5459, %v5463
  %v5467 = vsel %vm4746, %v5457, 0
  %v5470 = vsel %vm4750, %v5458, 0
  %5472 = vmatprep.subr.bf16.mxu0 0
  %5473 = vmatpush1.bf16.msra.mxu0 %v5470
  %5474 = vmatprep.subr.bf16.mxu0 0
  %5475 = vmatpush1.bf16.msra.mxu0 0
  %5476 = vmatprep.subr.bf16.mxu0 0
  %5477 = vmatpush1.bf16.msra.mxu0 0
  %5478 = vmatprep.subr.bf16.mxu0 0
  %5479 = vmatpush1.bf16.msra.mxu0 0
  %5480 = vmatprep.subr.bf16.mxu0 0
  %5481 = vmatpush1.bf16.msra.mxu0 0
  %5482 = vmatprep.subr.bf16.mxu0 0
  %5483 = vmatpush1.bf16.msra.mxu0 0
  %5484 = vmatprep.subr.bf16.mxu0 0
  %5485 = vmatpush1.bf16.msra.mxu0 0
  %5486 = vmatprep.subr.bf16.mxu0 0
  %5487 = vmatpush1.bf16.msra.mxu0 0
  %5488 = vmatprep.subr.bf16.mxu0 0
  %5489 = vmatpush1.bf16.msra.mxu0 0
  %5490 = vmatprep.subr.bf16.mxu0 0
  %5491 = vmatpush1.bf16.msra.mxu0 0
  %5492 = vmatprep.subr.bf16.mxu0 0
  %5493 = vmatpush1.bf16.msra.mxu0 0
  %5494 = vmatprep.subr.bf16.mxu0 0
  %5495 = vmatpush1.bf16.msra.mxu0 0
  %5496 = vmatprep.subr.bf16.mxu0 0
  %5497 = vmatpush1.bf16.msra.mxu0 0
  %5498 = vmatprep.subr.bf16.mxu0 0
  %5499 = vmatpush1.bf16.msra.mxu0 0
  %5500 = vmatprep.subr.bf16.mxu0 0
  %5501 = vmatpush1.bf16.msra.mxu0 0
  %5502 = vmatprep.subr.bf16.mxu0 0
  %5503 = vmatpush1.bf16.msra.mxu0 0
  %5504 = vmatprep.mubr.bf16.mxu0 0
  %5505 = vmatmul.mubr.bf16.gmra.mrb[0].mxu0 %v5467
  %v5506 = vpop.f32.mrb[0].mxu0
  %v5507 = vadd.f32 %v5464, %v5506
  %v5508 = vpop.f32.mrb[0].mxu0
  %v5509 = vpop.f32.mrb[0].mxu0
  %v5510 = vpop.f32.mrb[0].mxu0
  %5511 = vdwg.mxu0
  %v5512 = vadd.f32 %v5507, %v4789
  %v5513 = vsub.f32 0.0, %v5512
  %v5514 = vmul.f32 %v5513, 1.442695
  %v5515 = vpow.pop %v5514
  %v5516 = vadd.f32 %v5515, 1.0
  %v5517 = vrcp.pop %v5516
  %v5518 = vmul.f32 1.0, %v5517
  %vm5519 = vcmask 1024
  %5520 = vst.msk [vmem:[%s25] sm:$0x3] %vm5519, %v5518
  %v5521 = vsub.f32 0.0, %v4789
  %v5522 = vmul.f32 %v5521, 1.442695
  %v5523 = vpow.pop %v5522
  %v5524 = vadd.f32 %v5523, 1.0
  %v5525 = vrcp.pop %v5524
  %v5526 = vmul.f32 1.0, %v5525
  %5527 = vst.msk [vmem:[%s26] sm:$0x3] %vm5519, %v5526
  %v5528 = vsub.f32 0.0, %v5507
  %v5529 = vmul.f32 %v5528, 1.442695
  %v5530 = vpow.pop %v5529
  %v5531 = vadd.f32 %v5530, 1.0
  %v5532 = vrcp.pop %v5531
  %v5533 = vmul.f32 1.0, %v5532
  %5534 = vst.msk [vmem:[%s27] sm:$0x3] %vm5519, %v5533
  // Predicated region
  $region102: #{gat_forward.1} parent=0 // pred_check
    _
  $region103: #{gat_forward.1} parent=0 // pred_check_branch
    %5536 = sbr.rel (0) target = $region105
  $region104: #{gat_forward.1} parent=0 // pred_region
    _
  $region105: #{gat_forward.1} parent=0 // pred_fallthru
    _
  // Predicated region
  $region106: #{gat_forward.1} parent=0 // pred_check
    _
  $region107: #{gat_forward.1} parent=0 // pred_check_branch
    %5538 = sbr.rel (0) target = $region109
  $region108: #{gat_forward.1} parent=0 // pred_region
    _
  $region109: #{gat_forward.1} parent=0 // pred_fallthru
    _
  // Predicated region
  $region110: #{gat_forward.1} parent=0 // pred_check
    _
  $region111: #{gat_forward.1} parent=0 // pred_check_branch
    %5540 = sbr.rel (0) target = $region113
  $region112: #{gat_forward.1} parent=0 // pred_region
    _
  $region113: #{gat_forward.1} parent=0 // pred_fallthru
    _
  // Predicated region
  $region114: #{gat_forward.1} parent=0 // pred_check
    _
  $region115: #{gat_forward.1} parent=0 // pred_check_branch
    %5542 = sbr.rel (0) target = $region117
  $region116: #{gat_forward.1} parent=0 // pred_region
    _
  $region117: #{gat_forward.1} parent=0 // pred_fallthru
    _
  // Predicated region
  $region118: #{gat_forward.1} parent=0 // pred_check
    _
  $region119: #{gat_forward.1} parent=0 // pred_check_branch
    %5544 = sbr.rel (0) target = $region121
  $region120: #{gat_forward.1} parent=0 // pred_region
    _
  $region121: #{gat_forward.1} parent=0 // pred_fallthru
    _
  // Predicated region
  $region122: #{gat_forward.1} parent=0 // pred_check
    _
  $region123: #{gat_forward.1} parent=0 // pred_check_branch
    %5546 = sbr.rel (0) target = $region125
  $region124: #{gat_forward.1} parent=0 // pred_region
    _
  $region125: #{gat_forward.1} parent=0 // pred_fallthru
    _

</llo_original>
